<compile_context>
chip_gen: v7x
topology: tpu7x:2x2x1
jax: 0.10.0
libtpu: 0.0.40
codegen_flags: <defaults>
</compile_context>

<pallas_src>
import jax
import jax.numpy as jnp
from jax.experimental import pallas as pl
from jax.experimental.pallas import tpu as pltpu


def _field_kernel(t_ref, x_ref, y_ref, emb_ref, w1_ref, b1_ref, wt_ref,
                  w2_ref, b2_ref, o_ref):
    tb = x_ref.shape[0]
    c_pad = emb_ref.shape[0]

    # In-kernel class-embedding lookup: one-hot (bf16) @ table (bf16) on the
    # MXU with exact 0/1 weights and f32 accumulation.  Out-of-range class ids
    # silently select an all-zero row (PyTorch nn.Embedding would raise).
    cls_iota = jax.lax.broadcasted_iota(jnp.int32, (tb, c_pad), 1)
    onehot = (y_ref[...] == cls_iota).astype(jnp.bfloat16)
    y_emb = jnp.dot(onehot, emb_ref[...], preferred_element_type=jnp.float32)

    # x @ W1: x is streamed as f32 and cast to bf16 here (VPU op under MXU/DMA
    # slack); f32 MXU accumulation.
    h = jnp.dot(x_ref[...].astype(jnp.bfloat16), w1_ref[...],
                preferred_element_type=jnp.float32)

    # Time conditioning: scalar t (SMEM) * Wt row, folded with +b1.
    # Pure f32 VPU math - no rank-1 matmul, no (B,1) stream.
    h = h + y_emb + (t_ref[0, 0] * wt_ref[...] + b1_ref[...])

    # tanh-approximate GELU -> transcendental lands on the EUP slot.
    # TODO(synk): PyTorch nn.GELU defaults to exact erf GELU; switch to
    # jax.nn.gelu(h, approximate=False) if bit parity with the real field matters.
    h = jax.nn.gelu(h)

    out = jnp.dot(h.astype(jnp.bfloat16), w2_ref[...],
                  preferred_element_type=jnp.float32)
    o_ref[...] = (out + b2_ref[...]).astype(o_ref.dtype)


def prepare_field_params(params):
    """One-time, out-of-hot-loop prep: bf16 weight casts + class-table padding.

    PFlowRHS is an ODE right-hand side called many times per solve; doing this
    per call would re-read/re-write every weight in HBM on each evaluation.
    """
    emb = params["class_emb"]
    c, h = emb.shape
    d = params["w2"].shape[1]
    c_pad = max(128, ((c + 127) // 128) * 128)   # lane-dense one-hot / deeper MXU K
    if c_pad != c:
        emb = jnp.pad(emb, ((0, c_pad - c), (0, 0)))
    return {
        "w1": params["w1"].astype(jnp.bfloat16),
        "w2": params["w2"].astype(jnp.bfloat16),
        "class_emb": emb.astype(jnp.bfloat16),
        "b1": params["b1"].reshape(1, h).astype(jnp.float32),
        "wt": params["wt"].reshape(1, h).astype(jnp.float32),
        "b2": params["b2"].reshape(1, d).astype(jnp.float32),
    }


def field_pallas(x, t, y, fparams, *, tb=None, out_dtype=None):
    """Velocity field v(x, t, y); `fparams` comes from prepare_field_params()."""
    B, D = x.shape
    H = fparams["w1"].shape[1]
    c_pad = fparams["class_emb"].shape[0]

    if out_dtype is None:
        # TODO(synk): emit bf16 here if the ODE solver's error control allows it
        # (the output is the largest per-tile HBM stream).
        out_dtype = x.dtype

    # Batch tile: big for DMA efficiency, multiple of 16 (bf16 sublane packing),
    # capped so there are >=4 grid steps when B allows (>=2 per v7x TensorCore).
    if tb is None:
        tb = 512
    tb = min(tb, B)
    if B >= 64:
        tb = min(tb, B // 4)
    tb = max(16, (tb // 16) * 16)
    grid = (pl.cdiv(B, tb),)

    t_smem = jnp.asarray(t, dtype=jnp.float32).reshape(1, 1)
    y2d = y.reshape(B, 1).astype(jnp.int32)

    def run(single_buffer_residents):
        def resident(shp):
            if single_buffer_residents:
                # Block index never changes -> one buffer is enough; halves the
                # resident VMEM footprint at realistic MLP widths (v7x: 64 MiB).
                return pl.BlockSpec(shp, lambda i: (0, 0),
                                    pipeline_mode=pl.Buffered(1))
            return pl.BlockSpec(shp, lambda i: (0, 0))

        return pl.pallas_call(
            _field_kernel,
            out_shape=jax.ShapeDtypeStruct((B, D), out_dtype),
            grid=grid,
            in_specs=[
                pl.BlockSpec((1, 1), lambda i: (0, 0),
                             memory_space=pltpu.MemorySpace.SMEM),  # scalar t
                pl.BlockSpec((tb, D), lambda i: (i, 0)),            # x tile (f32)
                pl.BlockSpec((tb, 1), lambda i: (i, 0)),            # class ids
                resident((c_pad, H)),                               # class table bf16
                resident((D, H)),                                   # W1 bf16
                resident((1, H)),                                   # b1 f32
                resident((1, H)),                                   # Wt f32
                resident((H, D)),                                   # W2 bf16
                resident((1, D)),                                   # b2 f32
            ],
            out_specs=pl.BlockSpec((tb, D), lambda i: (i, 0)),
            compiler_params=pltpu.CompilerParams(
                dimension_semantics=("parallel",),
                vmem_limit_bytes=32 * 1024 * 1024,  # v5e default is only 16 MiB
            ),
        )(t_smem, x, y2d, fparams["class_emb"], fparams["w1"], fparams["b1"],
          fparams["wt"], fparams["w2"], fparams["b2"])

    try:
        return run(single_buffer_residents=True)
    except Exception:
        # Fallback for JAX versions without per-block pipeline_mode support.
        return run(single_buffer_residents=False)


def pflow_rhs_forward(t, states, fparams, likelihood=False):
    """JAX/Pallas equivalent of PFlowRHS.forward(t, states)."""
    x, y, _ = states
    y = y.astype(jnp.int32)                       # y.long()
    B = x.shape[0]
    v = field_pallas(x, t, y, fparams)            # field(x, ones(B)*t, y)
    if not likelihood:
        return (v, jnp.zeros_like(y), jnp.zeros((B,), dtype=x.dtype))
    # TODO(synk): likelihood=True needs compute_div (Jacobian trace of the field).
    raise NotImplementedError("likelihood=True divergence path not implemented")


def init_params(key, D, H, num_classes, dtype=jnp.float32):
    k1, k2, k3, k4 = jax.random.split(key, 4)
    scale1 = 1.0 / jnp.sqrt(D)
    scale2 = 1.0 / jnp.sqrt(H)
    return {
        "w1": (jax.random.normal(k1, (D, H)) * scale1).astype(dtype),
        "b1": jnp.zeros((1, H), dtype),
        "wt": jax.random.normal(k2, (1, H)).astype(dtype),
        "w2": (jax.random.normal(k3, (H, D)) * scale2).astype(dtype),
        "b2": jnp.zeros((1, D), dtype),
        "class_emb": (jax.random.normal(k4, (num_classes, H)) * 0.1).astype(dtype),
    }


if __name__ == "__main__":
    # Lane-dense but still small: D, H multiples of 128 so MXU tiles are filled
    # and output stores are unmasked; B=512 with tb=128 -> grid=(4,), i.e. two
    # pipelined steps per TensorCore on v7x.
    B, D, H, NUM_CLASSES = 512, 128, 256, 10
    key = jax.random.PRNGKey(0)
    kx, ky, kp = jax.random.split(key, 3)

    x = jax.random.normal(kx, (B, D), dtype=jnp.float32)
    y = jax.random.randint(ky, (B,), 0, NUM_CLASSES, dtype=jnp.int32)
    logp = jnp.zeros((B,), dtype=jnp.float32)     # third state slot (unused by forward)

    params = init_params(kp, D, H, NUM_CLASSES)
    fparams = prepare_field_params(params)        # hoisted out of the ODE hot loop

    t = jnp.float32(0.37)
    dx, dy, dlogp = pflow_rhs_forward(t, (x, y, logp), fparams, likelihood=False)
    jax.block_until_ready((dx, dy, dlogp))

    # Pure-JAX reference with the same bf16-operand / f32-accumulate recipe.
    w1_bf = params["w1"].astype(jnp.bfloat16)
    w2_bf = params["w2"].astype(jnp.bfloat16)
    emb_f32 = params["class_emb"].astype(jnp.bfloat16).astype(jnp.float32)
    h_ref = jnp.dot(x.astype(jnp.bfloat16), w1_bf,
                    preferred_element_type=jnp.float32)
    h_ref = h_ref + emb_f32[y] + (t * params["wt"] + params["b1"])
    h_ref = jax.nn.gelu(h_ref)
    v_ref = jnp.dot(h_ref.astype(jnp.bfloat16), w2_bf,
                    preferred_element_type=jnp.float32) + params["b2"]

    assert dx.shape == (B, D) and dy.shape == (B,) and dlogp.shape == (B,)
    assert jnp.allclose(dx, v_ref, atol=2e-2, rtol=2e-2)
    assert jnp.all(dy == 0) and jnp.all(dlogp == 0)

    print("KERNEL_OK")
</pallas_src>

<mosaic_0001>
module attributes {stable_mosaic.version = 11 : i64} {
  func.func @_field_kernel(%arg0: i32, %arg1: memref<1x1xf32, #tpu.memory_space<smem>>, %arg2: memref<128x128xf32, #tpu.memory_space<vmem>>, %arg3: memref<128x1xi32, #tpu.memory_space<vmem>>, %arg4: memref<128x256xbf16, #tpu.memory_space<vmem>>, %arg5: memref<128x256xbf16, #tpu.memory_space<vmem>>, %arg6: memref<1x256xf32, #tpu.memory_space<vmem>>, %arg7: memref<1x256xf32, #tpu.memory_space<vmem>>, %arg8: memref<256x128xbf16, #tpu.memory_space<vmem>>, %arg9: memref<1x128xf32, #tpu.memory_space<vmem>>, %arg10: memref<128x128xf32, #tpu.memory_space<vmem>>) attributes {dimension_semantics = [#tpu.dimension_semantics<parallel>], iteration_bounds = array<i64: 4>, scalar_prefetch = 0 : i64, scratch_operands = 0 : i64, tpu.core_type = #tpu.core_type<tc>, window_params = [{transform_indices = @transform_0, window_bounds = array<i64: 1, 1>}, {transform_indices = @transform_1, window_bounds = array<i64: 128, 128>}, {transform_indices = @transform_2, window_bounds = array<i64: 128, 1>}, {pipeline_mode = #tpu.pipeline_mode<synchronous>, transform_indices = @transform_3, window_bounds = array<i64: 128, 256>}, {pipeline_mode = #tpu.pipeline_mode<synchronous>, transform_indices = @transform_4, window_bounds = array<i64: 128, 256>}, {pipeline_mode = #tpu.pipeline_mode<synchronous>, transform_indices = @transform_5, window_bounds = array<i64: 1, 256>}, {pipeline_mode = #tpu.pipeline_mode<synchronous>, transform_indices = @transform_6, window_bounds = array<i64: 1, 256>}, {pipeline_mode = #tpu.pipeline_mode<synchronous>, transform_indices = @transform_7, window_bounds = array<i64: 256, 128>}, {pipeline_mode = #tpu.pipeline_mode<synchronous>, transform_indices = @transform_8, window_bounds = array<i64: 1, 128>}, {transform_indices = @transform_9, window_bounds = array<i64: 128, 128>}]} {
    %0 = tpu.iota {dimensions = array<i32: 1>} : vector<128x128xi32>
    %c0 = arith.constant 0 : index
    %c0_0 = arith.constant 0 : index
    %1 = vector.load %arg3[%c0, %c0_0] : memref<128x1xi32, #tpu.memory_space<vmem>>, vector<128x1xi32>
    %2 = vector.broadcast %1 : vector<128x1xi32> to vector<128x128xi32>
    %3 = arith.cmpi eq, %2, %0 : vector<128x128xi32>
    %4 = arith.extui %3 : vector<128x128xi1> to vector<128x128xi32>
    %5 = arith.sitofp %4 : vector<128x128xi32> to vector<128x128xf32>
    %6 = arith.truncf %5 : vector<128x128xf32> to vector<128x128xbf16>
    %c0_1 = arith.constant 0 : index
    %c0_2 = arith.constant 0 : index
    %7 = vector.load %arg4[%c0_1, %c0_2] : memref<128x256xbf16, #tpu.memory_space<vmem>>, vector<128x256xbf16>
    %cst = arith.constant dense<0.000000e+00> : vector<128x256xf32>
    %8 = tpu.matmul %6, %7, %cst {dimension_numbers = #tpu.dot_dimension_numbers<[1], [0], [0], [1], [0, 0, 1, 1], [], []>} : vector<128x128xbf16>, vector<128x256xbf16>, vector<128x256xf32> -> vector<128x256xf32>
    %c0_3 = arith.constant 0 : index
    %c0_4 = arith.constant 0 : index
    %9 = vector.load %arg2[%c0_3, %c0_4] : memref<128x128xf32, #tpu.memory_space<vmem>>, vector<128x128xf32>
    %10 = arith.truncf %9 : vector<128x128xf32> to vector<128x128xbf16>
    %c0_5 = arith.constant 0 : index
    %c0_6 = arith.constant 0 : index
    %11 = vector.load %arg5[%c0_5, %c0_6] : memref<128x256xbf16, #tpu.memory_space<vmem>>, vector<128x256xbf16>
    %cst_7 = arith.constant dense<0.000000e+00> : vector<128x256xf32>
    %12 = tpu.matmul %10, %11, %cst_7 {dimension_numbers = #tpu.dot_dimension_numbers<[1], [0], [0], [1], [0, 0, 1, 1], [], []>} : vector<128x128xbf16>, vector<128x256xbf16>, vector<128x256xf32> -> vector<128x256xf32>
    %13 = arith.addf %12, %8 : vector<128x256xf32>
    %c0_8 = arith.constant 0 : index
    %c0_9 = arith.constant 0 : index
    %14 = memref.load %arg1[%c0_8, %c0_9] : memref<1x1xf32, #tpu.memory_space<smem>>
    %c0_10 = arith.constant 0 : index
    %c0_11 = arith.constant 0 : index
    %15 = vector.load %arg7[%c0_10, %c0_11] : memref<1x256xf32, #tpu.memory_space<vmem>>, vector<1x256xf32>
    %16 = vector.broadcast %14 : f32 to vector<1x256xf32>
    %17 = arith.mulf %16, %15 : vector<1x256xf32>
    %c0_12 = arith.constant 0 : index
    %c0_13 = arith.constant 0 : index
    %18 = vector.load %arg6[%c0_12, %c0_13] : memref<1x256xf32, #tpu.memory_space<vmem>>, vector<1x256xf32>
    %19 = arith.addf %17, %18 : vector<1x256xf32>
    %20 = vector.broadcast %19 : vector<1x256xf32> to vector<128x256xf32>
    %21 = arith.addf %13, %20 : vector<128x256xf32>
    %22 = arith.mulf %21, %21 : vector<128x256xf32>
    %23 = arith.mulf %21, %22 : vector<128x256xf32>
    %cst_14 = arith.constant 4.471500e-02 : f32
    %24 = vector.broadcast %cst_14 : f32 to vector<128x256xf32>
    %25 = arith.mulf %24, %23 : vector<128x256xf32>
    %26 = arith.addf %21, %25 : vector<128x256xf32>
    %cst_15 = arith.constant 0.797884583 : f32
    %27 = vector.broadcast %cst_15 : f32 to vector<128x256xf32>
    %28 = arith.mulf %27, %26 : vector<128x256xf32>
    %29 = math.tanh %28 : vector<128x256xf32>
    %cst_16 = arith.constant 1.000000e+00 : f32
    %30 = vector.broadcast %cst_16 : f32 to vector<128x256xf32>
    %31 = arith.addf %30, %29 : vector<128x256xf32>
    %cst_17 = arith.constant 5.000000e-01 : f32
    %32 = vector.broadcast %cst_17 : f32 to vector<128x256xf32>
    %33 = arith.mulf %32, %31 : vector<128x256xf32>
    %34 = arith.mulf %21, %33 : vector<128x256xf32>
    %35 = arith.truncf %34 : vector<128x256xf32> to vector<128x256xbf16>
    %c0_18 = arith.constant 0 : index
    %c0_19 = arith.constant 0 : index
    %36 = vector.load %arg8[%c0_18, %c0_19] : memref<256x128xbf16, #tpu.memory_space<vmem>>, vector<256x128xbf16>
    %cst_20 = arith.constant dense<0.000000e+00> : vector<128x128xf32>
    %37 = tpu.matmul %35, %36, %cst_20 {dimension_numbers = #tpu.dot_dimension_numbers<[1], [0], [0], [1], [0, 0, 1, 1], [], []>} : vector<128x256xbf16>, vector<256x128xbf16>, vector<128x128xf32> -> vector<128x128xf32>
    %c0_21 = arith.constant 0 : index
    %c0_22 = arith.constant 0 : index
    %38 = vector.load %arg9[%c0_21, %c0_22] : memref<1x128xf32, #tpu.memory_space<vmem>>, vector<1x128xf32>
    %39 = vector.broadcast %38 : vector<1x128xf32> to vector<128x128xf32>
    %40 = arith.addf %37, %39 : vector<128x128xf32>
    %c0_23 = arith.constant 0 : index
    %c0_24 = arith.constant 0 : index
    %41 = vector.load %arg10[%c0_23, %c0_24] : memref<128x128xf32, #tpu.memory_space<vmem>>, vector<128x128xf32>
    tpu.vector_store %arg10[%c0_23, %c0_24], %40 {strides = array<i32>} : memref<128x128xf32, #tpu.memory_space<vmem>>, vector<128x128xf32>,
    return
  }
  func.func @transform_0(%arg0: i32) -> (i32, i32) {
    %c0_i32 = arith.constant 0 : i32
    %c0_i32_0 = arith.constant 0 : i32
    %c0_i32_1 = arith.constant 0 : i32
    return %c0_i32, %c0_i32_0 : i32, i32
  }
  func.func @transform_1(%arg0: i32) -> (i32, i32) {
    %c0_i32 = arith.constant 0 : i32
    %c0_i32_0 = arith.constant 0 : i32
    return %arg0, %c0_i32 : i32, i32
  }
  func.func @transform_2(%arg0: i32) -> (i32, i32) {
    %c0_i32 = arith.constant 0 : i32
    %c0_i32_0 = arith.constant 0 : i32
    return %arg0, %c0_i32 : i32, i32
  }
  func.func @transform_3(%arg0: i32) -> (i32, i32) {
    %c0_i32 = arith.constant 0 : i32
    %c0_i32_0 = arith.constant 0 : i32
    %c0_i32_1 = arith.constant 0 : i32
    return %c0_i32, %c0_i32_0 : i32, i32
  }
  func.func @transform_4(%arg0: i32) -> (i32, i32) {
    %c0_i32 = arith.constant 0 : i32
    %c0_i32_0 = arith.constant 0 : i32
    %c0_i32_1 = arith.constant 0 : i32
    return %c0_i32, %c0_i32_0 : i32, i32
  }
  func.func @transform_5(%arg0: i32) -> (i32, i32) {
    %c0_i32 = arith.constant 0 : i32
    %c0_i32_0 = arith.constant 0 : i32
    %c0_i32_1 = arith.constant 0 : i32
    return %c0_i32, %c0_i32_0 : i32, i32
  }
  func.func @transform_6(%arg0: i32) -> (i32, i32) {
    %c0_i32 = arith.constant 0 : i32
    %c0_i32_0 = arith.constant 0 : i32
    %c0_i32_1 = arith.constant 0 : i32
    return %c0_i32, %c0_i32_0 : i32, i32
  }
  func.func @transform_7(%arg0: i32) -> (i32, i32) {
    %c0_i32 = arith.constant 0 : i32
    %c0_i32_0 = arith.constant 0 : i32
    %c0_i32_1 = arith.constant 0 : i32
    return %c0_i32, %c0_i32_0 : i32, i32
  }
  func.func @transform_8(%arg0: i32) -> (i32, i32) {
    %c0_i32 = arith.constant 0 : i32
    %c0_i32_0 = arith.constant 0 : i32
    %c0_i32_1 = arith.constant 0 : i32
    return %c0_i32, %c0_i32_0 : i32, i32
  }
  func.func @transform_9(%arg0: i32) -> (i32, i32) {
    %c0_i32 = arith.constant 0 : i32
    %c0_i32_0 = arith.constant 0 : i32
    return %arg0, %c0_i32 : i32, i32
  }
}

module attributes {stable_mosaic.version = 11 : i64} {
  func.func @_field_kernel(%arg0: i32, %arg1: memref<1x1xf32, #tpu.memory_space<smem>>, %arg2: memref<128x128xf32, #tpu.memory_space<vmem>>, %arg3: memref<128x1xi32, #tpu.memory_space<vmem>>, %arg4: memref<128x256xbf16, #tpu.memory_space<vmem>>, %arg5: memref<128x256xbf16, #tpu.memory_space<vmem>>, %arg6: memref<1x256xf32, #tpu.memory_space<vmem>>, %arg7: memref<1x256xf32, #tpu.memory_space<vmem>>, %arg8: memref<256x128xbf16, #tpu.memory_space<vmem>>, %arg9: memref<1x128xf32, #tpu.memory_space<vmem>>, %arg10: memref<128x128xf32, #tpu.memory_space<vmem>>) attributes {dimension_semantics = [#tpu.dimension_semantics<parallel>], iteration_bounds = array<i64: 4>, scalar_prefetch = 0 : i64, scratch_operands = 0 : i64, tpu.core_type = #tpu.core_type<tc>, window_params = [{transform_indices = @transform_0, window_bounds = array<i64: 1, 1>}, {transform_indices = @transform_1, window_bounds = array<i64: 128, 128>}, {transform_indices = @transform_2, window_bounds = array<i64: 128, 1>}, {pipeline_mode = #tpu.pipeline_mode<synchronous>, transform_indices = @transform_3, window_bounds = array<i64: 128, 256>}, {pipeline_mode = #tpu.pipeline_mode<synchronous>, transform_indices = @transform_4, window_bounds = array<i64: 128, 256>}, {pipeline_mode = #tpu.pipeline_mode<synchronous>, transform_indices = @transform_5, window_bounds = array<i64: 1, 256>}, {pipeline_mode = #tpu.pipeline_mode<synchronous>, transform_indices = @transform_6, window_bounds = array<i64: 1, 256>}, {pipeline_mode = #tpu.pipeline_mode<synchronous>, transform_indices = @transform_7, window_bounds = array<i64: 256, 128>}, {pipeline_mode = #tpu.pipeline_mode<synchronous>, transform_indices = @transform_8, window_bounds = array<i64: 1, 128>}, {transform_indices = @transform_9, window_bounds = array<i64: 128, 128>}]} {
    %0 = tpu.iota {dimensions = array<i32: 1>} : vector<128x128xi32>
    %c0 = arith.constant 0 : index
    %c0_0 = arith.constant 0 : index
    %1 = vector.load %arg3[%c0, %c0_0] : memref<128x1xi32, #tpu.memory_space<vmem>>, vector<128x1xi32>
    %2 = vector.broadcast %1 : vector<128x1xi32> to vector<128x128xi32>
    %3 = arith.cmpi eq, %2, %0 : vector<128x128xi32>
    %4 = arith.extui %3 : vector<128x128xi1> to vector<128x128xi32>
    %5 = arith.sitofp %4 : vector<128x128xi32> to vector<128x128xf32>
    %6 = arith.truncf %5 : vector<128x128xf32> to vector<128x128xbf16>
    %c0_1 = arith.constant 0 : index
    %c0_2 = arith.constant 0 : index
    %7 = vector.load %arg4[%c0_1, %c0_2] : memref<128x256xbf16, #tpu.memory_space<vmem>>, vector<128x256xbf16>
    %cst = arith.constant dense<0.000000e+00> : vector<128x256xf32>
    %8 = tpu.matmul %6, %7, %cst {dimension_numbers = #tpu.dot_dimension_numbers<[1], [0], [0], [1], [0, 0, 1, 1], [], []>} : vector<128x128xbf16>, vector<128x256xbf16>, vector<128x256xf32> -> vector<128x256xf32>
    %c0_3 = arith.constant 0 : index
    %c0_4 = arith.constant 0 : index
    %9 = vector.load %arg2[%c0_3, %c0_4] : memref<128x128xf32, #tpu.memory_space<vmem>>, vector<128x128xf32>
    %10 = arith.truncf %9 : vector<128x128xf32> to vector<128x128xbf16>
    %c0_5 = arith.constant 0 : index
    %c0_6 = arith.constant 0 : index
    %11 = vector.load %arg5[%c0_5, %c0_6] : memref<128x256xbf16, #tpu.memory_space<vmem>>, vector<128x256xbf16>
    %cst_7 = arith.constant dense<0.000000e+00> : vector<128x256xf32>
    %12 = tpu.matmul %10, %11, %cst_7 {dimension_numbers = #tpu.dot_dimension_numbers<[1], [0], [0], [1], [0, 0, 1, 1], [], []>} : vector<128x128xbf16>, vector<128x256xbf16>, vector<128x256xf32> -> vector<128x256xf32>
    %13 = arith.addf %12, %8 : vector<128x256xf32>
    %c0_8 = arith.constant 0 : index
    %c0_9 = arith.constant 0 : index
    %14 = memref.load %arg1[%c0_8, %c0_9] : memref<1x1xf32, #tpu.memory_space<smem>>
    %c0_10 = arith.constant 0 : index
    %c0_11 = arith.constant 0 : index
    %15 = vector.load %arg7[%c0_10, %c0_11] : memref<1x256xf32, #tpu.memory_space<vmem>>, vector<1x256xf32>
    %16 = vector.broadcast %14 : f32 to vector<1x256xf32>
    %17 = arith.mulf %16, %15 : vector<1x256xf32>
    %c0_12 = arith.constant 0 : index
    %c0_13 = arith.constant 0 : index
    %18 = vector.load %arg6[%c0_12, %c0_13] : memref<1x256xf32, #tpu.memory_space<vmem>>, vector<1x256xf32>
    %19 = arith.addf %17, %18 : vector<1x256xf32>
    %20 = vector.broadcast %19 : vector<1x256xf32> to vector<128x256xf32>
    %21 = arith.addf %13, %20 : vector<128x256xf32>
    %22 = arith.mulf %21, %21 : vector<128x256xf32>
    %23 = arith.mulf %21, %22 : vector<128x256xf32>
    %cst_14 = arith.constant 4.471500e-02 : f32
    %24 = vector.broadcast %cst_14 : f32 to vector<128x256xf32>
    %25 = arith.mulf %24, %23 : vector<128x256xf32>
    %26 = arith.addf %21, %25 : vector<128x256xf32>
    %cst_15 = arith.constant 0.797884583 : f32
    %27 = vector.broadcast %cst_15 : f32 to vector<128x256xf32>
    %28 = arith.mulf %27, %26 : vector<128x256xf32>
    %29 = math.tanh %28 : vector<128x256xf32>
    %cst_16 = arith.constant 1.000000e+00 : f32
    %30 = vector.broadcast %cst_16 : f32 to vector<128x256xf32>
    %31 = arith.addf %30, %29 : vector<128x256xf32>
    %cst_17 = arith.constant 5.000000e-01 : f32
    %32 = vector.broadcast %cst_17 : f32 to vector<128x256xf32>
    %33 = arith.mulf %32, %31 : vector<128x256xf32>
    %34 = arith.mulf %21, %33 : vector<128x256xf32>
    %35 = arith.truncf %34 : vector<128x256xf32> to vector<128x256xbf16>
    %c0_18 = arith.constant 0 : index
    %c0_19 = arith.constant 0 : index
    %36 = vector.load %arg8[%c0_18, %c0_19] : memref<256x128xbf16, #tpu.memory_space<vmem>>, vector<256x128xbf16>
    %cst_20 = arith.constant dense<0.000000e+00> : vector<128x128xf32>
    %37 = tpu.matmul %35, %36, %cst_20 {dimension_numbers = #tpu.dot_dimension_numbers<[1], [0], [0], [1], [0, 0, 1, 1], [], []>} : vector<128x256xbf16>, vector<256x128xbf16>, vector<128x128xf32> -> vector<128x128xf32>
    %c0_21 = arith.constant 0 : index
    %c0_22 = arith.constant 0 : index
    %38 = vector.load %arg9[%c0_21, %c0_22] : memref<1x128xf32, #tpu.memory_space<vmem>>, vector<1x128xf32>
    %39 = vector.broadcast %38 : vector<1x128xf32> to vector<128x128xf32>
    %40 = arith.addf %37, %39 : vector<128x128xf32>
    %c0_23 = arith.constant 0 : index
    %c0_24 = arith.constant 0 : index
    %41 = vector.load %arg10[%c0_23, %c0_24] : memref<128x128xf32, #tpu.memory_space<vmem>>, vector<128x128xf32>
    tpu.vector_store %arg10[%c0_23, %c0_24], %40 {strides = array<i32>} : memref<128x128xf32, #tpu.memory_space<vmem>>, vector<128x128xf32>,
    return
  }
  func.func @transform_0(%arg0: i32) -> (i32, i32) {
    %c0_i32 = arith.constant 0 : i32
    %c0_i32_0 = arith.constant 0 : i32
    %c0_i32_1 = arith.constant 0 : i32
    return %c0_i32, %c0_i32_0 : i32, i32
  }
  func.func @transform_1(%arg0: i32) -> (i32, i32) {
    %c0_i32 = arith.constant 0 : i32
    %c0_i32_0 = arith.constant 0 : i32
    return %arg0, %c0_i32 : i32, i32
  }
  func.func @transform_2(%arg0: i32) -> (i32, i32) {
    %c0_i32 = arith.constant 0 : i32
    %c0_i32_0 = arith.constant 0 : i32
    return %arg0, %c0_i32 : i32, i32
  }
  func.func @transform_3(%arg0: i32) -> (i32, i32) {
    %c0_i32 = arith.constant 0 : i32
    %c0_i32_0 = arith.constant 0 : i32
    %c0_i32_1 = arith.constant 0 : i32
    return %c0_i32, %c0_i32_0 : i32, i32
  }
  func.func @transform_4(%arg0: i32) -> (i32, i32) {
    %c0_i32 = arith.constant 0 : i32
    %c0_i32_0 = arith.constant 0 : i32
    %c0_i32_1 = arith.constant 0 : i32
    return %c0_i32, %c0_i32_0 : i32, i32
  }
  func.func @transform_5(%arg0: i32) -> (i32, i32) {
    %c0_i32 = arith.constant 0 : i32
    %c0_i32_0 = arith.constant 0 : i32
    %c0_i32_1 = arith.constant 0 : i32
    return %c0_i32, %c0_i32_0 : i32, i32
  }
  func.func @transform_6(%arg0: i32) -> (i32, i32) {
    %c0_i32 = arith.constant 0 : i32
    %c0_i32_0 = arith.constant 0 : i32
    %c0_i32_1 = arith.constant 0 : i32
    return %c0_i32, %c0_i32_0 : i32, i32
  }
  func.func @transform_7(%arg0: i32) -> (i32, i32) {
    %c0_i32 = arith.constant 0 : i32
    %c0_i32_0 = arith.constant 0 : i32
    %c0_i32_1 = arith.constant 0 : i32
    return %c0_i32, %c0_i32_0 : i32, i32
  }
  func.func @transform_8(%arg0: i32) -> (i32, i32) {
    %c0_i32 = arith.constant 0 : i32
    %c0_i32_0 = arith.constant 0 : i32
    %c0_i32_1 = arith.constant 0 : i32
    return %c0_i32, %c0_i32_0 : i32, i32
  }
  func.func @transform_9(%arg0: i32) -> (i32, i32) {
    %c0_i32 = arith.constant 0 : i32
    %c0_i32_0 = arith.constant 0 : i32
    return %arg0, %c0_i32 : i32, i32
  }
}

</mosaic_0001>

<llo_original>
// kernel: tpu_custom_call.1
$region0: #{tpu_custom_call.1}
  #allocation0 [shape = 'u32[]', space=smem, size = 0x4, offset = 0x4, fixed_abs, tag = 'smem constant byte address 0x4 - core index']
  #allocation1 [shape = 'u32[144,128]{1,0:T(1,128)}', space=vmem, size = 0x12000, scoped, tag = 'internal scratch']
  #allocation2 [shape = 'f32[1,1]{1,0:T(1,128)S(6)}', space=smem, size = 0x200, scoped, tag = 'scoped memory for tpu_custom_call.1']
  %s0 = inlined_call_operand.<no memory space> [shape: f32[1,1], index: 0, kind: input, shape index: {}]
  %s1 = inlined_call_operand.vmem [shape: f32[512,128], index: 1, kind: input, shape index: {}]
  %s2 = inlined_call_operand.vmem [shape: s32[512,1], index: 2, kind: input, shape index: {}]
  %s3 = inlined_call_operand.hbm [shape: bf16[128,256], index: 3, kind: input, shape index: {}]
  %s4 = inlined_call_operand.hbm [shape: bf16[128,256], index: 4, kind: input, shape index: {}]
  %s5 = inlined_call_operand.vmem [shape: f32[1,256], index: 5, kind: input, shape index: {}]
  %s6 = inlined_call_operand.vmem [shape: f32[1,256], index: 6, kind: input, shape index: {}]
  %s7 = inlined_call_operand.hbm [shape: bf16[256,128], index: 7, kind: input, shape index: {}]
  %s8 = inlined_call_operand.vmem [shape: f32[1,128], index: 8, kind: input, shape index: {}]
  %s9 = inlined_call_operand.hbm [shape: f32[512,128], index: 9, kind: output, shape index: {}]
  %s10 = sld [smem:[#allocation0]]
  $region81: #{tpu_custom_call.1} parent=0
    _
  %s12 = ssub.s32 1, %s10
  %s13 = scalar_select 0, %s12, %s10
  %14 = sst [smem:[#allocation2]] %s0
  $region1: #{tpu_custom_call.1} parent=0
    #allocation3 [shape = 'u8[65536]{0}', space=vmem, size = 0x10000, scoped, tag = 'input window, operand 3, single buffered']
    #allocation4 [shape = 's32[2]{0}', space=sflag, size = 0x8, scoped, tag = 'scoped memory for tpu_custom_call.1']
    #allocation5 [shape = 's32[2]{0}', space=sflag, size = 0x8, scoped, tag = 'scoped memory for tpu_custom_call.1']
    #allocation6 [shape = 'u8[65536]{0}', space=vmem, size = 0x10000, scoped, tag = 'input window, operand 4, single buffered']
    #allocation7 [shape = 's32[1]{0}', space=sflag, size = 0x4, scoped, tag = 'scoped memory for tpu_custom_call.1']
    #allocation8 [shape = 'u8[65536]{0}', space=vmem, size = 0x10000, scoped, tag = 'input window, operand 7, single buffered']
    #allocation9 [shape = 'u8[131072]{0}', space=vmem, size = 0x20000, scoped, tag = 'output window, operand 0']
    %15 = vsyncpa [#allocation4], 0
    %16 = vsyncpa [#allocation7], 0
    %17 = vsyncpa [#allocation5], 0
    %s18 = scalar_lea.sflag [#allocation5], 1
    %19 = vsyncpa %s18, 0
    loop: start=0, step=1, limit=6
    $region2: #{tpu_custom_call.1} parent=1 // loop_pre_header
      _
    $region3: #{tpu_custom_call.1} parent=1 // loop_header
      %s21 = sphi 0, %s25
      %p22 = scmp.ge.s32.totalorder %s21, 6
      %s29 = sphi 0, %s29
      %s31 = sphi 0, %s29
      %s32 = sphi 0, %s31
      %s46 = sphi 0, %s32
      %s52 = sphi 0, %s54
      %s55 = sphi 0, %s52
      %s56 = sphi 0, %s55
      %s72 = sphi 0, %s56
      %s78 = sphi 0, %s80
      %s81 = sphi 0, %s78
      %s82 = sphi 0, %s81
      %s98 = sphi 0, %s82
      %s102 = sphi 0, %s102
      %s104 = sphi 0, %s102
      %s105 = sphi 0, %s104
      %s119 = sphi 0, %s105
      %s123 = sphi 0, %s123
      %s125 = sphi 0, %s123
      %s126 = sphi 0, %s125
      %s140 = sphi 0, %s126
      %s144 = sphi 0, %s144
      %s146 = sphi 0, %s144
      %s147 = sphi 0, %s146
      %s161 = sphi 0, %s147
      %s165 = sphi 0, %s165
      %s167 = sphi 0, %s165
      %s168 = sphi 0, %s167
      %s182 = sphi 0, %s168
      %s186 = sphi 0, %s186
      %s188 = sphi 0, %s186
      %s189 = sphi 0, %s188
      %s203 = sphi 0, %s189
      %s207 = sphi 0, %s207
      %s209 = sphi 0, %s207
      %s210 = sphi 0, %s209
      %s224 = sphi 0, %s210
      %s230 = sphi 0, %s232
      %s233 = sphi 0, %s230
      %s234 = sphi 0, %s233
      %s250 = sphi 0, %s234
    $region4: #{tpu_custom_call.1} parent=1 // loop_header_branch
      %24 = sbr.rel (%p22) target = $region8
    $region5: #{tpu_custom_call.1} parent=1 // loop_body
      %s26 = ssub.s32 %s21, 1
      %s27 = ssub.s32 %s21, 2
      %s28 = sadd.s32 %s21, 1
      %s30 = sadd.s32 %s29, 1
      %p33 = scmp.eq.s32.totalorder %s21, 3
      %p34 = scmp.ne.s32.totalorder %s29, %s31
      %p35 = scmp.eq.s32.totalorder %s21, 0
      %p36 = por %p34, %p35
      %p37 = scmp.ne.s32.totalorder %s29, %s31
      %p38 = scmp.eq.s32.totalorder %s26, 3
      %p39 = por %p37, %p38
      %p40 = scmp.ne.s32.totalorder %s31, %s32
      %p41 = scmp.eq.s32.totalorder %s26, 0
      %p42 = por %p40, %p41
      %p43 = scmp.ne.s32.totalorder %s31, %s32
      %p44 = scmp.eq.s32.totalorder %s27, 3
      %p45 = por %p43, %p44
      %p47 = scmp.ne.s32.totalorder %s32, %s46
      %p48 = scmp.eq.s32.totalorder %s27, 0
      %p49 = por %p47, %p48
      %s50 = ssub.s32 %s21, %s28
      %p51 = scmp.eq.s32.totalorder %s50, 0
      %s53 = sadd.s32 %s52, 1
      %s54 = scalar_select %p51, %s52, %s53
      %p57 = pneg %p51
      %p58 = scmp.eq.s32.totalorder %s21, 3
      %p59 = por %p57, %p58
      %p60 = scmp.ne.s32.totalorder %s52, %s55
      %p61 = scmp.eq.s32.totalorder %s21, 0
      %p62 = por %p60, %p61
      %p63 = scmp.ne.s32.totalorder %s52, %s55
      %p64 = scmp.eq.s32.totalorder %s26, 3
      %p65 = por %p63, %p64
      %p66 = scmp.ne.s32.totalorder %s55, %s56
      %p67 = scmp.eq.s32.totalorder %s26, 0
      %p68 = por %p66, %p67
      %p69 = scmp.ne.s32.totalorder %s55, %s56
      %p70 = scmp.eq.s32.totalorder %s27, 3
      %p71 = por %p69, %p70
      %p73 = scmp.ne.s32.totalorder %s56, %s72
      %p74 = scmp.eq.s32.totalorder %s27, 0
      %p75 = por %p73, %p74
      %s76 = ssub.s32 %s21, %s28
      %p77 = scmp.eq.s32.totalorder %s76, 0
      %s79 = sadd.s32 %s78, 1
      %s80 = scalar_select %p77, %s78, %s79
      %p83 = pneg %p77
      %p84 = scmp.eq.s32.totalorder %s21, 3
      %p85 = por %p83, %p84
      %p86 = scmp.ne.s32.totalorder %s78, %s81
      %p87 = scmp.eq.s32.totalorder %s21, 0
      %p88 = por %p86, %p87
      %p89 = scmp.ne.s32.totalorder %s78, %s81
      %p90 = scmp.eq.s32.totalorder %s26, 3
      %p91 = por %p89, %p90
      %p92 = scmp.ne.s32.totalorder %s81, %s82
      %p93 = scmp.eq.s32.totalorder %s26, 0
      %p94 = por %p92, %p93
      %p95 = scmp.ne.s32.totalorder %s81, %s82
      %p96 = scmp.eq.s32.totalorder %s27, 3
      %p97 = por %p95, %p96
      %p99 = scmp.ne.s32.totalorder %s82, %s98
      %p100 = scmp.eq.s32.totalorder %s27, 0
      %p101 = por %p99, %p100
      %s103 = sadd.s32 %s102, 1
      %p106 = scmp.eq.s32.totalorder %s21, 3
      %p107 = scmp.ne.s32.totalorder %s102, %s104
      %p108 = scmp.eq.s32.totalorder %s21, 0
      %p109 = por %p107, %p108
      %p110 = scmp.ne.s32.totalorder %s102, %s104
      %p111 = scmp.eq.s32.totalorder %s26, 3
      %p112 = por %p110, %p111
      %p113 = scmp.ne.s32.totalorder %s104, %s105
      %p114 = scmp.eq.s32.totalorder %s26, 0
      %p115 = por %p113, %p114
      %p116 = scmp.ne.s32.totalorder %s104, %s105
      %p117 = scmp.eq.s32.totalorder %s27, 3
      %p118 = por %p116, %p117
      %p120 = scmp.ne.s32.totalorder %s105, %s119
      %p121 = scmp.eq.s32.totalorder %s27, 0
      %p122 = por %p120, %p121
      %s124 = sadd.s32 %s123, 1
      %p127 = scmp.eq.s32.totalorder %s21, 3
      %p128 = scmp.ne.s32.totalorder %s123, %s125
      %p129 = scmp.eq.s32.totalorder %s21, 0
      %p130 = por %p128, %p129
      %p131 = scmp.ne.s32.totalorder %s123, %s125
      %p132 = scmp.eq.s32.totalorder %s26, 3
      %p133 = por %p131, %p132
      %p134 = scmp.ne.s32.totalorder %s125, %s126
      %p135 = scmp.eq.s32.totalorder %s26, 0
      %p136 = por %p134, %p135
      %p137 = scmp.ne.s32.totalorder %s125, %s126
      %p138 = scmp.eq.s32.totalorder %s27, 3
      %p139 = por %p137, %p138
      %p141 = scmp.ne.s32.totalorder %s126, %s140
      %p142 = scmp.eq.s32.totalorder %s27, 0
      %p143 = por %p141, %p142
      %s145 = sadd.s32 %s144, 1
      %p148 = scmp.eq.s32.totalorder %s21, 3
      %p149 = scmp.ne.s32.totalorder %s144, %s146
      %p150 = scmp.eq.s32.totalorder %s21, 0
      %p151 = por %p149, %p150
      %p152 = scmp.ne.s32.totalorder %s144, %s146
      %p153 = scmp.eq.s32.totalorder %s26, 3
      %p154 = por %p152, %p153
      %p155 = scmp.ne.s32.totalorder %s146, %s147
      %p156 = scmp.eq.s32.totalorder %s26, 0
      %p157 = por %p155, %p156
      %p158 = scmp.ne.s32.totalorder %s146, %s147
      %p159 = scmp.eq.s32.totalorder %s27, 3
      %p160 = por %p158, %p159
      %p162 = scmp.ne.s32.totalorder %s147, %s161
      %p163 = scmp.eq.s32.totalorder %s27, 0
      %p164 = por %p162, %p163
      %s166 = sadd.s32 %s165, 1
      %p169 = scmp.eq.s32.totalorder %s21, 3
      %p170 = scmp.ne.s32.totalorder %s165, %s167
      %p171 = scmp.eq.s32.totalorder %s21, 0
      %p172 = por %p170, %p171
      %p173 = scmp.ne.s32.totalorder %s165, %s167
      %p174 = scmp.eq.s32.totalorder %s26, 3
      %p175 = por %p173, %p174
      %p176 = scmp.ne.s32.totalorder %s167, %s168
      %p177 = scmp.eq.s32.totalorder %s26, 0
      %p178 = por %p176, %p177
      %p179 = scmp.ne.s32.totalorder %s167, %s168
      %p180 = scmp.eq.s32.totalorder %s27, 3
      %p181 = por %p179, %p180
      %p183 = scmp.ne.s32.totalorder %s168, %s182
      %p184 = scmp.eq.s32.totalorder %s27, 0
      %p185 = por %p183, %p184
      %s187 = sadd.s32 %s186, 1
      %p190 = scmp.eq.s32.totalorder %s21, 3
      %p191 = scmp.ne.s32.totalorder %s186, %s188
      %p192 = scmp.eq.s32.totalorder %s21, 0
      %p193 = por %p191, %p192
      %p194 = scmp.ne.s32.totalorder %s186, %s188
      %p195 = scmp.eq.s32.totalorder %s26, 3
      %p196 = por %p194, %p195
      %p197 = scmp.ne.s32.totalorder %s188, %s189
      %p198 = scmp.eq.s32.totalorder %s26, 0
      %p199 = por %p197, %p198
      %p200 = scmp.ne.s32.totalorder %s188, %s189
      %p201 = scmp.eq.s32.totalorder %s27, 3
      %p202 = por %p200, %p201
      %p204 = scmp.ne.s32.totalorder %s189, %s203
      %p205 = scmp.eq.s32.totalorder %s27, 0
      %p206 = por %p204, %p205
      %s208 = sadd.s32 %s207, 1
      %p211 = scmp.eq.s32.totalorder %s21, 3
      %p212 = scmp.ne.s32.totalorder %s207, %s209
      %p213 = scmp.eq.s32.totalorder %s21, 0
      %p214 = por %p212, %p213
      %p215 = scmp.ne.s32.totalorder %s207, %s209
      %p216 = scmp.eq.s32.totalorder %s26, 3
      %p217 = por %p215, %p216
      %p218 = scmp.ne.s32.totalorder %s209, %s210
      %p219 = scmp.eq.s32.totalorder %s26, 0
      %p220 = por %p218, %p219
      %p221 = scmp.ne.s32.totalorder %s209, %s210
      %p222 = scmp.eq.s32.totalorder %s27, 3
      %p223 = por %p221, %p222
      %p225 = scmp.ne.s32.totalorder %s210, %s224
      %p226 = scmp.eq.s32.totalorder %s27, 0
      %p227 = por %p225, %p226
      %s228 = ssub.s32 %s21, %s28
      %p229 = scmp.eq.s32.totalorder %s228, 0
      %s231 = sadd.s32 %s230, 1
      %s232 = scalar_select %p229, %s230, %s231
      %p235 = pneg %p229
      %p236 = scmp.eq.s32.totalorder %s21, 3
      %p237 = por %p235, %p236
      %p238 = scmp.ne.s32.totalorder %s230, %s233
      %p239 = scmp.eq.s32.totalorder %s21, 0
      %p240 = por %p238, %p239
      %p241 = scmp.ne.s32.totalorder %s230, %s233
      %p242 = scmp.eq.s32.totalorder %s26, 3
      %p243 = por %p241, %p242
      %p244 = scmp.ne.s32.totalorder %s233, %s234
      %p245 = scmp.eq.s32.totalorder %s26, 0
      %p246 = por %p244, %p245
      %p247 = scmp.ne.s32.totalorder %s233, %s234
      %p248 = scmp.eq.s32.totalorder %s27, 3
      %p249 = por %p247, %p248
      %p251 = scmp.ne.s32.totalorder %s234, %s250
      %p252 = scmp.eq.s32.totalorder %s27, 0
      %p253 = por %p251, %p252
      %p254 = scmp.le.s32.totalorder 1, %s21
      %p255 = scmp.lt.s32.totalorder %s21, 5
      %p256 = pnand %p254, %p255
      %p257 = pneg %p256
      // Predicated region
      $region9: #{tpu_custom_call.1} parent=5 // pred_check
        _
      $region10: #{tpu_custom_call.1} parent=5 // pred_check_branch
        %259 = sbr.rel (%p256) target = $region12
      $region11: #{tpu_custom_call.1} parent=5 // pred_region
        %s260 = ssub.s32 %s21, 1
        // Predicated region
        $region13: #{tpu_custom_call.1} parent=11 // pred_check
          %p261 = pneg %p42
        $region14: #{tpu_custom_call.1} parent=11 // pred_check_branch
          %263 = sbr.rel (%p261) target = $region16
        $region15: #{tpu_custom_call.1} parent=11 // pred_region
          _
        $region16: #{tpu_custom_call.1} parent=11 // pred_fallthru
          _
        // Predicated region
        $region17: #{tpu_custom_call.1} parent=11 // pred_check
          %p264 = pneg %p115
        $region18: #{tpu_custom_call.1} parent=11 // pred_check_branch
          %266 = sbr.rel (%p264) target = $region20
        $region19: #{tpu_custom_call.1} parent=11 // pred_region
          %s268 = ssub.s32 2048, 2048
          %269 = vsyncadd [#allocation4], %s268
          %s270 = sshll.u32 [#allocation3], 4
          %s271 = int_to_ptr.vmem [resolvable:$true] %s270
          %276 = dma.hbm_to_vmem [thread:$0]  %s3, 2048, %s271, [#allocation4], 128, 128, 8
        $region20: #{tpu_custom_call.1} parent=11 // pred_fallthru
          _
        // Predicated region
        $region21: #{tpu_custom_call.1} parent=11 // pred_check
          %p277 = pneg %p136
        $region22: #{tpu_custom_call.1} parent=11 // pred_check_branch
          %279 = sbr.rel (%p277) target = $region24
        $region23: #{tpu_custom_call.1} parent=11 // pred_region
          %s281 = ssub.s32 2048, 2048
          %282 = vsyncadd [#allocation7], %s281
          %s283 = sshll.u32 [#allocation6], 4
          %s284 = int_to_ptr.vmem [resolvable:$true] %s283
          %289 = dma.hbm_to_vmem [thread:$0]  %s4, 2048, %s284, [#allocation7], 128, 128, 8
        $region24: #{tpu_custom_call.1} parent=11 // pred_fallthru
          _
        // Predicated region
        $region25: #{tpu_custom_call.1} parent=11 // pred_check
          %p290 = pneg %p157
        $region26: #{tpu_custom_call.1} parent=11 // pred_check_branch
          %292 = sbr.rel (%p290) target = $region28
        $region27: #{tpu_custom_call.1} parent=11 // pred_region
          _
        $region28: #{tpu_custom_call.1} parent=11 // pred_fallthru
          _
        // Predicated region
        $region29: #{tpu_custom_call.1} parent=11 // pred_check
          %p293 = pneg %p178
        $region30: #{tpu_custom_call.1} parent=11 // pred_check_branch
          %295 = sbr.rel (%p293) target = $region32
        $region31: #{tpu_custom_call.1} parent=11 // pred_region
          _
        $region32: #{tpu_custom_call.1} parent=11 // pred_fallthru
          _
        // Predicated region
        $region33: #{tpu_custom_call.1} parent=11 // pred_check
          %p296 = pneg %p199
        $region34: #{tpu_custom_call.1} parent=11 // pred_check_branch
          %298 = sbr.rel (%p296) target = $region36
        $region35: #{tpu_custom_call.1} parent=11 // pred_region
          %s300 = ssub.s32 2048, 2048
          %301 = vsyncadd [#allocation7], %s300
          %s302 = sshll.u32 [#allocation8], 4
          %s303 = int_to_ptr.vmem [resolvable:$true] %s302
          %308 = dma.hbm_to_vmem [thread:$0]  %s7, 2048, %s303, [#allocation7], 64, 64, 4
        $region36: #{tpu_custom_call.1} parent=11 // pred_fallthru
          _
        // Predicated region
        $region37: #{tpu_custom_call.1} parent=11 // pred_check
          %p309 = pneg %p220
        $region38: #{tpu_custom_call.1} parent=11 // pred_check_branch
          %311 = sbr.rel (%p309) target = $region40
        $region39: #{tpu_custom_call.1} parent=11 // pred_region
          _
        $region40: #{tpu_custom_call.1} parent=11 // pred_fallthru
          _
      $region12: #{tpu_custom_call.1} parent=5 // pred_fallthru
        _
      %p312 = scmp.lt.s32.totalorder %s21, 4
      // Predicated region
      $region41: #{tpu_custom_call.1} parent=5 // pred_check
        %p313 = pneg %p312
      $region42: #{tpu_custom_call.1} parent=5 // pred_check_branch
        %315 = sbr.rel (%p313) target = $region44
      $region43: #{tpu_custom_call.1} parent=5 // pred_region
        // Predicated region
        $region45: #{tpu_custom_call.1} parent=43 // pred_check
          %p316 = pneg %p62
        $region46: #{tpu_custom_call.1} parent=43 // pred_check_branch
          %318 = sbr.rel (%p316) target = $region48
        $region47: #{tpu_custom_call.1} parent=43 // pred_region
          %s319 = smul.u32 16, %s21
          %p320 = scmp.lt.s32.totalorder %s319, 63
          %s321 = scalar_select %p320, %s319, 63
          %s322 = smul.addr %s321, 8
          %s323 = scalar_lea.vmem %s1, %s322
          %s324 = smul.u32 16, %s21
        $region48: #{tpu_custom_call.1} parent=43 // pred_fallthru
          _
        // Predicated region
        $region49: #{tpu_custom_call.1} parent=43 // pred_check
          %p325 = pneg %p88
        $region50: #{tpu_custom_call.1} parent=43 // pred_check_branch
          %327 = sbr.rel (%p325) target = $region52
        $region51: #{tpu_custom_call.1} parent=43 // pred_region
          %s328 = smul.u32 16, %s21
          %p329 = scmp.lt.s32.totalorder %s328, 63
          %s330 = scalar_select %p329, %s328, 63
          %s331 = smul.addr %s330, 8
          %s332 = scalar_lea.vmem %s2, %s331
          %s333 = smul.u32 16, %s21
        $region52: #{tpu_custom_call.1} parent=43 // pred_fallthru
          _
      $region44: #{tpu_custom_call.1} parent=5 // pred_fallthru
        _
      %p334 = scmp.le.s32.totalorder 1, %s21
      %p335 = scmp.lt.s32.totalorder %s21, 5
      %p336 = pnand %p334, %p335
      %p337 = pneg %p336
      // Predicated region
      $region53: #{tpu_custom_call.1} parent=5 // pred_check
        _
      $region54: #{tpu_custom_call.1} parent=5 // pred_check_branch
        %339 = sbr.rel (%p336) target = $region56
      $region55: #{tpu_custom_call.1} parent=5 // pred_region
        %s340 = ssub.s32 %s21, 1
        // Predicated region
        $region57: #{tpu_custom_call.1} parent=55 // pred_check
          %p341 = pneg %p115
        $region58: #{tpu_custom_call.1} parent=55 // pred_check_branch
          %343 = sbr.rel (%p341) target = $region60
        $region59: #{tpu_custom_call.1} parent=55 // pred_region
          %344 = dma.done [#allocation4], 2048
        $region60: #{tpu_custom_call.1} parent=55 // pred_fallthru
          _
        // Predicated region
        $region61: #{tpu_custom_call.1} parent=55 // pred_check
          %p345 = pneg %p136
        $region62: #{tpu_custom_call.1} parent=55 // pred_check_branch
          %347 = sbr.rel (%p345) target = $region64
        $region63: #{tpu_custom_call.1} parent=55 // pred_region
          %348 = dma.done [#allocation7], 2048
        $region64: #{tpu_custom_call.1} parent=55 // pred_fallthru
          _
        // Predicated region
        $region65: #{tpu_custom_call.1} parent=55 // pred_check
          %p349 = pneg %p199
        $region66: #{tpu_custom_call.1} parent=55 // pred_check_branch
          %351 = sbr.rel (%p349) target = $region68
        $region67: #{tpu_custom_call.1} parent=55 // pred_region
          %352 = dma.done [#allocation7], 2048
        $region68: #{tpu_custom_call.1} parent=55 // pred_fallthru
          _
        %p353 = pneg %p42
        %p354 = pneg %p39
        %s355 = smul.u32 16, %s26
        %p356 = scmp.lt.s32.totalorder %s355, 63
        %s357 = scalar_select %p356, %s355, 63
        %s358 = smul.addr %s357, 8
        %s359 = scalar_lea.vmem %s1, %s358
        %p360 = pneg %p68
        %p361 = pneg %p65
        %s362 = smul.u32 16, %s26
        %p363 = scmp.lt.s32.totalorder %s362, 63
        %s364 = scalar_select %p363, %s362, 63
        %s365 = smul.addr %s364, 8
        %s366 = scalar_lea.vmem %s2, %s365
        %p367 = pneg %p94
        %p368 = pneg %p91
        %p369 = pneg %p115
        %p370 = pneg %p112
        %p371 = pneg %p136
        %p372 = pneg %p133
        %p373 = pneg %p157
        %p374 = pneg %p154
        %p375 = pneg %p178
        %p376 = pneg %p175
        %p377 = pneg %p199
        %p378 = pneg %p196
        %p379 = pneg %p220
        %p380 = pneg %p217
        %p381 = pneg %p246
        %p382 = pneg %p243
        %s383 = sand.u32 %s233, 1
        %s384 = scalar_lea.sflag [#allocation5], %s383
        %s385 = sand.u32 %s233, 1
        %s386 = smul.addr %s385, 128
        %s387 = scalar_lea.vmem [#allocation9], %s386
        %s388 = smul.u32 16, %s26
        %p389 = scmp.lt.s32.totalorder %s388, 63
        %s390 = scalar_select %p389, %s388, 63
        %s391 = smul.addr %s390, 8
        %s392 = scalar_lea.vmem %s1, %s391
        %s393 = smul.u32 16, %s26
        %s394 = smul.u32 16, %s26
        %p395 = scmp.lt.s32.totalorder %s394, 63
        %s396 = scalar_select %p395, %s394, 63
        %s397 = smul.addr %s396, 8
        %s398 = scalar_lea.vmem %s2, %s397
        %s399 = smul.u32 16, %s26
        %s400 = smul.u32 16, %s26
        %v402 = vlaneseq
        %v403 = vand.u32 %v402, 127
        %v404 = vld [vmem:[%s398] sm:$0xff]
        %v405 = vld [vmem:[%s398 + $0x8] sm:$0xff]
        %v406 = vld [vmem:[%s398 + $0x10] sm:$0xff]
        %v407 = vld [vmem:[%s398 + $0x18] sm:$0xff]
        %v408 = vld [vmem:[%s398 + $0x20] sm:$0xff]
        %v409 = vld [vmem:[%s398 + $0x28] sm:$0xff]
        %v410 = vld [vmem:[%s398 + $0x30] sm:$0xff]
        %v411 = vld [vmem:[%s398 + $0x38] sm:$0xff]
        %v412 = vld [vmem:[%s398 + $0x40] sm:$0xff]
        %v413 = vld [vmem:[%s398 + $0x48] sm:$0xff]
        %v414 = vld [vmem:[%s398 + $0x50] sm:$0xff]
        %v415 = vld [vmem:[%s398 + $0x58] sm:$0xff]
        %v416 = vld [vmem:[%s398 + $0x60] sm:$0xff]
        %v417 = vld [vmem:[%s398 + $0x68] sm:$0xff]
        %v418 = vld [vmem:[%s398 + $0x70] sm:$0xff]
        %v419 = vld [vmem:[%s398 + $0x78] sm:$0xff]
        %420 = vset.pattern.permute.xlu0 0
        %421 = vperm.xlu0 %420, %v404
        %v422 = vpop.permute.xlu0 %421
        %423 = vset.pattern.permute.xlu0 0
        %424 = vperm.xlu0 %423, %v405
        %v425 = vpop.permute.xlu0 %424
        %426 = vset.pattern.permute.xlu0 0
        %427 = vperm.xlu0 %426, %v406
        %v428 = vpop.permute.xlu0 %427
        %429 = vset.pattern.permute.xlu0 0
        %430 = vperm.xlu0 %429, %v407
        %v431 = vpop.permute.xlu0 %430
        %432 = vset.pattern.permute.xlu0 0
        %433 = vperm.xlu0 %432, %v408
        %v434 = vpop.permute.xlu0 %433
        %435 = vset.pattern.permute.xlu0 0
        %436 = vperm.xlu0 %435, %v409
        %v437 = vpop.permute.xlu0 %436
        %438 = vset.pattern.permute.xlu0 0
        %439 = vperm.xlu0 %438, %v410
        %v440 = vpop.permute.xlu0 %439
        %441 = vset.pattern.permute.xlu0 0
        %442 = vperm.xlu0 %441, %v411
        %v443 = vpop.permute.xlu0 %442
        %444 = vset.pattern.permute.xlu0 0
        %445 = vperm.xlu0 %444, %v412
        %v446 = vpop.permute.xlu0 %445
        %447 = vset.pattern.permute.xlu0 0
        %448 = vperm.xlu0 %447, %v413
        %v449 = vpop.permute.xlu0 %448
        %450 = vset.pattern.permute.xlu0 0
        %451 = vperm.xlu0 %450, %v414
        %v452 = vpop.permute.xlu0 %451
        %453 = vset.pattern.permute.xlu0 0
        %454 = vperm.xlu0 %453, %v415
        %v455 = vpop.permute.xlu0 %454
        %456 = vset.pattern.permute.xlu0 0
        %457 = vperm.xlu0 %456, %v416
        %v458 = vpop.permute.xlu0 %457
        %459 = vset.pattern.permute.xlu0 0
        %460 = vperm.xlu0 %459, %v417
        %v461 = vpop.permute.xlu0 %460
        %462 = vset.pattern.permute.xlu0 0
        %463 = vperm.xlu0 %462, %v418
        %v464 = vpop.permute.xlu0 %463
        %465 = vset.pattern.permute.xlu0 0
        %466 = vperm.xlu0 %465, %v419
        %v467 = vpop.permute.xlu0 %466
        %vm468 = vcmp.eq.s32.totalorder %v422, %v403
        %vm469 = vcmp.eq.s32.totalorder %v425, %v403
        %vm470 = vcmp.eq.s32.totalorder %v428, %v403
        %vm471 = vcmp.eq.s32.totalorder %v431, %v403
        %vm472 = vcmp.eq.s32.totalorder %v434, %v403
        %vm473 = vcmp.eq.s32.totalorder %v437, %v403
        %vm474 = vcmp.eq.s32.totalorder %v440, %v403
        %vm475 = vcmp.eq.s32.totalorder %v443, %v403
        %vm476 = vcmp.eq.s32.totalorder %v446, %v403
        %vm477 = vcmp.eq.s32.totalorder %v449, %v403
        %vm478 = vcmp.eq.s32.totalorder %v452, %v403
        %vm479 = vcmp.eq.s32.totalorder %v455, %v403
        %vm480 = vcmp.eq.s32.totalorder %v458, %v403
        %vm481 = vcmp.eq.s32.totalorder %v461, %v403
        %vm482 = vcmp.eq.s32.totalorder %v464, %v403
        %vm483 = vcmp.eq.s32.totalorder %v467, %v403
        %v484 = vsel %vm468, 1, 0
        %v485 = vsel %vm469, 1, 0
        %v486 = vsel %vm470, 1, 0
        %v487 = vsel %vm471, 1, 0
        %v488 = vsel %vm472, 1, 0
        %v489 = vsel %vm473, 1, 0
        %v490 = vsel %vm474, 1, 0
        %v491 = vsel %vm475, 1, 0
        %v492 = vsel %vm476, 1, 0
        %v493 = vsel %vm477, 1, 0
        %v494 = vsel %vm478, 1, 0
        %v495 = vsel %vm479, 1, 0
        %v496 = vsel %vm480, 1, 0
        %v497 = vsel %vm481, 1, 0
        %v498 = vsel %vm482, 1, 0
        %v499 = vsel %vm483, 1, 0
        %v500 = vcvt.s32.f32 %v484
        %v501 = vcvt.s32.f32 %v485
        %v502 = vcvt.s32.f32 %v486
        %v503 = vcvt.s32.f32 %v487
        %v504 = vcvt.s32.f32 %v488
        %v505 = vcvt.s32.f32 %v489
        %v506 = vcvt.s32.f32 %v490
        %v507 = vcvt.s32.f32 %v491
        %v508 = vcvt.s32.f32 %v492
        %v509 = vcvt.s32.f32 %v493
        %v510 = vcvt.s32.f32 %v494
        %v511 = vcvt.s32.f32 %v495
        %v512 = vcvt.s32.f32 %v496
        %v513 = vcvt.s32.f32 %v497
        %v514 = vcvt.s32.f32 %v498
        %v515 = vcvt.s32.f32 %v499
        %v516 = vpack.c.bf16 %v501, %v500
        %v517 = vpack.c.bf16 %v503, %v502
        %v518 = vpack.c.bf16 %v505, %v504
        %v519 = vpack.c.bf16 %v507, %v506
        %v520 = vpack.c.bf16 %v509, %v508
        %v521 = vpack.c.bf16 %v511, %v510
        %v522 = vpack.c.bf16 %v513, %v512
        %v523 = vpack.c.bf16 %v515, %v514
        %v524 = vld [vmem:[#allocation3] sm:$0xff]
        %v525 = vld [vmem:[#allocation3 + $0x8] sm:$0xff]
        %v526 = vld [vmem:[#allocation3 + $0x10] sm:$0xff]
        %v527 = vld [vmem:[#allocation3 + $0x18] sm:$0xff]
        %v528 = vld [vmem:[#allocation3 + $0x20] sm:$0xff]
        %v529 = vld [vmem:[#allocation3 + $0x28] sm:$0xff]
        %v530 = vld [vmem:[#allocation3 + $0x30] sm:$0xff]
        %v531 = vld [vmem:[#allocation3 + $0x38] sm:$0xff]
        %v532 = vld [vmem:[#allocation3 + $0x40] sm:$0xff]
        %v533 = vld [vmem:[#allocation3 + $0x48] sm:$0xff]
        %v534 = vld [vmem:[#allocation3 + $0x50] sm:$0xff]
        %v535 = vld [vmem:[#allocation3 + $0x58] sm:$0xff]
        %v536 = vld [vmem:[#allocation3 + $0x60] sm:$0xff]
        %v537 = vld [vmem:[#allocation3 + $0x68] sm:$0xff]
        %v538 = vld [vmem:[#allocation3 + $0x70] sm:$0xff]
        %v539 = vld [vmem:[#allocation3 + $0x78] sm:$0xff]
        %v556 = vunpack.c.l.b16 %v524
        %v557 = vunpack.c.h.b16 %v524
        %v558 = vunpack.c.l.b16 %v525
        %v559 = vunpack.c.h.b16 %v525
        %v560 = vunpack.c.l.b16 %v526
        %v561 = vunpack.c.h.b16 %v526
        %v562 = vunpack.c.l.b16 %v527
        %v563 = vunpack.c.h.b16 %v527
        %v564 = vunpack.c.l.b16 %v528
        %v565 = vunpack.c.h.b16 %v528
        %v566 = vunpack.c.l.b16 %v529
        %v567 = vunpack.c.h.b16 %v529
        %v568 = vunpack.c.l.b16 %v530
        %v569 = vunpack.c.h.b16 %v530
        %v570 = vunpack.c.l.b16 %v531
        %v571 = vunpack.c.h.b16 %v531
        %v572 = vunpack.c.l.b16 %v532
        %v573 = vunpack.c.h.b16 %v532
        %v574 = vunpack.c.l.b16 %v533
        %v575 = vunpack.c.h.b16 %v533
        %v576 = vunpack.c.l.b16 %v534
        %v577 = vunpack.c.h.b16 %v534
        %v578 = vunpack.c.l.b16 %v535
        %v579 = vunpack.c.h.b16 %v535
        %v580 = vunpack.c.l.b16 %v536
        %v581 = vunpack.c.h.b16 %v536
        %v582 = vunpack.c.l.b16 %v537
        %v583 = vunpack.c.h.b16 %v537
        %v584 = vunpack.c.l.b16 %v538
        %v585 = vunpack.c.h.b16 %v538
        %v586 = vunpack.c.l.b16 %v539
        %v587 = vunpack.c.h.b16 %v539
        %v588 = vpack.c.b16 %v558, %v556
        %v589 = vpack.c.b16 %v559, %v557
        %v590 = vpack.c.b16 %v562, %v560
        %v591 = vpack.c.b16 %v563, %v561
        %v592 = vpack.c.b16 %v566, %v564
        %v593 = vpack.c.b16 %v567, %v565
        %v594 = vpack.c.b16 %v570, %v568
        %v595 = vpack.c.b16 %v571, %v569
        %v596 = vpack.c.b16 %v574, %v572
        %v597 = vpack.c.b16 %v575, %v573
        %v598 = vpack.c.b16 %v578, %v576
        %v599 = vpack.c.b16 %v579, %v577
        %v600 = vpack.c.b16 %v582, %v580
        %v601 = vpack.c.b16 %v583, %v581
        %v602 = vpack.c.b16 %v586, %v584
        %v603 = vpack.c.b16 %v587, %v585
        %620 = vmatprep.subr.bf16.mxu0 %v589
        %621 = vmatpush1.bf16.msra.mxu0 %v588
        %622 = vmatprep.subr.bf16.mxu0 %v591
        %623 = vmatpush1.bf16.msra.mxu0 %v590
        %624 = vmatprep.subr.bf16.mxu0 %v593
        %625 = vmatpush1.bf16.msra.mxu0 %v592
        %626 = vmatprep.subr.bf16.mxu0 %v595
        %627 = vmatpush1.bf16.msra.mxu0 %v594
        %628 = vmatprep.subr.bf16.mxu0 %v597
        %629 = vmatpush1.bf16.msra.mxu0 %v596
        %630 = vmatprep.subr.bf16.mxu0 %v599
        %631 = vmatpush1.bf16.msra.mxu0 %v598
        %632 = vmatprep.subr.bf16.mxu0 %v601
        %633 = vmatpush1.bf16.msra.mxu0 %v600
        %634 = vmatprep.subr.bf16.mxu0 %v603
        %635 = vmatpush1.bf16.msra.mxu0 %v602
        %636 = vmatprep.subr.bf16.mxu0 0
        %637 = vmatpush1.bf16.msra.mxu0 0
        %638 = vmatprep.subr.bf16.mxu0 0
        %639 = vmatpush1.bf16.msra.mxu0 0
        %640 = vmatprep.subr.bf16.mxu0 0
        %641 = vmatpush1.bf16.msra.mxu0 0
        %642 = vmatprep.subr.bf16.mxu0 0
        %643 = vmatpush1.bf16.msra.mxu0 0
        %644 = vmatprep.subr.bf16.mxu0 0
        %645 = vmatpush1.bf16.msra.mxu0 0
        %646 = vmatprep.subr.bf16.mxu0 0
        %647 = vmatpush1.bf16.msra.mxu0 0
        %648 = vmatprep.subr.bf16.mxu0 0
        %649 = vmatpush1.bf16.msra.mxu0 0
        %650 = vmatprep.subr.bf16.mxu0 0
        %651 = vmatpush1.bf16.msra.mxu0 0
        %652 = vmatprep.mubr.bf16.mxu0 0
        %653 = vmatmul.mubr.bf16.gmra.mrb[0].mxu0 %v516
        %v654 = vpop.f32.mrb[0].mxu0
        %v655 = vadd.f32 0.0, %v654
        %v656 = vpop.f32.mrb[0].mxu0
        %v657 = vadd.f32 0.0, %v656
        %v658 = vpop.f32.mrb[0].mxu0
        %v659 = vadd.f32 0.0, %v658
        %v660 = vpop.f32.mrb[0].mxu0
        %v661 = vadd.f32 0.0, %v660
        %662 = vmatprep.mubr.bf16.mxu0 0
        %663 = vmatmul.mubr.bf16.gmra.mrb[0].mxu0 %v517
        %v664 = vpop.f32.mrb[0].mxu0
        %v665 = vadd.f32 0.0, %v664
        %v666 = vpop.f32.mrb[0].mxu0
        %v667 = vadd.f32 0.0, %v666
        %v668 = vpop.f32.mrb[0].mxu0
        %v669 = vadd.f32 0.0, %v668
        %v670 = vpop.f32.mrb[0].mxu0
        %v671 = vadd.f32 0.0, %v670
        %672 = vmatprep.mubr.bf16.mxu0 0
        %673 = vmatmul.mubr.bf16.gmra.mrb[0].mxu0 %v518
        %v674 = vpop.f32.mrb[0].mxu0
        %v675 = vadd.f32 0.0, %v674
        %v676 = vpop.f32.mrb[0].mxu0
        %v677 = vadd.f32 0.0, %v676
        %v678 = vpop.f32.mrb[0].mxu0
        %v679 = vadd.f32 0.0, %v678
        %v680 = vpop.f32.mrb[0].mxu0
        %v681 = vadd.f32 0.0, %v680
        %682 = vmatprep.mubr.bf16.mxu0 0
        %683 = vmatmul.mubr.bf16.gmra.mrb[0].mxu0 %v519
        %v684 = vpop.f32.mrb[0].mxu0
        %v685 = vadd.f32 0.0, %v684
        %v686 = vpop.f32.mrb[0].mxu0
        %v687 = vadd.f32 0.0, %v686
        %v688 = vpop.f32.mrb[0].mxu0
        %v689 = vadd.f32 0.0, %v688
        %v690 = vpop.f32.mrb[0].mxu0
        %v691 = vadd.f32 0.0, %v690
        %692 = vmatprep.mubr.bf16.mxu0 0
        %693 = vmatmul.mubr.bf16.gmra.mrb[0].mxu0 %v520
        %v694 = vpop.f32.mrb[0].mxu0
        %v695 = vadd.f32 0.0, %v694
        %v696 = vpop.f32.mrb[0].mxu0
        %v697 = vadd.f32 0.0, %v696
        %v698 = vpop.f32.mrb[0].mxu0
        %v699 = vadd.f32 0.0, %v698
        %v700 = vpop.f32.mrb[0].mxu0
        %v701 = vadd.f32 0.0, %v700
        %702 = vmatprep.mubr.bf16.mxu0 0
        %703 = vmatmul.mubr.bf16.gmra.mrb[0].mxu0 %v521
        %v704 = vpop.f32.mrb[0].mxu0
        %v705 = vadd.f32 0.0, %v704
        %v706 = vpop.f32.mrb[0].mxu0
        %v707 = vadd.f32 0.0, %v706
        %v708 = vpop.f32.mrb[0].mxu0
        %v709 = vadd.f32 0.0, %v708
        %v710 = vpop.f32.mrb[0].mxu0
        %v711 = vadd.f32 0.0, %v710
        %712 = vmatprep.mubr.bf16.mxu0 0
        %713 = vmatmul.mubr.bf16.gmra.mrb[0].mxu0 %v522
        %v714 = vpop.f32.mrb[0].mxu0
        %v715 = vadd.f32 0.0, %v714
        %v716 = vpop.f32.mrb[0].mxu0
        %v717 = vadd.f32 0.0, %v716
        %v718 = vpop.f32.mrb[0].mxu0
        %v719 = vadd.f32 0.0, %v718
        %v720 = vpop.f32.mrb[0].mxu0
        %v721 = vadd.f32 0.0, %v720
        %722 = vmatprep.mubr.bf16.mxu0 0
        %723 = vmatmul.mubr.bf16.gmra.mrb[0].mxu0 %v523
        %v724 = vpop.f32.mrb[0].mxu0
        %v725 = vadd.f32 0.0, %v724
        %v726 = vpop.f32.mrb[0].mxu0
        %v727 = vadd.f32 0.0, %v726
        %v728 = vpop.f32.mrb[0].mxu0
        %v729 = vadd.f32 0.0, %v728
        %v730 = vpop.f32.mrb[0].mxu0
        %v731 = vadd.f32 0.0, %v730
        %732 = vdwg.mxu0
        %v733 = vld [vmem:[%s392] sm:$0xff]
        %v734 = vld [vmem:[%s392 + $0x8] sm:$0xff]
        %v735 = vld [vmem:[%s392 + $0x10] sm:$0xff]
        %v736 = vld [vmem:[%s392 + $0x18] sm:$0xff]
        %v737 = vld [vmem:[%s392 + $0x20] sm:$0xff]
        %v738 = vld [vmem:[%s392 + $0x28] sm:$0xff]
        %v739 = vld [vmem:[%s392 + $0x30] sm:$0xff]
        %v740 = vld [vmem:[%s392 + $0x38] sm:$0xff]
        %v741 = vld [vmem:[%s392 + $0x40] sm:$0xff]
        %v742 = vld [vmem:[%s392 + $0x48] sm:$0xff]
        %v743 = vld [vmem:[%s392 + $0x50] sm:$0xff]
        %v744 = vld [vmem:[%s392 + $0x58] sm:$0xff]
        %v745 = vld [vmem:[%s392 + $0x60] sm:$0xff]
        %v746 = vld [vmem:[%s392 + $0x68] sm:$0xff]
        %v747 = vld [vmem:[%s392 + $0x70] sm:$0xff]
        %v748 = vld [vmem:[%s392 + $0x78] sm:$0xff]
        %v749 = vpack.c.bf16 %v734, %v733
        %v750 = vpack.c.bf16 %v736, %v735
        %v751 = vpack.c.bf16 %v738, %v737
        %v752 = vpack.c.bf16 %v740, %v739
        %v753 = vpack.c.bf16 %v742, %v741
        %v754 = vpack.c.bf16 %v744, %v743
        %v755 = vpack.c.bf16 %v746, %v745
        %v756 = vpack.c.bf16 %v748, %v747
        %v757 = vld [vmem:[#allocation6] sm:$0xff]
        %v758 = vld [vmem:[#allocation6 + $0x8] sm:$0xff]
        %v759 = vld [vmem:[#allocation6 + $0x10] sm:$0xff]
        %v760 = vld [vmem:[#allocation6 + $0x18] sm:$0xff]
        %v761 = vld [vmem:[#allocation6 + $0x20] sm:$0xff]
        %v762 = vld [vmem:[#allocation6 + $0x28] sm:$0xff]
        %v763 = vld [vmem:[#allocation6 + $0x30] sm:$0xff]
        %v764 = vld [vmem:[#allocation6 + $0x38] sm:$0xff]
        %v765 = vld [vmem:[#allocation6 + $0x40] sm:$0xff]
        %v766 = vld [vmem:[#allocation6 + $0x48] sm:$0xff]
        %v767 = vld [vmem:[#allocation6 + $0x50] sm:$0xff]
        %v768 = vld [vmem:[#allocation6 + $0x58] sm:$0xff]
        %v769 = vld [vmem:[#allocation6 + $0x60] sm:$0xff]
        %v770 = vld [vmem:[#allocation6 + $0x68] sm:$0xff]
        %v771 = vld [vmem:[#allocation6 + $0x70] sm:$0xff]
        %v772 = vld [vmem:[#allocation6 + $0x78] sm:$0xff]
        %v789 = vunpack.c.l.b16 %v757
        %v790 = vunpack.c.h.b16 %v757
        %v791 = vunpack.c.l.b16 %v758
        %v792 = vunpack.c.h.b16 %v758
        %v793 = vunpack.c.l.b16 %v759
        %v794 = vunpack.c.h.b16 %v759
        %v795 = vunpack.c.l.b16 %v760
        %v796 = vunpack.c.h.b16 %v760
        %v797 = vunpack.c.l.b16 %v761
        %v798 = vunpack.c.h.b16 %v761
        %v799 = vunpack.c.l.b16 %v762
        %v800 = vunpack.c.h.b16 %v762
        %v801 = vunpack.c.l.b16 %v763
        %v802 = vunpack.c.h.b16 %v763
        %v803 = vunpack.c.l.b16 %v764
        %v804 = vunpack.c.h.b16 %v764
        %v805 = vunpack.c.l.b16 %v765
        %v806 = vunpack.c.h.b16 %v765
        %v807 = vunpack.c.l.b16 %v766
        %v808 = vunpack.c.h.b16 %v766
        %v809 = vunpack.c.l.b16 %v767
        %v810 = vunpack.c.h.b16 %v767
        %v811 = vunpack.c.l.b16 %v768
        %v812 = vunpack.c.h.b16 %v768
        %v813 = vunpack.c.l.b16 %v769
        %v814 = vunpack.c.h.b16 %v769
        %v815 = vunpack.c.l.b16 %v770
        %v816 = vunpack.c.h.b16 %v770
        %v817 = vunpack.c.l.b16 %v771
        %v818 = vunpack.c.h.b16 %v771
        %v819 = vunpack.c.l.b16 %v772
        %v820 = vunpack.c.h.b16 %v772
        %v821 = vpack.c.b16 %v791, %v789
        %v822 = vpack.c.b16 %v792, %v790
        %v823 = vpack.c.b16 %v795, %v793
        %v824 = vpack.c.b16 %v796, %v794
        %v825 = vpack.c.b16 %v799, %v797
        %v826 = vpack.c.b16 %v800, %v798
        %v827 = vpack.c.b16 %v803, %v801
        %v828 = vpack.c.b16 %v804, %v802
        %v829 = vpack.c.b16 %v807, %v805
        %v830 = vpack.c.b16 %v808, %v806
        %v831 = vpack.c.b16 %v811, %v809
        %v832 = vpack.c.b16 %v812, %v810
        %v833 = vpack.c.b16 %v815, %v813
        %v834 = vpack.c.b16 %v816, %v814
        %v835 = vpack.c.b16 %v819, %v817
        %v836 = vpack.c.b16 %v820, %v818
        %853 = vmatprep.subr.bf16.mxu0 %v822
        %854 = vmatpush1.bf16.msra.mxu0 %v821
        %855 = vmatprep.subr.bf16.mxu0 %v824
        %856 = vmatpush1.bf16.msra.mxu0 %v823
        %857 = vmatprep.subr.bf16.mxu0 %v826
        %858 = vmatpush1.bf16.msra.mxu0 %v825
        %859 = vmatprep.subr.bf16.mxu0 %v828
        %860 = vmatpush1.bf16.msra.mxu0 %v827
        %861 = vmatprep.subr.bf16.mxu0 %v830
        %862 = vmatpush1.bf16.msra.mxu0 %v829
        %863 = vmatprep.subr.bf16.mxu0 %v832
        %864 = vmatpush1.bf16.msra.mxu0 %v831
        %865 = vmatprep.subr.bf16.mxu0 %v834
        %866 = vmatpush1.bf16.msra.mxu0 %v833
        %867 = vmatprep.subr.bf16.mxu0 %v836
        %868 = vmatpush1.bf16.msra.mxu0 %v835
        %869 = vmatprep.subr.bf16.mxu0 0
        %870 = vmatpush1.bf16.msra.mxu0 0
        %871 = vmatprep.subr.bf16.mxu0 0
        %872 = vmatpush1.bf16.msra.mxu0 0
        %873 = vmatprep.subr.bf16.mxu0 0
        %874 = vmatpush1.bf16.msra.mxu0 0
        %875 = vmatprep.subr.bf16.mxu0 0
        %876 = vmatpush1.bf16.msra.mxu0 0
        %877 = vmatprep.subr.bf16.mxu0 0
        %878 = vmatpush1.bf16.msra.mxu0 0
        %879 = vmatprep.subr.bf16.mxu0 0
        %880 = vmatpush1.bf16.msra.mxu0 0
        %881 = vmatprep.subr.bf16.mxu0 0
        %882 = vmatpush1.bf16.msra.mxu0 0
        %883 = vmatprep.subr.bf16.mxu0 0
        %884 = vmatpush1.bf16.msra.mxu0 0
        %885 = vmatprep.mubr.bf16.mxu0 0
        %886 = vmatmul.mubr.bf16.gmra.mrb[0].mxu0 %v749
        %v887 = vpop.f32.mrb[0].mxu0
        %v888 = vadd.f32 %v655, %v887
        %v889 = vpop.f32.mrb[0].mxu0
        %v890 = vadd.f32 %v657, %v889
        %v891 = vpop.f32.mrb[0].mxu0
        %v892 = vadd.f32 %v659, %v891
        %v893 = vpop.f32.mrb[0].mxu0
        %v894 = vadd.f32 %v661, %v893
        %895 = vmatprep.mubr.bf16.mxu0 0
        %896 = vmatmul.mubr.bf16.gmra.mrb[0].mxu0 %v750
        %v897 = vpop.f32.mrb[0].mxu0
        %v898 = vadd.f32 %v665, %v897
        %v899 = vpop.f32.mrb[0].mxu0
        %v900 = vadd.f32 %v667, %v899
        %v901 = vpop.f32.mrb[0].mxu0
        %v902 = vadd.f32 %v669, %v901
        %v903 = vpop.f32.mrb[0].mxu0
        %v904 = vadd.f32 %v671, %v903
        %905 = vmatprep.mubr.bf16.mxu0 0
        %906 = vmatmul.mubr.bf16.gmra.mrb[0].mxu0 %v751
        %v907 = vpop.f32.mrb[0].mxu0
        %v908 = vadd.f32 %v675, %v907
        %v909 = vpop.f32.mrb[0].mxu0
        %v910 = vadd.f32 %v677, %v909
        %v911 = vpop.f32.mrb[0].mxu0
        %v912 = vadd.f32 %v679, %v911
        %v913 = vpop.f32.mrb[0].mxu0
        %v914 = vadd.f32 %v681, %v913
        %915 = vmatprep.mubr.bf16.mxu0 0
        %916 = vmatmul.mubr.bf16.gmra.mrb[0].mxu0 %v752
        %v917 = vpop.f32.mrb[0].mxu0
        %v918 = vadd.f32 %v685, %v917
        %v919 = vpop.f32.mrb[0].mxu0
        %v920 = vadd.f32 %v687, %v919
        %v921 = vpop.f32.mrb[0].mxu0
        %v922 = vadd.f32 %v689, %v921
        %v923 = vpop.f32.mrb[0].mxu0
        %v924 = vadd.f32 %v691, %v923
        %925 = vmatprep.mubr.bf16.mxu0 0
        %926 = vmatmul.mubr.bf16.gmra.mrb[0].mxu0 %v753
        %v927 = vpop.f32.mrb[0].mxu0
        %v928 = vadd.f32 %v695, %v927
        %v929 = vpop.f32.mrb[0].mxu0
        %v930 = vadd.f32 %v697, %v929
        %v931 = vpop.f32.mrb[0].mxu0
        %v932 = vadd.f32 %v699, %v931
        %v933 = vpop.f32.mrb[0].mxu0
        %v934 = vadd.f32 %v701, %v933
        %935 = vmatprep.mubr.bf16.mxu0 0
        %936 = vmatmul.mubr.bf16.gmra.mrb[0].mxu0 %v754
        %v937 = vpop.f32.mrb[0].mxu0
        %v938 = vadd.f32 %v705, %v937
        %v939 = vpop.f32.mrb[0].mxu0
        %v940 = vadd.f32 %v707, %v939
        %v941 = vpop.f32.mrb[0].mxu0
        %v942 = vadd.f32 %v709, %v941
        %v943 = vpop.f32.mrb[0].mxu0
        %v944 = vadd.f32 %v711, %v943
        %945 = vmatprep.mubr.bf16.mxu0 0
        %946 = vmatmul.mubr.bf16.gmra.mrb[0].mxu0 %v755
        %v947 = vpop.f32.mrb[0].mxu0
        %v948 = vadd.f32 %v715, %v947
        %v949 = vpop.f32.mrb[0].mxu0
        %v950 = vadd.f32 %v717, %v949
        %v951 = vpop.f32.mrb[0].mxu0
        %v952 = vadd.f32 %v719, %v951
        %v953 = vpop.f32.mrb[0].mxu0
        %v954 = vadd.f32 %v721, %v953
        %955 = vmatprep.mubr.bf16.mxu0 0
        %956 = vmatmul.mubr.bf16.gmra.mrb[0].mxu0 %v756
        %v957 = vpop.f32.mrb[0].mxu0
        %v958 = vadd.f32 %v725, %v957
        %v959 = vpop.f32.mrb[0].mxu0
        %v960 = vadd.f32 %v727, %v959
        %v961 = vpop.f32.mrb[0].mxu0
        %v962 = vadd.f32 %v729, %v961
        %v963 = vpop.f32.mrb[0].mxu0
        %v964 = vadd.f32 %v731, %v963
        %965 = vdwg.mxu0
        %s966 = sld [smem:[#allocation2]]
        %v967 = vld [vmem:[%s6] sm:$0x3]
        %v968 = vstv %s966
        %v969 = vmul.f32 %v968, %v967
        %v970 = vld [vmem:[%s5] sm:$0x3]
        %v971 = vadd.f32 %v969, %v970
        %v973 = vlaneseq
        %v974 = vshrl.u32 %v973, 7
        %v975 = vsub.s32 0, %v974
        %v976 = vrot.slane %v971, %v975
        %v977 = vlaneseq
        %v978 = vshrl.u32 %v977, 7
        %v979 = vsub.s32 1, %v978
        %v980 = vrot.slane %v971, %v979
        %v983 = vadd.f32 %v888, %v976
        %v984 = vadd.f32 %v890, %v980
        %v985 = vadd.f32 %v892, %v976
        %v986 = vadd.f32 %v894, %v980
        %v987 = vadd.f32 %v898, %v976
        %v988 = vadd.f32 %v900, %v980
        %v989 = vadd.f32 %v902, %v976
        %v990 = vadd.f32 %v904, %v980
        %v991 = vadd.f32 %v908, %v976
        %v992 = vadd.f32 %v910, %v980
        %v993 = vadd.f32 %v912, %v976
        %v994 = vadd.f32 %v914, %v980
        %v995 = vadd.f32 %v918, %v976
        %v996 = vadd.f32 %v920, %v980
        %v997 = vadd.f32 %v922, %v976
        %v998 = vadd.f32 %v924, %v980
        %v999 = vadd.f32 %v928, %v976
        %v1000 = vadd.f32 %v930, %v980
        %v1001 = vadd.f32 %v932, %v976
        %v1002 = vadd.f32 %v934, %v980
        %v1003 = vadd.f32 %v938, %v976
        %v1004 = vadd.f32 %v940, %v980
        %v1005 = vadd.f32 %v942, %v976
        %v1006 = vadd.f32 %v944, %v980
        %v1007 = vadd.f32 %v948, %v976
        %v1008 = vadd.f32 %v950, %v980
        %v1009 = vadd.f32 %v952, %v976
        %v1010 = vadd.f32 %v954, %v980
        %v1011 = vadd.f32 %v958, %v976
        %v1012 = vadd.f32 %v960, %v980
        %v1013 = vadd.f32 %v962, %v976
        %v1014 = vadd.f32 %v964, %v980
        %v1015 = vmul.f32 %v983, %v983
        %v1016 = vmul.f32 %v984, %v984
        %v1017 = vmul.f32 %v985, %v985
        %v1018 = vmul.f32 %v986, %v986
        %v1019 = vmul.f32 %v987, %v987
        %v1020 = vmul.f32 %v988, %v988
        %v1021 = vmul.f32 %v989, %v989
        %v1022 = vmul.f32 %v990, %v990
        %v1023 = vmul.f32 %v991, %v991
        %v1024 = vmul.f32 %v992, %v992
        %v1025 = vmul.f32 %v993, %v993
        %v1026 = vmul.f32 %v994, %v994
        %v1027 = vmul.f32 %v995, %v995
        %v1028 = vmul.f32 %v996, %v996
        %v1029 = vmul.f32 %v997, %v997
        %v1030 = vmul.f32 %v998, %v998
        %v1031 = vmul.f32 %v999, %v999
        %v1032 = vmul.f32 %v1000, %v1000
        %v1033 = vmul.f32 %v1001, %v1001
        %v1034 = vmul.f32 %v1002, %v1002
        %v1035 = vmul.f32 %v1003, %v1003
        %v1036 = vmul.f32 %v1004, %v1004
        %v1037 = vmul.f32 %v1005, %v1005
        %v1038 = vmul.f32 %v1006, %v1006
        %v1039 = vmul.f32 %v1007, %v1007
        %v1040 = vmul.f32 %v1008, %v1008
        %v1041 = vmul.f32 %v1009, %v1009
        %v1042 = vmul.f32 %v1010, %v1010
        %v1043 = vmul.f32 %v1011, %v1011
        %v1044 = vmul.f32 %v1012, %v1012
        %v1045 = vmul.f32 %v1013, %v1013
        %v1046 = vmul.f32 %v1014, %v1014
        %v1047 = vmul.f32 %v983, %v1015
        %v1048 = vmul.f32 %v984, %v1016
        %v1049 = vmul.f32 %v985, %v1017
        %v1050 = vmul.f32 %v986, %v1018
        %v1051 = vmul.f32 %v987, %v1019
        %v1052 = vmul.f32 %v988, %v1020
        %v1053 = vmul.f32 %v989, %v1021
        %v1054 = vmul.f32 %v990, %v1022
        %v1055 = vmul.f32 %v991, %v1023
        %v1056 = vmul.f32 %v992, %v1024
        %v1057 = vmul.f32 %v993, %v1025
        %v1058 = vmul.f32 %v994, %v1026
        %v1059 = vmul.f32 %v995, %v1027
        %v1060 = vmul.f32 %v996, %v1028
        %v1061 = vmul.f32 %v997, %v1029
        %v1062 = vmul.f32 %v998, %v1030
        %v1063 = vmul.f32 %v999, %v1031
        %v1064 = vmul.f32 %v1000, %v1032
        %v1065 = vmul.f32 %v1001, %v1033
        %v1066 = vmul.f32 %v1002, %v1034
        %v1067 = vmul.f32 %v1003, %v1035
        %v1068 = vmul.f32 %v1004, %v1036
        %v1069 = vmul.f32 %v1005, %v1037
        %v1070 = vmul.f32 %v1006, %v1038
        %v1071 = vmul.f32 %v1007, %v1039
        %v1072 = vmul.f32 %v1008, %v1040
        %v1073 = vmul.f32 %v1009, %v1041
        %v1074 = vmul.f32 %v1010, %v1042
        %v1075 = vmul.f32 %v1011, %v1043
        %v1076 = vmul.f32 %v1012, %v1044
        %v1077 = vmul.f32 %v1013, %v1045
        %v1078 = vmul.f32 %v1014, %v1046
        %v1079 = vmul.f32 %v1047, 0.044715
        %v1080 = vmul.f32 %v1048, 0.044715
        %v1081 = vmul.f32 %v1049, 0.044715
        %v1082 = vmul.f32 %v1050, 0.044715
        %v1083 = vmul.f32 %v1051, 0.044715
        %v1084 = vmul.f32 %v1052, 0.044715
        %v1085 = vmul.f32 %v1053, 0.044715
        %v1086 = vmul.f32 %v1054, 0.044715
        %v1087 = vmul.f32 %v1055, 0.044715
        %v1088 = vmul.f32 %v1056, 0.044715
        %v1089 = vmul.f32 %v1057, 0.044715
        %v1090 = vmul.f32 %v1058, 0.044715
        %v1091 = vmul.f32 %v1059, 0.044715
        %v1092 = vmul.f32 %v1060, 0.044715
        %v1093 = vmul.f32 %v1061, 0.044715
        %v1094 = vmul.f32 %v1062, 0.044715
        %v1095 = vmul.f32 %v1063, 0.044715
        %v1096 = vmul.f32 %v1064, 0.044715
        %v1097 = vmul.f32 %v1065, 0.044715
        %v1098 = vmul.f32 %v1066, 0.044715
        %v1099 = vmul.f32 %v1067, 0.044715
        %v1100 = vmul.f32 %v1068, 0.044715
        %v1101 = vmul.f32 %v1069, 0.044715
        %v1102 = vmul.f32 %v1070, 0.044715
        %v1103 = vmul.f32 %v1071, 0.044715
        %v1104 = vmul.f32 %v1072, 0.044715
        %v1105 = vmul.f32 %v1073, 0.044715
        %v1106 = vmul.f32 %v1074, 0.044715
        %v1107 = vmul.f32 %v1075, 0.044715
        %v1108 = vmul.f32 %v1076, 0.044715
        %v1109 = vmul.f32 %v1077, 0.044715
        %v1110 = vmul.f32 %v1078, 0.044715
        %v1111 = vadd.f32 %v983, %v1079
        %v1112 = vadd.f32 %v984, %v1080
        %v1113 = vadd.f32 %v985, %v1081
        %v1114 = vadd.f32 %v986, %v1082
        %v1115 = vadd.f32 %v987, %v1083
        %v1116 = vadd.f32 %v988, %v1084
        %v1117 = vadd.f32 %v989, %v1085
        %v1118 = vadd.f32 %v990, %v1086
        %v1119 = vadd.f32 %v991, %v1087
        %v1120 = vadd.f32 %v992, %v1088
        %v1121 = vadd.f32 %v993, %v1089
        %v1122 = vadd.f32 %v994, %v1090
        %v1123 = vadd.f32 %v995, %v1091
        %v1124 = vadd.f32 %v996, %v1092
        %v1125 = vadd.f32 %v997, %v1093
        %v1126 = vadd.f32 %v998, %v1094
        %v1127 = vadd.f32 %v999, %v1095
        %v1128 = vadd.f32 %v1000, %v1096
        %v1129 = vadd.f32 %v1001, %v1097
        %v1130 = vadd.f32 %v1002, %v1098
        %v1131 = vadd.f32 %v1003, %v1099
        %v1132 = vadd.f32 %v1004, %v1100
        %v1133 = vadd.f32 %v1005, %v1101
        %v1134 = vadd.f32 %v1006, %v1102
        %v1135 = vadd.f32 %v1007, %v1103
        %v1136 = vadd.f32 %v1008, %v1104
        %v1137 = vadd.f32 %v1009, %v1105
        %v1138 = vadd.f32 %v1010, %v1106
        %v1139 = vadd.f32 %v1011, %v1107
        %v1140 = vadd.f32 %v1012, %v1108
        %v1141 = vadd.f32 %v1013, %v1109
        %v1142 = vadd.f32 %v1014, %v1110
        %v1143 = vmul.f32 %v1111, 0.7978846
        %v1144 = vmul.f32 %v1112, 0.7978846
        %v1145 = vmul.f32 %v1113, 0.7978846
        %v1146 = vmul.f32 %v1114, 0.7978846
        %v1147 = vmul.f32 %v1115, 0.7978846
        %v1148 = vmul.f32 %v1116, 0.7978846
        %v1149 = vmul.f32 %v1117, 0.7978846
        %v1150 = vmul.f32 %v1118, 0.7978846
        %v1151 = vmul.f32 %v1119, 0.7978846
        %v1152 = vmul.f32 %v1120, 0.7978846
        %v1153 = vmul.f32 %v1121, 0.7978846
        %v1154 = vmul.f32 %v1122, 0.7978846
        %v1155 = vmul.f32 %v1123, 0.7978846
        %v1156 = vmul.f32 %v1124, 0.7978846
        %v1157 = vmul.f32 %v1125, 0.7978846
        %v1158 = vmul.f32 %v1126, 0.7978846
        %v1159 = vmul.f32 %v1127, 0.7978846
        %v1160 = vmul.f32 %v1128, 0.7978846
        %v1161 = vmul.f32 %v1129, 0.7978846
        %v1162 = vmul.f32 %v1130, 0.7978846
        %v1163 = vmul.f32 %v1131, 0.7978846
        %v1164 = vmul.f32 %v1132, 0.7978846
        %v1165 = vmul.f32 %v1133, 0.7978846
        %v1166 = vmul.f32 %v1134, 0.7978846
        %v1167 = vmul.f32 %v1135, 0.7978846
        %v1168 = vmul.f32 %v1136, 0.7978846
        %v1169 = vmul.f32 %v1137, 0.7978846
        %v1170 = vmul.f32 %v1138, 0.7978846
        %v1171 = vmul.f32 %v1139, 0.7978846
        %v1172 = vmul.f32 %v1140, 0.7978846
        %v1173 = vmul.f32 %v1141, 0.7978846
        %v1174 = vmul.f32 %v1142, 0.7978846
        %v1175 = vtanh.pop %v1143
        %v1176 = vtanh.pop %v1144
        %v1177 = vtanh.pop %v1145
        %v1178 = vtanh.pop %v1146
        %v1179 = vtanh.pop %v1147
        %v1180 = vtanh.pop %v1148
        %v1181 = vtanh.pop %v1149
        %v1182 = vtanh.pop %v1150
        %v1183 = vtanh.pop %v1151
        %v1184 = vtanh.pop %v1152
        %v1185 = vtanh.pop %v1153
        %v1186 = vtanh.pop %v1154
        %v1187 = vtanh.pop %v1155
        %v1188 = vtanh.pop %v1156
        %v1189 = vtanh.pop %v1157
        %v1190 = vtanh.pop %v1158
        %v1191 = vtanh.pop %v1159
        %v1192 = vtanh.pop %v1160
        %v1193 = vtanh.pop %v1161
        %v1194 = vtanh.pop %v1162
        %v1195 = vtanh.pop %v1163
        %v1196 = vtanh.pop %v1164
        %v1197 = vtanh.pop %v1165
        %v1198 = vtanh.pop %v1166
        %v1199 = vtanh.pop %v1167
        %v1200 = vtanh.pop %v1168
        %v1201 = vtanh.pop %v1169
        %v1202 = vtanh.pop %v1170
        %v1203 = vtanh.pop %v1171
        %v1204 = vtanh.pop %v1172
        %v1205 = vtanh.pop %v1173
        %v1206 = vtanh.pop %v1174
        %v1207 = vadd.f32 %v1175, 1.0
        %v1208 = vadd.f32 %v1176, 1.0
        %v1209 = vadd.f32 %v1177, 1.0
        %v1210 = vadd.f32 %v1178, 1.0
        %v1211 = vadd.f32 %v1179, 1.0
        %v1212 = vadd.f32 %v1180, 1.0
        %v1213 = vadd.f32 %v1181, 1.0
        %v1214 = vadd.f32 %v1182, 1.0
        %v1215 = vadd.f32 %v1183, 1.0
        %v1216 = vadd.f32 %v1184, 1.0
        %v1217 = vadd.f32 %v1185, 1.0
        %v1218 = vadd.f32 %v1186, 1.0
        %v1219 = vadd.f32 %v1187, 1.0
        %v1220 = vadd.f32 %v1188, 1.0
        %v1221 = vadd.f32 %v1189, 1.0
        %v1222 = vadd.f32 %v1190, 1.0
        %v1223 = vadd.f32 %v1191, 1.0
        %v1224 = vadd.f32 %v1192, 1.0
        %v1225 = vadd.f32 %v1193, 1.0
        %v1226 = vadd.f32 %v1194, 1.0
        %v1227 = vadd.f32 %v1195, 1.0
        %v1228 = vadd.f32 %v1196, 1.0
        %v1229 = vadd.f32 %v1197, 1.0
        %v1230 = vadd.f32 %v1198, 1.0
        %v1231 = vadd.f32 %v1199, 1.0
        %v1232 = vadd.f32 %v1200, 1.0
        %v1233 = vadd.f32 %v1201, 1.0
        %v1234 = vadd.f32 %v1202, 1.0
        %v1235 = vadd.f32 %v1203, 1.0
        %v1236 = vadd.f32 %v1204, 1.0
        %v1237 = vadd.f32 %v1205, 1.0
        %v1238 = vadd.f32 %v1206, 1.0
        %v1239 = vmul.f32 %v1207, 0.5
        %v1240 = vmul.f32 %v1208, 0.5
        %v1241 = vmul.f32 %v1209, 0.5
        %v1242 = vmul.f32 %v1210, 0.5
        %v1243 = vmul.f32 %v1211, 0.5
        %v1244 = vmul.f32 %v1212, 0.5
        %v1245 = vmul.f32 %v1213, 0.5
        %v1246 = vmul.f32 %v1214, 0.5
        %v1247 = vmul.f32 %v1215, 0.5
        %v1248 = vmul.f32 %v1216, 0.5
        %v1249 = vmul.f32 %v1217, 0.5
        %v1250 = vmul.f32 %v1218, 0.5
        %v1251 = vmul.f32 %v1219, 0.5
        %v1252 = vmul.f32 %v1220, 0.5
        %v1253 = vmul.f32 %v1221, 0.5
        %v1254 = vmul.f32 %v1222, 0.5
        %v1255 = vmul.f32 %v1223, 0.5
        %v1256 = vmul.f32 %v1224, 0.5
        %v1257 = vmul.f32 %v1225, 0.5
        %v1258 = vmul.f32 %v1226, 0.5
        %v1259 = vmul.f32 %v1227, 0.5
        %v1260 = vmul.f32 %v1228, 0.5
        %v1261 = vmul.f32 %v1229, 0.5
        %v1262 = vmul.f32 %v1230, 0.5
        %v1263 = vmul.f32 %v1231, 0.5
        %v1264 = vmul.f32 %v1232, 0.5
        %v1265 = vmul.f32 %v1233, 0.5
        %v1266 = vmul.f32 %v1234, 0.5
        %v1267 = vmul.f32 %v1235, 0.5
        %v1268 = vmul.f32 %v1236, 0.5
        %v1269 = vmul.f32 %v1237, 0.5
        %v1270 = vmul.f32 %v1238, 0.5
        %v1271 = vmul.f32 %v983, %v1239
        %v1272 = vmul.f32 %v984, %v1240
        %v1273 = vmul.f32 %v985, %v1241
        %v1274 = vmul.f32 %v986, %v1242
        %v1275 = vmul.f32 %v987, %v1243
        %v1276 = vmul.f32 %v988, %v1244
        %v1277 = vmul.f32 %v989, %v1245
        %v1278 = vmul.f32 %v990, %v1246
        %v1279 = vmul.f32 %v991, %v1247
        %v1280 = vmul.f32 %v992, %v1248
        %v1281 = vmul.f32 %v993, %v1249
        %v1282 = vmul.f32 %v994, %v1250
        %v1283 = vmul.f32 %v995, %v1251
        %v1284 = vmul.f32 %v996, %v1252
        %v1285 = vmul.f32 %v997, %v1253
        %v1286 = vmul.f32 %v998, %v1254
        %v1287 = vmul.f32 %v999, %v1255
        %v1288 = vmul.f32 %v1000, %v1256
        %v1289 = vmul.f32 %v1001, %v1257
        %v1290 = vmul.f32 %v1002, %v1258
        %v1291 = vmul.f32 %v1003, %v1259
        %v1292 = vmul.f32 %v1004, %v1260
        %v1293 = vmul.f32 %v1005, %v1261
        %v1294 = vmul.f32 %v1006, %v1262
        %v1295 = vmul.f32 %v1007, %v1263
        %v1296 = vmul.f32 %v1008, %v1264
        %v1297 = vmul.f32 %v1009, %v1265
        %v1298 = vmul.f32 %v1010, %v1266
        %v1299 = vmul.f32 %v1011, %v1267
        %v1300 = vmul.f32 %v1012, %v1268
        %v1301 = vmul.f32 %v1013, %v1269
        %v1302 = vmul.f32 %v1014, %v1270
        %v1303 = vpack.c.bf16 %v1273, %v1271
        %v1304 = vpack.c.bf16 %v1274, %v1272
        %v1305 = vpack.c.bf16 %v1277, %v1275
        %v1306 = vpack.c.bf16 %v1278, %v1276
        %v1307 = vpack.c.bf16 %v1281, %v1279
        %v1308 = vpack.c.bf16 %v1282, %v1280
        %v1309 = vpack.c.bf16 %v1285, %v1283
        %v1310 = vpack.c.bf16 %v1286, %v1284
        %v1311 = vpack.c.bf16 %v1289, %v1287
        %v1312 = vpack.c.bf16 %v1290, %v1288
        %v1313 = vpack.c.bf16 %v1293, %v1291
        %v1314 = vpack.c.bf16 %v1294, %v1292
        %v1315 = vpack.c.bf16 %v1297, %v1295
        %v1316 = vpack.c.bf16 %v1298, %v1296
        %v1317 = vpack.c.bf16 %v1301, %v1299
        %v1318 = vpack.c.bf16 %v1302, %v1300
        %v1319 = vld [vmem:[#allocation8] sm:$0xf]
        %v1320 = vld [vmem:[#allocation8 + $0x4] sm:$0xf]
        %v1321 = vld [vmem:[#allocation8 + $0x8] sm:$0xf]
        %v1322 = vld [vmem:[#allocation8 + $0xc] sm:$0xf]
        %v1323 = vld [vmem:[#allocation8 + $0x10] sm:$0xf]
        %v1324 = vld [vmem:[#allocation8 + $0x14] sm:$0xf]
        %v1325 = vld [vmem:[#allocation8 + $0x18] sm:$0xf]
        %v1326 = vld [vmem:[#allocation8 + $0x1c] sm:$0xf]
        %v1327 = vld [vmem:[#allocation8 + $0x20] sm:$0xf]
        %v1328 = vld [vmem:[#allocation8 + $0x24] sm:$0xf]
        %v1329 = vld [vmem:[#allocation8 + $0x28] sm:$0xf]
        %v1330 = vld [vmem:[#allocation8 + $0x2c] sm:$0xf]
        %v1331 = vld [vmem:[#allocation8 + $0x30] sm:$0xf]
        %v1332 = vld [vmem:[#allocation8 + $0x34] sm:$0xf]
        %v1333 = vld [vmem:[#allocation8 + $0x38] sm:$0xf]
        %v1334 = vld [vmem:[#allocation8 + $0x3c] sm:$0xf]
        %v1335 = vld [vmem:[#allocation8 + $0x40] sm:$0xf]
        %v1336 = vld [vmem:[#allocation8 + $0x44] sm:$0xf]
        %v1337 = vld [vmem:[#allocation8 + $0x48] sm:$0xf]
        %v1338 = vld [vmem:[#allocation8 + $0x4c] sm:$0xf]
        %v1339 = vld [vmem:[#allocation8 + $0x50] sm:$0xf]
        %v1340 = vld [vmem:[#allocation8 + $0x54] sm:$0xf]
        %v1341 = vld [vmem:[#allocation8 + $0x58] sm:$0xf]
        %v1342 = vld [vmem:[#allocation8 + $0x5c] sm:$0xf]
        %v1343 = vld [vmem:[#allocation8 + $0x60] sm:$0xf]
        %v1344 = vld [vmem:[#allocation8 + $0x64] sm:$0xf]
        %v1345 = vld [vmem:[#allocation8 + $0x68] sm:$0xf]
        %v1346 = vld [vmem:[#allocation8 + $0x6c] sm:$0xf]
        %v1347 = vld [vmem:[#allocation8 + $0x70] sm:$0xf]
        %v1348 = vld [vmem:[#allocation8 + $0x74] sm:$0xf]
        %v1349 = vld [vmem:[#allocation8 + $0x78] sm:$0xf]
        %v1350 = vld [vmem:[#allocation8 + $0x7c] sm:$0xf]
        %v1351 = vld [vmem:[%s8] sm:$0x1]
        %v1353 = vlaneseq
        %v1354 = vshrl.u32 %v1353, 7
        %v1355 = vsub.s32 0, %v1354
        %v1356 = vrot.slane %v1351, %v1355
        %v1390 = vunpack.c.l.b16 %v1319
        %v1391 = vunpack.c.l.b16 %v1320
        %v1392 = vunpack.c.l.b16 %v1321
        %v1393 = vunpack.c.l.b16 %v1322
        %v1394 = vunpack.c.l.b16 %v1323
        %v1395 = vunpack.c.l.b16 %v1324
        %v1396 = vunpack.c.l.b16 %v1325
        %v1397 = vunpack.c.l.b16 %v1326
        %v1398 = vunpack.c.l.b16 %v1327
        %v1399 = vunpack.c.l.b16 %v1328
        %v1400 = vunpack.c.l.b16 %v1329
        %v1401 = vunpack.c.l.b16 %v1330
        %v1402 = vunpack.c.l.b16 %v1331
        %v1403 = vunpack.c.l.b16 %v1332
        %v1404 = vunpack.c.l.b16 %v1333
        %v1405 = vunpack.c.l.b16 %v1334
        %v1406 = vunpack.c.l.b16 %v1335
        %v1407 = vunpack.c.l.b16 %v1336
        %v1408 = vunpack.c.l.b16 %v1337
        %v1409 = vunpack.c.l.b16 %v1338
        %v1410 = vunpack.c.l.b16 %v1339
        %v1411 = vunpack.c.l.b16 %v1340
        %v1412 = vunpack.c.l.b16 %v1341
        %v1413 = vunpack.c.l.b16 %v1342
        %v1414 = vunpack.c.l.b16 %v1343
        %v1415 = vunpack.c.l.b16 %v1344
        %v1416 = vunpack.c.l.b16 %v1345
        %v1417 = vunpack.c.l.b16 %v1346
        %v1418 = vunpack.c.l.b16 %v1347
        %v1419 = vunpack.c.l.b16 %v1348
        %v1420 = vunpack.c.l.b16 %v1349
        %v1421 = vunpack.c.l.b16 %v1350
        %v1422 = vpack.c.b16 %v1391, %v1390
        %v1423 = vpack.c.b16 %v1393, %v1392
        %v1424 = vpack.c.b16 %v1395, %v1394
        %v1425 = vpack.c.b16 %v1397, %v1396
        %v1426 = vpack.c.b16 %v1399, %v1398
        %v1427 = vpack.c.b16 %v1401, %v1400
        %v1428 = vpack.c.b16 %v1403, %v1402
        %v1429 = vpack.c.b16 %v1405, %v1404
        %v1430 = vpack.c.b16 %v1407, %v1406
        %v1431 = vpack.c.b16 %v1409, %v1408
        %v1432 = vpack.c.b16 %v1411, %v1410
        %v1433 = vpack.c.b16 %v1413, %v1412
        %v1434 = vpack.c.b16 %v1415, %v1414
        %v1435 = vpack.c.b16 %v1417, %v1416
        %v1436 = vpack.c.b16 %v1419, %v1418
        %v1437 = vpack.c.b16 %v1421, %v1420
        %1454 = vmatprep.subr.bf16.mxu0 0
        %1455 = vmatpush1.bf16.msra.mxu0 %v1422
        %1456 = vmatprep.subr.bf16.mxu0 0
        %1457 = vmatpush1.bf16.msra.mxu0 %v1423
        %1458 = vmatprep.subr.bf16.mxu0 0
        %1459 = vmatpush1.bf16.msra.mxu0 %v1424
        %1460 = vmatprep.subr.bf16.mxu0 0
        %1461 = vmatpush1.bf16.msra.mxu0 %v1425
        %1462 = vmatprep.subr.bf16.mxu0 0
        %1463 = vmatpush1.bf16.msra.mxu0 %v1426
        %1464 = vmatprep.subr.bf16.mxu0 0
        %1465 = vmatpush1.bf16.msra.mxu0 %v1427
        %1466 = vmatprep.subr.bf16.mxu0 0
        %1467 = vmatpush1.bf16.msra.mxu0 %v1428
        %1468 = vmatprep.subr.bf16.mxu0 0
        %1469 = vmatpush1.bf16.msra.mxu0 %v1429
        %1470 = vmatprep.subr.bf16.mxu0 0
        %1471 = vmatpush1.bf16.msra.mxu0 %v1430
        %1472 = vmatprep.subr.bf16.mxu0 0
        %1473 = vmatpush1.bf16.msra.mxu0 %v1431
        %1474 = vmatprep.subr.bf16.mxu0 0
        %1475 = vmatpush1.bf16.msra.mxu0 %v1432
        %1476 = vmatprep.subr.bf16.mxu0 0
        %1477 = vmatpush1.bf16.msra.mxu0 %v1433
        %1478 = vmatprep.subr.bf16.mxu0 0
        %1479 = vmatpush1.bf16.msra.mxu0 %v1434
        %1480 = vmatprep.subr.bf16.mxu0 0
        %1481 = vmatpush1.bf16.msra.mxu0 %v1435
        %1482 = vmatprep.subr.bf16.mxu0 0
        %1483 = vmatpush1.bf16.msra.mxu0 %v1436
        %1484 = vmatprep.subr.bf16.mxu0 0
        %1485 = vmatpush1.bf16.msra.mxu0 %v1437
        %1486 = vmatprep.mubr.bf16.mxu0 %v1304
        %1487 = vmatmul.mubr.bf16.gmra.mrb[0].mxu0 %v1303
        %v1488 = vpop.f32.mrb[0].mxu0
        %v1489 = vadd.f32 %v1356, %v1488
        %v1490 = vpop.f32.mrb[0].mxu0
        %v1491 = vpop.f32.mrb[0].mxu0
        %v1492 = vadd.f32 %v1356, %v1491
        %v1493 = vpop.f32.mrb[0].mxu0
        %1494 = vmatprep.mubr.bf16.mxu0 %v1306
        %1495 = vmatmul.mubr.bf16.gmra.mrb[0].mxu0 %v1305
        %v1496 = vpop.f32.mrb[0].mxu0
        %v1497 = vadd.f32 %v1356, %v1496
        %v1498 = vpop.f32.mrb[0].mxu0
        %v1499 = vpop.f32.mrb[0].mxu0
        %v1500 = vadd.f32 %v1356, %v1499
        %v1501 = vpop.f32.mrb[0].mxu0
        %1502 = vmatprep.mubr.bf16.mxu0 %v1308
        %1503 = vmatmul.mubr.bf16.gmra.mrb[0].mxu0 %v1307
        %v1504 = vpop.f32.mrb[0].mxu0
        %v1505 = vadd.f32 %v1356, %v1504
        %v1506 = vpop.f32.mrb[0].mxu0
        %v1507 = vpop.f32.mrb[0].mxu0
        %v1508 = vadd.f32 %v1356, %v1507
        %v1509 = vpop.f32.mrb[0].mxu0
        %1510 = vmatprep.mubr.bf16.mxu0 %v1310
        %1511 = vmatmul.mubr.bf16.gmra.mrb[0].mxu0 %v1309
        %v1512 = vpop.f32.mrb[0].mxu0
        %v1513 = vadd.f32 %v1356, %v1512
        %v1514 = vpop.f32.mrb[0].mxu0
        %v1515 = vpop.f32.mrb[0].mxu0
        %v1516 = vadd.f32 %v1356, %v1515
        %v1517 = vpop.f32.mrb[0].mxu0
        %1518 = vmatprep.mubr.bf16.mxu0 %v1312
        %1519 = vmatmul.mubr.bf16.gmra.mrb[0].mxu0 %v1311
        %v1520 = vpop.f32.mrb[0].mxu0
        %v1521 = vadd.f32 %v1356, %v1520
        %v1522 = vpop.f32.mrb[0].mxu0
        %v1523 = vpop.f32.mrb[0].mxu0
        %v1524 = vadd.f32 %v1356, %v1523
        %v1525 = vpop.f32.mrb[0].mxu0
        %1526 = vmatprep.mubr.bf16.mxu0 %v1314
        %1527 = vmatmul.mubr.bf16.gmra.mrb[0].mxu0 %v1313
        %v1528 = vpop.f32.mrb[0].mxu0
        %v1529 = vadd.f32 %v1356, %v1528
        %v1530 = vpop.f32.mrb[0].mxu0
        %v1531 = vpop.f32.mrb[0].mxu0
        %v1532 = vadd.f32 %v1356, %v1531
        %v1533 = vpop.f32.mrb[0].mxu0
        %1534 = vmatprep.mubr.bf16.mxu0 %v1316
        %1535 = vmatmul.mubr.bf16.gmra.mrb[0].mxu0 %v1315
        %v1536 = vpop.f32.mrb[0].mxu0
        %v1537 = vadd.f32 %v1356, %v1536
        %v1538 = vpop.f32.mrb[0].mxu0
        %v1539 = vpop.f32.mrb[0].mxu0
        %v1540 = vadd.f32 %v1356, %v1539
        %v1541 = vpop.f32.mrb[0].mxu0
        %1542 = vmatprep.mubr.bf16.mxu0 %v1318
        %1543 = vmatmul.mubr.bf16.gmra.mrb[0].mxu0 %v1317
        %v1544 = vpop.f32.mrb[0].mxu0
        %v1545 = vadd.f32 %v1356, %v1544
        %v1546 = vpop.f32.mrb[0].mxu0
        %v1547 = vpop.f32.mrb[0].mxu0
        %v1548 = vadd.f32 %v1356, %v1547
        %v1549 = vpop.f32.mrb[0].mxu0
        %1550 = vdwg.mxu0
        %1551 = vst [vmem:[%s387] sm:$0xff] %v1489
        %1552 = vst [vmem:[%s387 + $0x8] sm:$0xff] %v1492
        %1553 = vst [vmem:[%s387 + $0x10] sm:$0xff] %v1497
        %1554 = vst [vmem:[%s387 + $0x18] sm:$0xff] %v1500
        %1555 = vst [vmem:[%s387 + $0x20] sm:$0xff] %v1505
        %1556 = vst [vmem:[%s387 + $0x28] sm:$0xff] %v1508
        %1557 = vst [vmem:[%s387 + $0x30] sm:$0xff] %v1513
        %1558 = vst [vmem:[%s387 + $0x38] sm:$0xff] %v1516
        %1559 = vst [vmem:[%s387 + $0x40] sm:$0xff] %v1521
        %1560 = vst [vmem:[%s387 + $0x48] sm:$0xff] %v1524
        %1561 = vst [vmem:[%s387 + $0x50] sm:$0xff] %v1529
        %1562 = vst [vmem:[%s387 + $0x58] sm:$0xff] %v1532
        %1563 = vst [vmem:[%s387 + $0x60] sm:$0xff] %v1537
        %1564 = vst [vmem:[%s387 + $0x68] sm:$0xff] %v1540
        %1565 = vst [vmem:[%s387 + $0x70] sm:$0xff] %v1545
        %1566 = vst [vmem:[%s387 + $0x78] sm:$0xff] %v1548
        %s1567 = sand.u32 %s233, 1
        %s1568 = scalar_lea.sflag [#allocation5], %s1567
        %s1569 = sand.u32 %s233, 1
        %s1570 = smul.addr %s1569, 128
        %s1571 = scalar_lea.vmem [#allocation9], %s1570
        // Predicated region
        $region69: #{tpu_custom_call.1} parent=55 // pred_check
          %p1572 = pneg %p243
        $region70: #{tpu_custom_call.1} parent=55 // pred_check_branch
          %1574 = sbr.rel (%p1572) target = $region72
        $region71: #{tpu_custom_call.1} parent=55 // pred_region
          %s1575 = smul.u32 16, %s26
          %s1577 = ssub.s32 2048, 2048
          %1578 = vsyncadd %s1568, %s1577
          %s1579 = smul.addr %s1575, 128
          %s1580 = scalar_lea.hbm %s9, %s1579
          %s1581 = sshll.u32 %s1571, 4
          %s1582 = int_to_ptr.vmem [resolvable:$true] %s1581
          %1587 = dma.vmem_to_hbm [thread:$0]  %s1582, 2048, %s1580, %s1568, 128, 128, 8
        $region72: #{tpu_custom_call.1} parent=55 // pred_fallthru
          _
      $region56: #{tpu_custom_call.1} parent=5 // pred_fallthru
        _
      %p1588 = scmp.le.s32.totalorder 2, %s21
      // Predicated region
      $region73: #{tpu_custom_call.1} parent=5 // pred_check
        %p1589 = pneg %p1588
      $region74: #{tpu_custom_call.1} parent=5 // pred_check_branch
        %1591 = sbr.rel (%p1589) target = $region76
      $region75: #{tpu_custom_call.1} parent=5 // pred_region
        %s1592 = ssub.s32 %s21, 2
        // Predicated region
        $region77: #{tpu_custom_call.1} parent=75 // pred_check
          %p1593 = pneg %p249
        $region78: #{tpu_custom_call.1} parent=75 // pred_check_branch
          %1595 = sbr.rel (%p1593) target = $region80
        $region79: #{tpu_custom_call.1} parent=75 // pred_region
          %s1596 = sand.u32 %s234, 1
          %s1597 = scalar_lea.sflag [#allocation5], %s1596
          %s1598 = sand.u32 %s234, 1
          %s1599 = smul.addr %s1598, 128
          %s1600 = scalar_lea.vmem [#allocation9], %s1599
          %1601 = dma.done %s1597, 2048
        $region80: #{tpu_custom_call.1} parent=75 // pred_fallthru
          _
      $region76: #{tpu_custom_call.1} parent=5 // pred_fallthru
        _
    $region6: #{tpu_custom_call.1} parent=1 // loop_footer
      %s25 = sadd.s32 1, %s21
    $region7: #{tpu_custom_call.1} parent=1 // loop_footer_branch
      %20 = sbr.rel target = $region3
    $region8: #{tpu_custom_call.1} parent=1 // loop_exit
      _
    %1602 = vsyncpa [#allocation4], 1
    %s1603 = scalar_lea.sflag [#allocation4], 1
    %1604 = vsyncpa %s1603, 1
    %1605 = vsyncpa [#allocation7], 1
    %1606 = vsyncpa [#allocation5], 1
    %s1607 = scalar_lea.sflag [#allocation5], 1
    %1608 = vsyncpa %s1607, 1

// kernel: tpu_custom_call.1
$region0: #{tpu_custom_call.1}
  #allocation0 [shape = 'u32[]', space=smem, size = 0x4, offset = 0x4, fixed_abs, tag = 'smem constant byte address 0x4 - core index']
  #allocation1 [shape = 'u32[144,128]{1,0:T(1,128)}', space=vmem, size = 0x12000, scoped, tag = 'internal scratch']
  #allocation2 [shape = 'f32[1,1]{1,0:T(1,128)S(6)}', space=smem, size = 0x200, scoped, tag = 'scoped memory for tpu_custom_call.1']
  %s0 = inlined_call_operand.<no memory space> [shape: f32[1,1], index: 0, kind: input, shape index: {}]
  %s1 = inlined_call_operand.vmem [shape: f32[512,128], index: 1, kind: input, shape index: {}]
  %s2 = inlined_call_operand.vmem [shape: s32[512,1], index: 2, kind: input, shape index: {}]
  %s3 = inlined_call_operand.hbm [shape: bf16[128,256], index: 3, kind: input, shape index: {}]
  %s4 = inlined_call_operand.hbm [shape: bf16[128,256], index: 4, kind: input, shape index: {}]
  %s5 = inlined_call_operand.vmem [shape: f32[1,256], index: 5, kind: input, shape index: {}]
  %s6 = inlined_call_operand.vmem [shape: f32[1,256], index: 6, kind: input, shape index: {}]
  %s7 = inlined_call_operand.hbm [shape: bf16[256,128], index: 7, kind: input, shape index: {}]
  %s8 = inlined_call_operand.vmem [shape: f32[1,128], index: 8, kind: input, shape index: {}]
  %s9 = inlined_call_operand.hbm [shape: f32[512,128], index: 9, kind: output, shape index: {}]
  %s10 = sld [smem:[#allocation0]]
  $region81: #{tpu_custom_call.1} parent=0
    _
  %s12 = ssub.s32 1, %s10
  %s13 = scalar_select 0, %s12, %s10
  %14 = sst [smem:[#allocation2]] %s0
  $region1: #{tpu_custom_call.1} parent=0
    #allocation3 [shape = 'u8[65536]{0}', space=vmem, size = 0x10000, scoped, tag = 'input window, operand 3, single buffered']
    #allocation4 [shape = 's32[2]{0}', space=sflag, size = 0x8, scoped, tag = 'scoped memory for tpu_custom_call.1']
    #allocation5 [shape = 's32[2]{0}', space=sflag, size = 0x8, scoped, tag = 'scoped memory for tpu_custom_call.1']
    #allocation6 [shape = 'u8[65536]{0}', space=vmem, size = 0x10000, scoped, tag = 'input window, operand 4, single buffered']
    #allocation7 [shape = 's32[1]{0}', space=sflag, size = 0x4, scoped, tag = 'scoped memory for tpu_custom_call.1']
    #allocation8 [shape = 'u8[65536]{0}', space=vmem, size = 0x10000, scoped, tag = 'input window, operand 7, single buffered']
    #allocation9 [shape = 'u8[131072]{0}', space=vmem, size = 0x20000, scoped, tag = 'output window, operand 0']
    %15 = vsyncpa [#allocation4], 0
    %16 = vsyncpa [#allocation7], 0
    %17 = vsyncpa [#allocation5], 0
    %s18 = scalar_lea.sflag [#allocation5], 1
    %19 = vsyncpa %s18, 0
    loop: start=0, step=1, limit=6
    $region2: #{tpu_custom_call.1} parent=1 // loop_pre_header
      _
    $region3: #{tpu_custom_call.1} parent=1 // loop_header
      %s21 = sphi 0, %s25
      %p22 = scmp.ge.s32.totalorder %s21, 6
      %s29 = sphi 0, %s29
      %s31 = sphi 0, %s29
      %s32 = sphi 0, %s31
      %s46 = sphi 0, %s32
      %s52 = sphi 0, %s54
      %s55 = sphi 0, %s52
      %s56 = sphi 0, %s55
      %s72 = sphi 0, %s56
      %s78 = sphi 0, %s80
      %s81 = sphi 0, %s78
      %s82 = sphi 0, %s81
      %s98 = sphi 0, %s82
      %s102 = sphi 0, %s102
      %s104 = sphi 0, %s102
      %s105 = sphi 0, %s104
      %s119 = sphi 0, %s105
      %s123 = sphi 0, %s123
      %s125 = sphi 0, %s123
      %s126 = sphi 0, %s125
      %s140 = sphi 0, %s126
      %s144 = sphi 0, %s144
      %s146 = sphi 0, %s144
      %s147 = sphi 0, %s146
      %s161 = sphi 0, %s147
      %s165 = sphi 0, %s165
      %s167 = sphi 0, %s165
      %s168 = sphi 0, %s167
      %s182 = sphi 0, %s168
      %s186 = sphi 0, %s186
      %s188 = sphi 0, %s186
      %s189 = sphi 0, %s188
      %s203 = sphi 0, %s189
      %s207 = sphi 0, %s207
      %s209 = sphi 0, %s207
      %s210 = sphi 0, %s209
      %s224 = sphi 0, %s210
      %s230 = sphi 0, %s232
      %s233 = sphi 0, %s230
      %s234 = sphi 0, %s233
      %s250 = sphi 0, %s234
    $region4: #{tpu_custom_call.1} parent=1 // loop_header_branch
      %24 = sbr.rel (%p22) target = $region8
    $region5: #{tpu_custom_call.1} parent=1 // loop_body
      %s26 = ssub.s32 %s21, 1
      %s27 = ssub.s32 %s21, 2
      %s28 = sadd.s32 %s21, 1
      %s30 = sadd.s32 %s29, 1
      %p33 = scmp.eq.s32.totalorder %s21, 3
      %p34 = scmp.ne.s32.totalorder %s29, %s31
      %p35 = scmp.eq.s32.totalorder %s21, 0
      %p36 = por %p34, %p35
      %p37 = scmp.ne.s32.totalorder %s29, %s31
      %p38 = scmp.eq.s32.totalorder %s26, 3
      %p39 = por %p37, %p38
      %p40 = scmp.ne.s32.totalorder %s31, %s32
      %p41 = scmp.eq.s32.totalorder %s26, 0
      %p42 = por %p40, %p41
      %p43 = scmp.ne.s32.totalorder %s31, %s32
      %p44 = scmp.eq.s32.totalorder %s27, 3
      %p45 = por %p43, %p44
      %p47 = scmp.ne.s32.totalorder %s32, %s46
      %p48 = scmp.eq.s32.totalorder %s27, 0
      %p49 = por %p47, %p48
      %s50 = ssub.s32 %s21, %s28
      %p51 = scmp.eq.s32.totalorder %s50, 0
      %s53 = sadd.s32 %s52, 1
      %s54 = scalar_select %p51, %s52, %s53
      %p57 = pneg %p51
      %p58 = scmp.eq.s32.totalorder %s21, 3
      %p59 = por %p57, %p58
      %p60 = scmp.ne.s32.totalorder %s52, %s55
      %p61 = scmp.eq.s32.totalorder %s21, 0
      %p62 = por %p60, %p61
      %p63 = scmp.ne.s32.totalorder %s52, %s55
      %p64 = scmp.eq.s32.totalorder %s26, 3
      %p65 = por %p63, %p64
      %p66 = scmp.ne.s32.totalorder %s55, %s56
      %p67 = scmp.eq.s32.totalorder %s26, 0
      %p68 = por %p66, %p67
      %p69 = scmp.ne.s32.totalorder %s55, %s56
      %p70 = scmp.eq.s32.totalorder %s27, 3
      %p71 = por %p69, %p70
      %p73 = scmp.ne.s32.totalorder %s56, %s72
      %p74 = scmp.eq.s32.totalorder %s27, 0
      %p75 = por %p73, %p74
      %s76 = ssub.s32 %s21, %s28
      %p77 = scmp.eq.s32.totalorder %s76, 0
      %s79 = sadd.s32 %s78, 1
      %s80 = scalar_select %p77, %s78, %s79
      %p83 = pneg %p77
      %p84 = scmp.eq.s32.totalorder %s21, 3
      %p85 = por %p83, %p84
      %p86 = scmp.ne.s32.totalorder %s78, %s81
      %p87 = scmp.eq.s32.totalorder %s21, 0
      %p88 = por %p86, %p87
      %p89 = scmp.ne.s32.totalorder %s78, %s81
      %p90 = scmp.eq.s32.totalorder %s26, 3
      %p91 = por %p89, %p90
      %p92 = scmp.ne.s32.totalorder %s81, %s82
      %p93 = scmp.eq.s32.totalorder %s26, 0
      %p94 = por %p92, %p93
      %p95 = scmp.ne.s32.totalorder %s81, %s82
      %p96 = scmp.eq.s32.totalorder %s27, 3
      %p97 = por %p95, %p96
      %p99 = scmp.ne.s32.totalorder %s82, %s98
      %p100 = scmp.eq.s32.totalorder %s27, 0
      %p101 = por %p99, %p100
      %s103 = sadd.s32 %s102, 1
      %p106 = scmp.eq.s32.totalorder %s21, 3
      %p107 = scmp.ne.s32.totalorder %s102, %s104
      %p108 = scmp.eq.s32.totalorder %s21, 0
      %p109 = por %p107, %p108
      %p110 = scmp.ne.s32.totalorder %s102, %s104
      %p111 = scmp.eq.s32.totalorder %s26, 3
      %p112 = por %p110, %p111
      %p113 = scmp.ne.s32.totalorder %s104, %s105
      %p114 = scmp.eq.s32.totalorder %s26, 0
      %p115 = por %p113, %p114
      %p116 = scmp.ne.s32.totalorder %s104, %s105
      %p117 = scmp.eq.s32.totalorder %s27, 3
      %p118 = por %p116, %p117
      %p120 = scmp.ne.s32.totalorder %s105, %s119
      %p121 = scmp.eq.s32.totalorder %s27, 0
      %p122 = por %p120, %p121
      %s124 = sadd.s32 %s123, 1
      %p127 = scmp.eq.s32.totalorder %s21, 3
      %p128 = scmp.ne.s32.totalorder %s123, %s125
      %p129 = scmp.eq.s32.totalorder %s21, 0
      %p130 = por %p128, %p129
      %p131 = scmp.ne.s32.totalorder %s123, %s125
      %p132 = scmp.eq.s32.totalorder %s26, 3
      %p133 = por %p131, %p132
      %p134 = scmp.ne.s32.totalorder %s125, %s126
      %p135 = scmp.eq.s32.totalorder %s26, 0
      %p136 = por %p134, %p135
      %p137 = scmp.ne.s32.totalorder %s125, %s126
      %p138 = scmp.eq.s32.totalorder %s27, 3
      %p139 = por %p137, %p138
      %p141 = scmp.ne.s32.totalorder %s126, %s140
      %p142 = scmp.eq.s32.totalorder %s27, 0
      %p143 = por %p141, %p142
      %s145 = sadd.s32 %s144, 1
      %p148 = scmp.eq.s32.totalorder %s21, 3
      %p149 = scmp.ne.s32.totalorder %s144, %s146
      %p150 = scmp.eq.s32.totalorder %s21, 0
      %p151 = por %p149, %p150
      %p152 = scmp.ne.s32.totalorder %s144, %s146
      %p153 = scmp.eq.s32.totalorder %s26, 3
      %p154 = por %p152, %p153
      %p155 = scmp.ne.s32.totalorder %s146, %s147
      %p156 = scmp.eq.s32.totalorder %s26, 0
      %p157 = por %p155, %p156
      %p158 = scmp.ne.s32.totalorder %s146, %s147
      %p159 = scmp.eq.s32.totalorder %s27, 3
      %p160 = por %p158, %p159
      %p162 = scmp.ne.s32.totalorder %s147, %s161
      %p163 = scmp.eq.s32.totalorder %s27, 0
      %p164 = por %p162, %p163
      %s166 = sadd.s32 %s165, 1
      %p169 = scmp.eq.s32.totalorder %s21, 3
      %p170 = scmp.ne.s32.totalorder %s165, %s167
      %p171 = scmp.eq.s32.totalorder %s21, 0
      %p172 = por %p170, %p171
      %p173 = scmp.ne.s32.totalorder %s165, %s167
      %p174 = scmp.eq.s32.totalorder %s26, 3
      %p175 = por %p173, %p174
      %p176 = scmp.ne.s32.totalorder %s167, %s168
      %p177 = scmp.eq.s32.totalorder %s26, 0
      %p178 = por %p176, %p177
      %p179 = scmp.ne.s32.totalorder %s167, %s168
      %p180 = scmp.eq.s32.totalorder %s27, 3
      %p181 = por %p179, %p180
      %p183 = scmp.ne.s32.totalorder %s168, %s182
      %p184 = scmp.eq.s32.totalorder %s27, 0
      %p185 = por %p183, %p184
      %s187 = sadd.s32 %s186, 1
      %p190 = scmp.eq.s32.totalorder %s21, 3
      %p191 = scmp.ne.s32.totalorder %s186, %s188
      %p192 = scmp.eq.s32.totalorder %s21, 0
      %p193 = por %p191, %p192
      %p194 = scmp.ne.s32.totalorder %s186, %s188
      %p195 = scmp.eq.s32.totalorder %s26, 3
      %p196 = por %p194, %p195
      %p197 = scmp.ne.s32.totalorder %s188, %s189
      %p198 = scmp.eq.s32.totalorder %s26, 0
      %p199 = por %p197, %p198
      %p200 = scmp.ne.s32.totalorder %s188, %s189
      %p201 = scmp.eq.s32.totalorder %s27, 3
      %p202 = por %p200, %p201
      %p204 = scmp.ne.s32.totalorder %s189, %s203
      %p205 = scmp.eq.s32.totalorder %s27, 0
      %p206 = por %p204, %p205
      %s208 = sadd.s32 %s207, 1
      %p211 = scmp.eq.s32.totalorder %s21, 3
      %p212 = scmp.ne.s32.totalorder %s207, %s209
      %p213 = scmp.eq.s32.totalorder %s21, 0
      %p214 = por %p212, %p213
      %p215 = scmp.ne.s32.totalorder %s207, %s209
      %p216 = scmp.eq.s32.totalorder %s26, 3
      %p217 = por %p215, %p216
      %p218 = scmp.ne.s32.totalorder %s209, %s210
      %p219 = scmp.eq.s32.totalorder %s26, 0
      %p220 = por %p218, %p219
      %p221 = scmp.ne.s32.totalorder %s209, %s210
      %p222 = scmp.eq.s32.totalorder %s27, 3
      %p223 = por %p221, %p222
      %p225 = scmp.ne.s32.totalorder %s210, %s224
      %p226 = scmp.eq.s32.totalorder %s27, 0
      %p227 = por %p225, %p226
      %s228 = ssub.s32 %s21, %s28
      %p229 = scmp.eq.s32.totalorder %s228, 0
      %s231 = sadd.s32 %s230, 1
      %s232 = scalar_select %p229, %s230, %s231
      %p235 = pneg %p229
      %p236 = scmp.eq.s32.totalorder %s21, 3
      %p237 = por %p235, %p236
      %p238 = scmp.ne.s32.totalorder %s230, %s233
      %p239 = scmp.eq.s32.totalorder %s21, 0
      %p240 = por %p238, %p239
      %p241 = scmp.ne.s32.totalorder %s230, %s233
      %p242 = scmp.eq.s32.totalorder %s26, 3
      %p243 = por %p241, %p242
      %p244 = scmp.ne.s32.totalorder %s233, %s234
      %p245 = scmp.eq.s32.totalorder %s26, 0
      %p246 = por %p244, %p245
      %p247 = scmp.ne.s32.totalorder %s233, %s234
      %p248 = scmp.eq.s32.totalorder %s27, 3
      %p249 = por %p247, %p248
      %p251 = scmp.ne.s32.totalorder %s234, %s250
      %p252 = scmp.eq.s32.totalorder %s27, 0
      %p253 = por %p251, %p252
      %p254 = scmp.le.s32.totalorder 1, %s21
      %p255 = scmp.lt.s32.totalorder %s21, 5
      %p256 = pnand %p254, %p255
      %p257 = pneg %p256
      // Predicated region
      $region9: #{tpu_custom_call.1} parent=5 // pred_check
        _
      $region10: #{tpu_custom_call.1} parent=5 // pred_check_branch
        %259 = sbr.rel (%p256) target = $region12
      $region11: #{tpu_custom_call.1} parent=5 // pred_region
        %s260 = ssub.s32 %s21, 1
        // Predicated region
        $region13: #{tpu_custom_call.1} parent=11 // pred_check
          %p261 = pneg %p42
        $region14: #{tpu_custom_call.1} parent=11 // pred_check_branch
          %263 = sbr.rel (%p261) target = $region16
        $region15: #{tpu_custom_call.1} parent=11 // pred_region
          _
        $region16: #{tpu_custom_call.1} parent=11 // pred_fallthru
          _
        // Predicated region
        $region17: #{tpu_custom_call.1} parent=11 // pred_check
          %p264 = pneg %p115
        $region18: #{tpu_custom_call.1} parent=11 // pred_check_branch
          %266 = sbr.rel (%p264) target = $region20
        $region19: #{tpu_custom_call.1} parent=11 // pred_region
          %s268 = ssub.s32 2048, 2048
          %269 = vsyncadd [#allocation4], %s268
          %s270 = sshll.u32 [#allocation3], 4
          %s271 = int_to_ptr.vmem [resolvable:$true] %s270
          %276 = dma.hbm_to_vmem [thread:$0]  %s3, 2048, %s271, [#allocation4], 128, 128, 8
        $region20: #{tpu_custom_call.1} parent=11 // pred_fallthru
          _
        // Predicated region
        $region21: #{tpu_custom_call.1} parent=11 // pred_check
          %p277 = pneg %p136
        $region22: #{tpu_custom_call.1} parent=11 // pred_check_branch
          %279 = sbr.rel (%p277) target = $region24
        $region23: #{tpu_custom_call.1} parent=11 // pred_region
          %s281 = ssub.s32 2048, 2048
          %282 = vsyncadd [#allocation7], %s281
          %s283 = sshll.u32 [#allocation6], 4
          %s284 = int_to_ptr.vmem [resolvable:$true] %s283
          %289 = dma.hbm_to_vmem [thread:$0]  %s4, 2048, %s284, [#allocation7], 128, 128, 8
        $region24: #{tpu_custom_call.1} parent=11 // pred_fallthru
          _
        // Predicated region
        $region25: #{tpu_custom_call.1} parent=11 // pred_check
          %p290 = pneg %p157
        $region26: #{tpu_custom_call.1} parent=11 // pred_check_branch
          %292 = sbr.rel (%p290) target = $region28
        $region27: #{tpu_custom_call.1} parent=11 // pred_region
          _
        $region28: #{tpu_custom_call.1} parent=11 // pred_fallthru
          _
        // Predicated region
        $region29: #{tpu_custom_call.1} parent=11 // pred_check
          %p293 = pneg %p178
        $region30: #{tpu_custom_call.1} parent=11 // pred_check_branch
          %295 = sbr.rel (%p293) target = $region32
        $region31: #{tpu_custom_call.1} parent=11 // pred_region
          _
        $region32: #{tpu_custom_call.1} parent=11 // pred_fallthru
          _
        // Predicated region
        $region33: #{tpu_custom_call.1} parent=11 // pred_check
          %p296 = pneg %p199
        $region34: #{tpu_custom_call.1} parent=11 // pred_check_branch
          %298 = sbr.rel (%p296) target = $region36
        $region35: #{tpu_custom_call.1} parent=11 // pred_region
          %s300 = ssub.s32 2048, 2048
          %301 = vsyncadd [#allocation7], %s300
          %s302 = sshll.u32 [#allocation8], 4
          %s303 = int_to_ptr.vmem [resolvable:$true] %s302
          %308 = dma.hbm_to_vmem [thread:$0]  %s7, 2048, %s303, [#allocation7], 64, 64, 4
        $region36: #{tpu_custom_call.1} parent=11 // pred_fallthru
          _
        // Predicated region
        $region37: #{tpu_custom_call.1} parent=11 // pred_check
          %p309 = pneg %p220
        $region38: #{tpu_custom_call.1} parent=11 // pred_check_branch
          %311 = sbr.rel (%p309) target = $region40
        $region39: #{tpu_custom_call.1} parent=11 // pred_region
          _
        $region40: #{tpu_custom_call.1} parent=11 // pred_fallthru
          _
      $region12: #{tpu_custom_call.1} parent=5 // pred_fallthru
        _
      %p312 = scmp.lt.s32.totalorder %s21, 4
      // Predicated region
      $region41: #{tpu_custom_call.1} parent=5 // pred_check
        %p313 = pneg %p312
      $region42: #{tpu_custom_call.1} parent=5 // pred_check_branch
        %315 = sbr.rel (%p313) target = $region44
      $region43: #{tpu_custom_call.1} parent=5 // pred_region
        // Predicated region
        $region45: #{tpu_custom_call.1} parent=43 // pred_check
          %p316 = pneg %p62
        $region46: #{tpu_custom_call.1} parent=43 // pred_check_branch
          %318 = sbr.rel (%p316) target = $region48
        $region47: #{tpu_custom_call.1} parent=43 // pred_region
          %s319 = smul.u32 16, %s21
          %p320 = scmp.lt.s32.totalorder %s319, 63
          %s321 = scalar_select %p320, %s319, 63
          %s322 = smul.addr %s321, 8
          %s323 = scalar_lea.vmem %s1, %s322
          %s324 = smul.u32 16, %s21
        $region48: #{tpu_custom_call.1} parent=43 // pred_fallthru
          _
        // Predicated region
        $region49: #{tpu_custom_call.1} parent=43 // pred_check
          %p325 = pneg %p88
        $region50: #{tpu_custom_call.1} parent=43 // pred_check_branch
          %327 = sbr.rel (%p325) target = $region52
        $region51: #{tpu_custom_call.1} parent=43 // pred_region
          %s328 = smul.u32 16, %s21
          %p329 = scmp.lt.s32.totalorder %s328, 63
          %s330 = scalar_select %p329, %s328, 63
          %s331 = smul.addr %s330, 8
          %s332 = scalar_lea.vmem %s2, %s331
          %s333 = smul.u32 16, %s21
        $region52: #{tpu_custom_call.1} parent=43 // pred_fallthru
          _
      $region44: #{tpu_custom_call.1} parent=5 // pred_fallthru
        _
      %p334 = scmp.le.s32.totalorder 1, %s21
      %p335 = scmp.lt.s32.totalorder %s21, 5
      %p336 = pnand %p334, %p335
      %p337 = pneg %p336
      // Predicated region
      $region53: #{tpu_custom_call.1} parent=5 // pred_check
        _
      $region54: #{tpu_custom_call.1} parent=5 // pred_check_branch
        %339 = sbr.rel (%p336) target = $region56
      $region55: #{tpu_custom_call.1} parent=5 // pred_region
        %s340 = ssub.s32 %s21, 1
        // Predicated region
        $region57: #{tpu_custom_call.1} parent=55 // pred_check
          %p341 = pneg %p115
        $region58: #{tpu_custom_call.1} parent=55 // pred_check_branch
          %343 = sbr.rel (%p341) target = $region60
        $region59: #{tpu_custom_call.1} parent=55 // pred_region
          %344 = dma.done [#allocation4], 2048
        $region60: #{tpu_custom_call.1} parent=55 // pred_fallthru
          _
        // Predicated region
        $region61: #{tpu_custom_call.1} parent=55 // pred_check
          %p345 = pneg %p136
        $region62: #{tpu_custom_call.1} parent=55 // pred_check_branch
          %347 = sbr.rel (%p345) target = $region64
        $region63: #{tpu_custom_call.1} parent=55 // pred_region
          %348 = dma.done [#allocation7], 2048
        $region64: #{tpu_custom_call.1} parent=55 // pred_fallthru
          _
        // Predicated region
        $region65: #{tpu_custom_call.1} parent=55 // pred_check
          %p349 = pneg %p199
        $region66: #{tpu_custom_call.1} parent=55 // pred_check_branch
          %351 = sbr.rel (%p349) target = $region68
        $region67: #{tpu_custom_call.1} parent=55 // pred_region
          %352 = dma.done [#allocation7], 2048
        $region68: #{tpu_custom_call.1} parent=55 // pred_fallthru
          _
        %p353 = pneg %p42
        %p354 = pneg %p39
        %s355 = smul.u32 16, %s26
        %p356 = scmp.lt.s32.totalorder %s355, 63
        %s357 = scalar_select %p356, %s355, 63
        %s358 = smul.addr %s357, 8
        %s359 = scalar_lea.vmem %s1, %s358
        %p360 = pneg %p68
        %p361 = pneg %p65
        %s362 = smul.u32 16, %s26
        %p363 = scmp.lt.s32.totalorder %s362, 63
        %s364 = scalar_select %p363, %s362, 63
        %s365 = smul.addr %s364, 8
        %s366 = scalar_lea.vmem %s2, %s365
        %p367 = pneg %p94
        %p368 = pneg %p91
        %p369 = pneg %p115
        %p370 = pneg %p112
        %p371 = pneg %p136
        %p372 = pneg %p133
        %p373 = pneg %p157
        %p374 = pneg %p154
        %p375 = pneg %p178
        %p376 = pneg %p175
        %p377 = pneg %p199
        %p378 = pneg %p196
        %p379 = pneg %p220
        %p380 = pneg %p217
        %p381 = pneg %p246
        %p382 = pneg %p243
        %s383 = sand.u32 %s233, 1
        %s384 = scalar_lea.sflag [#allocation5], %s383
        %s385 = sand.u32 %s233, 1
        %s386 = smul.addr %s385, 128
        %s387 = scalar_lea.vmem [#allocation9], %s386
        %s388 = smul.u32 16, %s26
        %p389 = scmp.lt.s32.totalorder %s388, 63
        %s390 = scalar_select %p389, %s388, 63
        %s391 = smul.addr %s390, 8
        %s392 = scalar_lea.vmem %s1, %s391
        %s393 = smul.u32 16, %s26
        %s394 = smul.u32 16, %s26
        %p395 = scmp.lt.s32.totalorder %s394, 63
        %s396 = scalar_select %p395, %s394, 63
        %s397 = smul.addr %s396, 8
        %s398 = scalar_lea.vmem %s2, %s397
        %s399 = smul.u32 16, %s26
        %s400 = smul.u32 16, %s26
        %v402 = vlaneseq
        %v403 = vand.u32 %v402, 127
        %v404 = vld [vmem:[%s398] sm:$0xff]
        %v405 = vld [vmem:[%s398 + $0x8] sm:$0xff]
        %v406 = vld [vmem:[%s398 + $0x10] sm:$0xff]
        %v407 = vld [vmem:[%s398 + $0x18] sm:$0xff]
        %v408 = vld [vmem:[%s398 + $0x20] sm:$0xff]
        %v409 = vld [vmem:[%s398 + $0x28] sm:$0xff]
        %v410 = vld [vmem:[%s398 + $0x30] sm:$0xff]
        %v411 = vld [vmem:[%s398 + $0x38] sm:$0xff]
        %v412 = vld [vmem:[%s398 + $0x40] sm:$0xff]
        %v413 = vld [vmem:[%s398 + $0x48] sm:$0xff]
        %v414 = vld [vmem:[%s398 + $0x50] sm:$0xff]
        %v415 = vld [vmem:[%s398 + $0x58] sm:$0xff]
        %v416 = vld [vmem:[%s398 + $0x60] sm:$0xff]
        %v417 = vld [vmem:[%s398 + $0x68] sm:$0xff]
        %v418 = vld [vmem:[%s398 + $0x70] sm:$0xff]
        %v419 = vld [vmem:[%s398 + $0x78] sm:$0xff]
        %420 = vset.pattern.permute.xlu0 0
        %421 = vperm.xlu0 %420, %v404
        %v422 = vpop.permute.xlu0 %421
        %423 = vset.pattern.permute.xlu0 0
        %424 = vperm.xlu0 %423, %v405
        %v425 = vpop.permute.xlu0 %424
        %426 = vset.pattern.permute.xlu0 0
        %427 = vperm.xlu0 %426, %v406
        %v428 = vpop.permute.xlu0 %427
        %429 = vset.pattern.permute.xlu0 0
        %430 = vperm.xlu0 %429, %v407
        %v431 = vpop.permute.xlu0 %430
        %432 = vset.pattern.permute.xlu0 0
        %433 = vperm.xlu0 %432, %v408
        %v434 = vpop.permute.xlu0 %433
        %435 = vset.pattern.permute.xlu0 0
        %436 = vperm.xlu0 %435, %v409
        %v437 = vpop.permute.xlu0 %436
        %438 = vset.pattern.permute.xlu0 0
        %439 = vperm.xlu0 %438, %v410
        %v440 = vpop.permute.xlu0 %439
        %441 = vset.pattern.permute.xlu0 0
        %442 = vperm.xlu0 %441, %v411
        %v443 = vpop.permute.xlu0 %442
        %444 = vset.pattern.permute.xlu0 0
        %445 = vperm.xlu0 %444, %v412
        %v446 = vpop.permute.xlu0 %445
        %447 = vset.pattern.permute.xlu0 0
        %448 = vperm.xlu0 %447, %v413
        %v449 = vpop.permute.xlu0 %448
        %450 = vset.pattern.permute.xlu0 0
        %451 = vperm.xlu0 %450, %v414
        %v452 = vpop.permute.xlu0 %451
        %453 = vset.pattern.permute.xlu0 0
        %454 = vperm.xlu0 %453, %v415
        %v455 = vpop.permute.xlu0 %454
        %456 = vset.pattern.permute.xlu0 0
        %457 = vperm.xlu0 %456, %v416
        %v458 = vpop.permute.xlu0 %457
        %459 = vset.pattern.permute.xlu0 0
        %460 = vperm.xlu0 %459, %v417
        %v461 = vpop.permute.xlu0 %460
        %462 = vset.pattern.permute.xlu0 0
        %463 = vperm.xlu0 %462, %v418
        %v464 = vpop.permute.xlu0 %463
        %465 = vset.pattern.permute.xlu0 0
        %466 = vperm.xlu0 %465, %v419
        %v467 = vpop.permute.xlu0 %466
        %vm468 = vcmp.eq.s32.totalorder %v422, %v403
        %vm469 = vcmp.eq.s32.totalorder %v425, %v403
        %vm470 = vcmp.eq.s32.totalorder %v428, %v403
        %vm471 = vcmp.eq.s32.totalorder %v431, %v403
        %vm472 = vcmp.eq.s32.totalorder %v434, %v403
        %vm473 = vcmp.eq.s32.totalorder %v437, %v403
        %vm474 = vcmp.eq.s32.totalorder %v440, %v403
        %vm475 = vcmp.eq.s32.totalorder %v443, %v403
        %vm476 = vcmp.eq.s32.totalorder %v446, %v403
        %vm477 = vcmp.eq.s32.totalorder %v449, %v403
        %vm478 = vcmp.eq.s32.totalorder %v452, %v403
        %vm479 = vcmp.eq.s32.totalorder %v455, %v403
        %vm480 = vcmp.eq.s32.totalorder %v458, %v403
        %vm481 = vcmp.eq.s32.totalorder %v461, %v403
        %vm482 = vcmp.eq.s32.totalorder %v464, %v403
        %vm483 = vcmp.eq.s32.totalorder %v467, %v403
        %v484 = vsel %vm468, 1, 0
        %v485 = vsel %vm469, 1, 0
        %v486 = vsel %vm470, 1, 0
        %v487 = vsel %vm471, 1, 0
        %v488 = vsel %vm472, 1, 0
        %v489 = vsel %vm473, 1, 0
        %v490 = vsel %vm474, 1, 0
        %v491 = vsel %vm475, 1, 0
        %v492 = vsel %vm476, 1, 0
        %v493 = vsel %vm477, 1, 0
        %v494 = vsel %vm478, 1, 0
        %v495 = vsel %vm479, 1, 0
        %v496 = vsel %vm480, 1, 0
        %v497 = vsel %vm481, 1, 0
        %v498 = vsel %vm482, 1, 0
        %v499 = vsel %vm483, 1, 0
        %v500 = vcvt.s32.f32 %v484
        %v501 = vcvt.s32.f32 %v485
        %v502 = vcvt.s32.f32 %v486
        %v503 = vcvt.s32.f32 %v487
        %v504 = vcvt.s32.f32 %v488
        %v505 = vcvt.s32.f32 %v489
        %v506 = vcvt.s32.f32 %v490
        %v507 = vcvt.s32.f32 %v491
        %v508 = vcvt.s32.f32 %v492
        %v509 = vcvt.s32.f32 %v493
        %v510 = vcvt.s32.f32 %v494
        %v511 = vcvt.s32.f32 %v495
        %v512 = vcvt.s32.f32 %v496
        %v513 = vcvt.s32.f32 %v497
        %v514 = vcvt.s32.f32 %v498
        %v515 = vcvt.s32.f32 %v499
        %v516 = vpack.c.bf16 %v501, %v500
        %v517 = vpack.c.bf16 %v503, %v502
        %v518 = vpack.c.bf16 %v505, %v504
        %v519 = vpack.c.bf16 %v507, %v506
        %v520 = vpack.c.bf16 %v509, %v508
        %v521 = vpack.c.bf16 %v511, %v510
        %v522 = vpack.c.bf16 %v513, %v512
        %v523 = vpack.c.bf16 %v515, %v514
        %v524 = vld [vmem:[#allocation3] sm:$0xff]
        %v525 = vld [vmem:[#allocation3 + $0x8] sm:$0xff]
        %v526 = vld [vmem:[#allocation3 + $0x10] sm:$0xff]
        %v527 = vld [vmem:[#allocation3 + $0x18] sm:$0xff]
        %v528 = vld [vmem:[#allocation3 + $0x20] sm:$0xff]
        %v529 = vld [vmem:[#allocation3 + $0x28] sm:$0xff]
        %v530 = vld [vmem:[#allocation3 + $0x30] sm:$0xff]
        %v531 = vld [vmem:[#allocation3 + $0x38] sm:$0xff]
        %v532 = vld [vmem:[#allocation3 + $0x40] sm:$0xff]
        %v533 = vld [vmem:[#allocation3 + $0x48] sm:$0xff]
        %v534 = vld [vmem:[#allocation3 + $0x50] sm:$0xff]
        %v535 = vld [vmem:[#allocation3 + $0x58] sm:$0xff]
        %v536 = vld [vmem:[#allocation3 + $0x60] sm:$0xff]
        %v537 = vld [vmem:[#allocation3 + $0x68] sm:$0xff]
        %v538 = vld [vmem:[#allocation3 + $0x70] sm:$0xff]
        %v539 = vld [vmem:[#allocation3 + $0x78] sm:$0xff]
        %v556 = vunpack.c.l.b16 %v524
        %v557 = vunpack.c.h.b16 %v524
        %v558 = vunpack.c.l.b16 %v525
        %v559 = vunpack.c.h.b16 %v525
        %v560 = vunpack.c.l.b16 %v526
        %v561 = vunpack.c.h.b16 %v526
        %v562 = vunpack.c.l.b16 %v527
        %v563 = vunpack.c.h.b16 %v527
        %v564 = vunpack.c.l.b16 %v528
        %v565 = vunpack.c.h.b16 %v528
        %v566 = vunpack.c.l.b16 %v529
        %v567 = vunpack.c.h.b16 %v529
        %v568 = vunpack.c.l.b16 %v530
        %v569 = vunpack.c.h.b16 %v530
        %v570 = vunpack.c.l.b16 %v531
        %v571 = vunpack.c.h.b16 %v531
        %v572 = vunpack.c.l.b16 %v532
        %v573 = vunpack.c.h.b16 %v532
        %v574 = vunpack.c.l.b16 %v533
        %v575 = vunpack.c.h.b16 %v533
        %v576 = vunpack.c.l.b16 %v534
        %v577 = vunpack.c.h.b16 %v534
        %v578 = vunpack.c.l.b16 %v535
        %v579 = vunpack.c.h.b16 %v535
        %v580 = vunpack.c.l.b16 %v536
        %v581 = vunpack.c.h.b16 %v536
        %v582 = vunpack.c.l.b16 %v537
        %v583 = vunpack.c.h.b16 %v537
        %v584 = vunpack.c.l.b16 %v538
        %v585 = vunpack.c.h.b16 %v538
        %v586 = vunpack.c.l.b16 %v539
        %v587 = vunpack.c.h.b16 %v539
        %v588 = vpack.c.b16 %v558, %v556
        %v589 = vpack.c.b16 %v559, %v557
        %v590 = vpack.c.b16 %v562, %v560
        %v591 = vpack.c.b16 %v563, %v561
        %v592 = vpack.c.b16 %v566, %v564
        %v593 = vpack.c.b16 %v567, %v565
        %v594 = vpack.c.b16 %v570, %v568
        %v595 = vpack.c.b16 %v571, %v569
        %v596 = vpack.c.b16 %v574, %v572
        %v597 = vpack.c.b16 %v575, %v573
        %v598 = vpack.c.b16 %v578, %v576
        %v599 = vpack.c.b16 %v579, %v577
        %v600 = vpack.c.b16 %v582, %v580
        %v601 = vpack.c.b16 %v583, %v581
        %v602 = vpack.c.b16 %v586, %v584
        %v603 = vpack.c.b16 %v587, %v585
        %620 = vmatprep.subr.bf16.mxu0 %v589
        %621 = vmatpush1.bf16.msra.mxu0 %v588
        %622 = vmatprep.subr.bf16.mxu0 %v591
        %623 = vmatpush1.bf16.msra.mxu0 %v590
        %624 = vmatprep.subr.bf16.mxu0 %v593
        %625 = vmatpush1.bf16.msra.mxu0 %v592
        %626 = vmatprep.subr.bf16.mxu0 %v595
        %627 = vmatpush1.bf16.msra.mxu0 %v594
        %628 = vmatprep.subr.bf16.mxu0 %v597
        %629 = vmatpush1.bf16.msra.mxu0 %v596
        %630 = vmatprep.subr.bf16.mxu0 %v599
        %631 = vmatpush1.bf16.msra.mxu0 %v598
        %632 = vmatprep.subr.bf16.mxu0 %v601
        %633 = vmatpush1.bf16.msra.mxu0 %v600
        %634 = vmatprep.subr.bf16.mxu0 %v603
        %635 = vmatpush1.bf16.msra.mxu0 %v602
        %636 = vmatprep.subr.bf16.mxu0 0
        %637 = vmatpush1.bf16.msra.mxu0 0
        %638 = vmatprep.subr.bf16.mxu0 0
        %639 = vmatpush1.bf16.msra.mxu0 0
        %640 = vmatprep.subr.bf16.mxu0 0
        %641 = vmatpush1.bf16.msra.mxu0 0
        %642 = vmatprep.subr.bf16.mxu0 0
        %643 = vmatpush1.bf16.msra.mxu0 0
        %644 = vmatprep.subr.bf16.mxu0 0
        %645 = vmatpush1.bf16.msra.mxu0 0
        %646 = vmatprep.subr.bf16.mxu0 0
        %647 = vmatpush1.bf16.msra.mxu0 0
        %648 = vmatprep.subr.bf16.mxu0 0
        %649 = vmatpush1.bf16.msra.mxu0 0
        %650 = vmatprep.subr.bf16.mxu0 0
        %651 = vmatpush1.bf16.msra.mxu0 0
        %652 = vmatprep.mubr.bf16.mxu0 0
        %653 = vmatmul.mubr.bf16.gmra.mrb[0].mxu0 %v516
        %v654 = vpop.f32.mrb[0].mxu0
        %v655 = vadd.f32 0.0, %v654
        %v656 = vpop.f32.mrb[0].mxu0
        %v657 = vadd.f32 0.0, %v656
        %v658 = vpop.f32.mrb[0].mxu0
        %v659 = vadd.f32 0.0, %v658
        %v660 = vpop.f32.mrb[0].mxu0
        %v661 = vadd.f32 0.0, %v660
        %662 = vmatprep.mubr.bf16.mxu0 0
        %663 = vmatmul.mubr.bf16.gmra.mrb[0].mxu0 %v517
        %v664 = vpop.f32.mrb[0].mxu0
        %v665 = vadd.f32 0.0, %v664
        %v666 = vpop.f32.mrb[0].mxu0
        %v667 = vadd.f32 0.0, %v666
        %v668 = vpop.f32.mrb[0].mxu0
        %v669 = vadd.f32 0.0, %v668
        %v670 = vpop.f32.mrb[0].mxu0
        %v671 = vadd.f32 0.0, %v670
        %672 = vmatprep.mubr.bf16.mxu0 0
        %673 = vmatmul.mubr.bf16.gmra.mrb[0].mxu0 %v518
        %v674 = vpop.f32.mrb[0].mxu0
        %v675 = vadd.f32 0.0, %v674
        %v676 = vpop.f32.mrb[0].mxu0
        %v677 = vadd.f32 0.0, %v676
        %v678 = vpop.f32.mrb[0].mxu0
        %v679 = vadd.f32 0.0, %v678
        %v680 = vpop.f32.mrb[0].mxu0
        %v681 = vadd.f32 0.0, %v680
        %682 = vmatprep.mubr.bf16.mxu0 0
        %683 = vmatmul.mubr.bf16.gmra.mrb[0].mxu0 %v519
        %v684 = vpop.f32.mrb[0].mxu0
        %v685 = vadd.f32 0.0, %v684
        %v686 = vpop.f32.mrb[0].mxu0
        %v687 = vadd.f32 0.0, %v686
        %v688 = vpop.f32.mrb[0].mxu0
        %v689 = vadd.f32 0.0, %v688
        %v690 = vpop.f32.mrb[0].mxu0
        %v691 = vadd.f32 0.0, %v690
        %692 = vmatprep.mubr.bf16.mxu0 0
        %693 = vmatmul.mubr.bf16.gmra.mrb[0].mxu0 %v520
        %v694 = vpop.f32.mrb[0].mxu0
        %v695 = vadd.f32 0.0, %v694
        %v696 = vpop.f32.mrb[0].mxu0
        %v697 = vadd.f32 0.0, %v696
        %v698 = vpop.f32.mrb[0].mxu0
        %v699 = vadd.f32 0.0, %v698
        %v700 = vpop.f32.mrb[0].mxu0
        %v701 = vadd.f32 0.0, %v700
        %702 = vmatprep.mubr.bf16.mxu0 0
        %703 = vmatmul.mubr.bf16.gmra.mrb[0].mxu0 %v521
        %v704 = vpop.f32.mrb[0].mxu0
        %v705 = vadd.f32 0.0, %v704
        %v706 = vpop.f32.mrb[0].mxu0
        %v707 = vadd.f32 0.0, %v706
        %v708 = vpop.f32.mrb[0].mxu0
        %v709 = vadd.f32 0.0, %v708
        %v710 = vpop.f32.mrb[0].mxu0
        %v711 = vadd.f32 0.0, %v710
        %712 = vmatprep.mubr.bf16.mxu0 0
        %713 = vmatmul.mubr.bf16.gmra.mrb[0].mxu0 %v522
        %v714 = vpop.f32.mrb[0].mxu0
        %v715 = vadd.f32 0.0, %v714
        %v716 = vpop.f32.mrb[0].mxu0
        %v717 = vadd.f32 0.0, %v716
        %v718 = vpop.f32.mrb[0].mxu0
        %v719 = vadd.f32 0.0, %v718
        %v720 = vpop.f32.mrb[0].mxu0
        %v721 = vadd.f32 0.0, %v720
        %722 = vmatprep.mubr.bf16.mxu0 0
        %723 = vmatmul.mubr.bf16.gmra.mrb[0].mxu0 %v523
        %v724 = vpop.f32.mrb[0].mxu0
        %v725 = vadd.f32 0.0, %v724
        %v726 = vpop.f32.mrb[0].mxu0
        %v727 = vadd.f32 0.0, %v726
        %v728 = vpop.f32.mrb[0].mxu0
        %v729 = vadd.f32 0.0, %v728
        %v730 = vpop.f32.mrb[0].mxu0
        %v731 = vadd.f32 0.0, %v730
        %732 = vdwg.mxu0
        %v733 = vld [vmem:[%s392] sm:$0xff]
        %v734 = vld [vmem:[%s392 + $0x8] sm:$0xff]
        %v735 = vld [vmem:[%s392 + $0x10] sm:$0xff]
        %v736 = vld [vmem:[%s392 + $0x18] sm:$0xff]
        %v737 = vld [vmem:[%s392 + $0x20] sm:$0xff]
        %v738 = vld [vmem:[%s392 + $0x28] sm:$0xff]
        %v739 = vld [vmem:[%s392 + $0x30] sm:$0xff]
        %v740 = vld [vmem:[%s392 + $0x38] sm:$0xff]
        %v741 = vld [vmem:[%s392 + $0x40] sm:$0xff]
        %v742 = vld [vmem:[%s392 + $0x48] sm:$0xff]
        %v743 = vld [vmem:[%s392 + $0x50] sm:$0xff]
        %v744 = vld [vmem:[%s392 + $0x58] sm:$0xff]
        %v745 = vld [vmem:[%s392 + $0x60] sm:$0xff]
        %v746 = vld [vmem:[%s392 + $0x68] sm:$0xff]
        %v747 = vld [vmem:[%s392 + $0x70] sm:$0xff]
        %v748 = vld [vmem:[%s392 + $0x78] sm:$0xff]
        %v749 = vpack.c.bf16 %v734, %v733
        %v750 = vpack.c.bf16 %v736, %v735
        %v751 = vpack.c.bf16 %v738, %v737
        %v752 = vpack.c.bf16 %v740, %v739
        %v753 = vpack.c.bf16 %v742, %v741
        %v754 = vpack.c.bf16 %v744, %v743
        %v755 = vpack.c.bf16 %v746, %v745
        %v756 = vpack.c.bf16 %v748, %v747
        %v757 = vld [vmem:[#allocation6] sm:$0xff]
        %v758 = vld [vmem:[#allocation6 + $0x8] sm:$0xff]
        %v759 = vld [vmem:[#allocation6 + $0x10] sm:$0xff]
        %v760 = vld [vmem:[#allocation6 + $0x18] sm:$0xff]
        %v761 = vld [vmem:[#allocation6 + $0x20] sm:$0xff]
        %v762 = vld [vmem:[#allocation6 + $0x28] sm:$0xff]
        %v763 = vld [vmem:[#allocation6 + $0x30] sm:$0xff]
        %v764 = vld [vmem:[#allocation6 + $0x38] sm:$0xff]
        %v765 = vld [vmem:[#allocation6 + $0x40] sm:$0xff]
        %v766 = vld [vmem:[#allocation6 + $0x48] sm:$0xff]
        %v767 = vld [vmem:[#allocation6 + $0x50] sm:$0xff]
        %v768 = vld [vmem:[#allocation6 + $0x58] sm:$0xff]
        %v769 = vld [vmem:[#allocation6 + $0x60] sm:$0xff]
        %v770 = vld [vmem:[#allocation6 + $0x68] sm:$0xff]
        %v771 = vld [vmem:[#allocation6 + $0x70] sm:$0xff]
        %v772 = vld [vmem:[#allocation6 + $0x78] sm:$0xff]
        %v789 = vunpack.c.l.b16 %v757
        %v790 = vunpack.c.h.b16 %v757
        %v791 = vunpack.c.l.b16 %v758
        %v792 = vunpack.c.h.b16 %v758
        %v793 = vunpack.c.l.b16 %v759
        %v794 = vunpack.c.h.b16 %v759
        %v795 = vunpack.c.l.b16 %v760
        %v796 = vunpack.c.h.b16 %v760
        %v797 = vunpack.c.l.b16 %v761
        %v798 = vunpack.c.h.b16 %v761
        %v799 = vunpack.c.l.b16 %v762
        %v800 = vunpack.c.h.b16 %v762
        %v801 = vunpack.c.l.b16 %v763
        %v802 = vunpack.c.h.b16 %v763
        %v803 = vunpack.c.l.b16 %v764
        %v804 = vunpack.c.h.b16 %v764
        %v805 = vunpack.c.l.b16 %v765
        %v806 = vunpack.c.h.b16 %v765
        %v807 = vunpack.c.l.b16 %v766
        %v808 = vunpack.c.h.b16 %v766
        %v809 = vunpack.c.l.b16 %v767
        %v810 = vunpack.c.h.b16 %v767
        %v811 = vunpack.c.l.b16 %v768
        %v812 = vunpack.c.h.b16 %v768
        %v813 = vunpack.c.l.b16 %v769
        %v814 = vunpack.c.h.b16 %v769
        %v815 = vunpack.c.l.b16 %v770
        %v816 = vunpack.c.h.b16 %v770
        %v817 = vunpack.c.l.b16 %v771
        %v818 = vunpack.c.h.b16 %v771
        %v819 = vunpack.c.l.b16 %v772
        %v820 = vunpack.c.h.b16 %v772
        %v821 = vpack.c.b16 %v791, %v789
        %v822 = vpack.c.b16 %v792, %v790
        %v823 = vpack.c.b16 %v795, %v793
        %v824 = vpack.c.b16 %v796, %v794
        %v825 = vpack.c.b16 %v799, %v797
        %v826 = vpack.c.b16 %v800, %v798
        %v827 = vpack.c.b16 %v803, %v801
        %v828 = vpack.c.b16 %v804, %v802
        %v829 = vpack.c.b16 %v807, %v805
        %v830 = vpack.c.b16 %v808, %v806
        %v831 = vpack.c.b16 %v811, %v809
        %v832 = vpack.c.b16 %v812, %v810
        %v833 = vpack.c.b16 %v815, %v813
        %v834 = vpack.c.b16 %v816, %v814
        %v835 = vpack.c.b16 %v819, %v817
        %v836 = vpack.c.b16 %v820, %v818
        %853 = vmatprep.subr.bf16.mxu0 %v822
        %854 = vmatpush1.bf16.msra.mxu0 %v821
        %855 = vmatprep.subr.bf16.mxu0 %v824
        %856 = vmatpush1.bf16.msra.mxu0 %v823
        %857 = vmatprep.subr.bf16.mxu0 %v826
        %858 = vmatpush1.bf16.msra.mxu0 %v825
        %859 = vmatprep.subr.bf16.mxu0 %v828
        %860 = vmatpush1.bf16.msra.mxu0 %v827
        %861 = vmatprep.subr.bf16.mxu0 %v830
        %862 = vmatpush1.bf16.msra.mxu0 %v829
        %863 = vmatprep.subr.bf16.mxu0 %v832
        %864 = vmatpush1.bf16.msra.mxu0 %v831
        %865 = vmatprep.subr.bf16.mxu0 %v834
        %866 = vmatpush1.bf16.msra.mxu0 %v833
        %867 = vmatprep.subr.bf16.mxu0 %v836
        %868 = vmatpush1.bf16.msra.mxu0 %v835
        %869 = vmatprep.subr.bf16.mxu0 0
        %870 = vmatpush1.bf16.msra.mxu0 0
        %871 = vmatprep.subr.bf16.mxu0 0
        %872 = vmatpush1.bf16.msra.mxu0 0
        %873 = vmatprep.subr.bf16.mxu0 0
        %874 = vmatpush1.bf16.msra.mxu0 0
        %875 = vmatprep.subr.bf16.mxu0 0
        %876 = vmatpush1.bf16.msra.mxu0 0
        %877 = vmatprep.subr.bf16.mxu0 0
        %878 = vmatpush1.bf16.msra.mxu0 0
        %879 = vmatprep.subr.bf16.mxu0 0
        %880 = vmatpush1.bf16.msra.mxu0 0
        %881 = vmatprep.subr.bf16.mxu0 0
        %882 = vmatpush1.bf16.msra.mxu0 0
        %883 = vmatprep.subr.bf16.mxu0 0
        %884 = vmatpush1.bf16.msra.mxu0 0
        %885 = vmatprep.mubr.bf16.mxu0 0
        %886 = vmatmul.mubr.bf16.gmra.mrb[0].mxu0 %v749
        %v887 = vpop.f32.mrb[0].mxu0
        %v888 = vadd.f32 %v655, %v887
        %v889 = vpop.f32.mrb[0].mxu0
        %v890 = vadd.f32 %v657, %v889
        %v891 = vpop.f32.mrb[0].mxu0
        %v892 = vadd.f32 %v659, %v891
        %v893 = vpop.f32.mrb[0].mxu0
        %v894 = vadd.f32 %v661, %v893
        %895 = vmatprep.mubr.bf16.mxu0 0
        %896 = vmatmul.mubr.bf16.gmra.mrb[0].mxu0 %v750
        %v897 = vpop.f32.mrb[0].mxu0
        %v898 = vadd.f32 %v665, %v897
        %v899 = vpop.f32.mrb[0].mxu0
        %v900 = vadd.f32 %v667, %v899
        %v901 = vpop.f32.mrb[0].mxu0
        %v902 = vadd.f32 %v669, %v901
        %v903 = vpop.f32.mrb[0].mxu0
        %v904 = vadd.f32 %v671, %v903
        %905 = vmatprep.mubr.bf16.mxu0 0
        %906 = vmatmul.mubr.bf16.gmra.mrb[0].mxu0 %v751
        %v907 = vpop.f32.mrb[0].mxu0
        %v908 = vadd.f32 %v675, %v907
        %v909 = vpop.f32.mrb[0].mxu0
        %v910 = vadd.f32 %v677, %v909
        %v911 = vpop.f32.mrb[0].mxu0
        %v912 = vadd.f32 %v679, %v911
        %v913 = vpop.f32.mrb[0].mxu0
        %v914 = vadd.f32 %v681, %v913
        %915 = vmatprep.mubr.bf16.mxu0 0
        %916 = vmatmul.mubr.bf16.gmra.mrb[0].mxu0 %v752
        %v917 = vpop.f32.mrb[0].mxu0
        %v918 = vadd.f32 %v685, %v917
        %v919 = vpop.f32.mrb[0].mxu0
        %v920 = vadd.f32 %v687, %v919
        %v921 = vpop.f32.mrb[0].mxu0
        %v922 = vadd.f32 %v689, %v921
        %v923 = vpop.f32.mrb[0].mxu0
        %v924 = vadd.f32 %v691, %v923
        %925 = vmatprep.mubr.bf16.mxu0 0
        %926 = vmatmul.mubr.bf16.gmra.mrb[0].mxu0 %v753
        %v927 = vpop.f32.mrb[0].mxu0
        %v928 = vadd.f32 %v695, %v927
        %v929 = vpop.f32.mrb[0].mxu0
        %v930 = vadd.f32 %v697, %v929
        %v931 = vpop.f32.mrb[0].mxu0
        %v932 = vadd.f32 %v699, %v931
        %v933 = vpop.f32.mrb[0].mxu0
        %v934 = vadd.f32 %v701, %v933
        %935 = vmatprep.mubr.bf16.mxu0 0
        %936 = vmatmul.mubr.bf16.gmra.mrb[0].mxu0 %v754
        %v937 = vpop.f32.mrb[0].mxu0
        %v938 = vadd.f32 %v705, %v937
        %v939 = vpop.f32.mrb[0].mxu0
        %v940 = vadd.f32 %v707, %v939
        %v941 = vpop.f32.mrb[0].mxu0
        %v942 = vadd.f32 %v709, %v941
        %v943 = vpop.f32.mrb[0].mxu0
        %v944 = vadd.f32 %v711, %v943
        %945 = vmatprep.mubr.bf16.mxu0 0
        %946 = vmatmul.mubr.bf16.gmra.mrb[0].mxu0 %v755
        %v947 = vpop.f32.mrb[0].mxu0
        %v948 = vadd.f32 %v715, %v947
        %v949 = vpop.f32.mrb[0].mxu0
        %v950 = vadd.f32 %v717, %v949
        %v951 = vpop.f32.mrb[0].mxu0
        %v952 = vadd.f32 %v719, %v951
        %v953 = vpop.f32.mrb[0].mxu0
        %v954 = vadd.f32 %v721, %v953
        %955 = vmatprep.mubr.bf16.mxu0 0
        %956 = vmatmul.mubr.bf16.gmra.mrb[0].mxu0 %v756
        %v957 = vpop.f32.mrb[0].mxu0
        %v958 = vadd.f32 %v725, %v957
        %v959 = vpop.f32.mrb[0].mxu0
        %v960 = vadd.f32 %v727, %v959
        %v961 = vpop.f32.mrb[0].mxu0
        %v962 = vadd.f32 %v729, %v961
        %v963 = vpop.f32.mrb[0].mxu0
        %v964 = vadd.f32 %v731, %v963
        %965 = vdwg.mxu0
        %s966 = sld [smem:[#allocation2]]
        %v967 = vld [vmem:[%s6] sm:$0x3]
        %v968 = vstv %s966
        %v969 = vmul.f32 %v968, %v967
        %v970 = vld [vmem:[%s5] sm:$0x3]
        %v971 = vadd.f32 %v969, %v970
        %v973 = vlaneseq
        %v974 = vshrl.u32 %v973, 7
        %v975 = vsub.s32 0, %v974
        %v976 = vrot.slane %v971, %v975
        %v977 = vlaneseq
        %v978 = vshrl.u32 %v977, 7
        %v979 = vsub.s32 1, %v978
        %v980 = vrot.slane %v971, %v979
        %v983 = vadd.f32 %v888, %v976
        %v984 = vadd.f32 %v890, %v980
        %v985 = vadd.f32 %v892, %v976
        %v986 = vadd.f32 %v894, %v980
        %v987 = vadd.f32 %v898, %v976
        %v988 = vadd.f32 %v900, %v980
        %v989 = vadd.f32 %v902, %v976
        %v990 = vadd.f32 %v904, %v980
        %v991 = vadd.f32 %v908, %v976
        %v992 = vadd.f32 %v910, %v980
        %v993 = vadd.f32 %v912, %v976
        %v994 = vadd.f32 %v914, %v980
        %v995 = vadd.f32 %v918, %v976
        %v996 = vadd.f32 %v920, %v980
        %v997 = vadd.f32 %v922, %v976
        %v998 = vadd.f32 %v924, %v980
        %v999 = vadd.f32 %v928, %v976
        %v1000 = vadd.f32 %v930, %v980
        %v1001 = vadd.f32 %v932, %v976
        %v1002 = vadd.f32 %v934, %v980
        %v1003 = vadd.f32 %v938, %v976
        %v1004 = vadd.f32 %v940, %v980
        %v1005 = vadd.f32 %v942, %v976
        %v1006 = vadd.f32 %v944, %v980
        %v1007 = vadd.f32 %v948, %v976
        %v1008 = vadd.f32 %v950, %v980
        %v1009 = vadd.f32 %v952, %v976
        %v1010 = vadd.f32 %v954, %v980
        %v1011 = vadd.f32 %v958, %v976
        %v1012 = vadd.f32 %v960, %v980
        %v1013 = vadd.f32 %v962, %v976
        %v1014 = vadd.f32 %v964, %v980
        %v1015 = vmul.f32 %v983, %v983
        %v1016 = vmul.f32 %v984, %v984
        %v1017 = vmul.f32 %v985, %v985
        %v1018 = vmul.f32 %v986, %v986
        %v1019 = vmul.f32 %v987, %v987
        %v1020 = vmul.f32 %v988, %v988
        %v1021 = vmul.f32 %v989, %v989
        %v1022 = vmul.f32 %v990, %v990
        %v1023 = vmul.f32 %v991, %v991
        %v1024 = vmul.f32 %v992, %v992
        %v1025 = vmul.f32 %v993, %v993
        %v1026 = vmul.f32 %v994, %v994
        %v1027 = vmul.f32 %v995, %v995
        %v1028 = vmul.f32 %v996, %v996
        %v1029 = vmul.f32 %v997, %v997
        %v1030 = vmul.f32 %v998, %v998
        %v1031 = vmul.f32 %v999, %v999
        %v1032 = vmul.f32 %v1000, %v1000
        %v1033 = vmul.f32 %v1001, %v1001
        %v1034 = vmul.f32 %v1002, %v1002
        %v1035 = vmul.f32 %v1003, %v1003
        %v1036 = vmul.f32 %v1004, %v1004
        %v1037 = vmul.f32 %v1005, %v1005
        %v1038 = vmul.f32 %v1006, %v1006
        %v1039 = vmul.f32 %v1007, %v1007
        %v1040 = vmul.f32 %v1008, %v1008
        %v1041 = vmul.f32 %v1009, %v1009
        %v1042 = vmul.f32 %v1010, %v1010
        %v1043 = vmul.f32 %v1011, %v1011
        %v1044 = vmul.f32 %v1012, %v1012
        %v1045 = vmul.f32 %v1013, %v1013
        %v1046 = vmul.f32 %v1014, %v1014
        %v1047 = vmul.f32 %v983, %v1015
        %v1048 = vmul.f32 %v984, %v1016
        %v1049 = vmul.f32 %v985, %v1017
        %v1050 = vmul.f32 %v986, %v1018
        %v1051 = vmul.f32 %v987, %v1019
        %v1052 = vmul.f32 %v988, %v1020
        %v1053 = vmul.f32 %v989, %v1021
        %v1054 = vmul.f32 %v990, %v1022
        %v1055 = vmul.f32 %v991, %v1023
        %v1056 = vmul.f32 %v992, %v1024
        %v1057 = vmul.f32 %v993, %v1025
        %v1058 = vmul.f32 %v994, %v1026
        %v1059 = vmul.f32 %v995, %v1027
        %v1060 = vmul.f32 %v996, %v1028
        %v1061 = vmul.f32 %v997, %v1029
        %v1062 = vmul.f32 %v998, %v1030
        %v1063 = vmul.f32 %v999, %v1031
        %v1064 = vmul.f32 %v1000, %v1032
        %v1065 = vmul.f32 %v1001, %v1033
        %v1066 = vmul.f32 %v1002, %v1034
        %v1067 = vmul.f32 %v1003, %v1035
        %v1068 = vmul.f32 %v1004, %v1036
        %v1069 = vmul.f32 %v1005, %v1037
        %v1070 = vmul.f32 %v1006, %v1038
        %v1071 = vmul.f32 %v1007, %v1039
        %v1072 = vmul.f32 %v1008, %v1040
        %v1073 = vmul.f32 %v1009, %v1041
        %v1074 = vmul.f32 %v1010, %v1042
        %v1075 = vmul.f32 %v1011, %v1043
        %v1076 = vmul.f32 %v1012, %v1044
        %v1077 = vmul.f32 %v1013, %v1045
        %v1078 = vmul.f32 %v1014, %v1046
        %v1079 = vmul.f32 %v1047, 0.044715
        %v1080 = vmul.f32 %v1048, 0.044715
        %v1081 = vmul.f32 %v1049, 0.044715
        %v1082 = vmul.f32 %v1050, 0.044715
        %v1083 = vmul.f32 %v1051, 0.044715
        %v1084 = vmul.f32 %v1052, 0.044715
        %v1085 = vmul.f32 %v1053, 0.044715
        %v1086 = vmul.f32 %v1054, 0.044715
        %v1087 = vmul.f32 %v1055, 0.044715
        %v1088 = vmul.f32 %v1056, 0.044715
        %v1089 = vmul.f32 %v1057, 0.044715
        %v1090 = vmul.f32 %v1058, 0.044715
        %v1091 = vmul.f32 %v1059, 0.044715
        %v1092 = vmul.f32 %v1060, 0.044715
        %v1093 = vmul.f32 %v1061, 0.044715
        %v1094 = vmul.f32 %v1062, 0.044715
        %v1095 = vmul.f32 %v1063, 0.044715
        %v1096 = vmul.f32 %v1064, 0.044715
        %v1097 = vmul.f32 %v1065, 0.044715
        %v1098 = vmul.f32 %v1066, 0.044715
        %v1099 = vmul.f32 %v1067, 0.044715
        %v1100 = vmul.f32 %v1068, 0.044715
        %v1101 = vmul.f32 %v1069, 0.044715
        %v1102 = vmul.f32 %v1070, 0.044715
        %v1103 = vmul.f32 %v1071, 0.044715
        %v1104 = vmul.f32 %v1072, 0.044715
        %v1105 = vmul.f32 %v1073, 0.044715
        %v1106 = vmul.f32 %v1074, 0.044715
        %v1107 = vmul.f32 %v1075, 0.044715
        %v1108 = vmul.f32 %v1076, 0.044715
        %v1109 = vmul.f32 %v1077, 0.044715
        %v1110 = vmul.f32 %v1078, 0.044715
        %v1111 = vadd.f32 %v983, %v1079
        %v1112 = vadd.f32 %v984, %v1080
        %v1113 = vadd.f32 %v985, %v1081
        %v1114 = vadd.f32 %v986, %v1082
        %v1115 = vadd.f32 %v987, %v1083
        %v1116 = vadd.f32 %v988, %v1084
        %v1117 = vadd.f32 %v989, %v1085
        %v1118 = vadd.f32 %v990, %v1086
        %v1119 = vadd.f32 %v991, %v1087
        %v1120 = vadd.f32 %v992, %v1088
        %v1121 = vadd.f32 %v993, %v1089
        %v1122 = vadd.f32 %v994, %v1090
        %v1123 = vadd.f32 %v995, %v1091
        %v1124 = vadd.f32 %v996, %v1092
        %v1125 = vadd.f32 %v997, %v1093
        %v1126 = vadd.f32 %v998, %v1094
        %v1127 = vadd.f32 %v999, %v1095
        %v1128 = vadd.f32 %v1000, %v1096
        %v1129 = vadd.f32 %v1001, %v1097
        %v1130 = vadd.f32 %v1002, %v1098
        %v1131 = vadd.f32 %v1003, %v1099
        %v1132 = vadd.f32 %v1004, %v1100
        %v1133 = vadd.f32 %v1005, %v1101
        %v1134 = vadd.f32 %v1006, %v1102
        %v1135 = vadd.f32 %v1007, %v1103
        %v1136 = vadd.f32 %v1008, %v1104
        %v1137 = vadd.f32 %v1009, %v1105
        %v1138 = vadd.f32 %v1010, %v1106
        %v1139 = vadd.f32 %v1011, %v1107
        %v1140 = vadd.f32 %v1012, %v1108
        %v1141 = vadd.f32 %v1013, %v1109
        %v1142 = vadd.f32 %v1014, %v1110
        %v1143 = vmul.f32 %v1111, 0.7978846
        %v1144 = vmul.f32 %v1112, 0.7978846
        %v1145 = vmul.f32 %v1113, 0.7978846
        %v1146 = vmul.f32 %v1114, 0.7978846
        %v1147 = vmul.f32 %v1115, 0.7978846
        %v1148 = vmul.f32 %v1116, 0.7978846
        %v1149 = vmul.f32 %v1117, 0.7978846
        %v1150 = vmul.f32 %v1118, 0.7978846
        %v1151 = vmul.f32 %v1119, 0.7978846
        %v1152 = vmul.f32 %v1120, 0.7978846
        %v1153 = vmul.f32 %v1121, 0.7978846
        %v1154 = vmul.f32 %v1122, 0.7978846
        %v1155 = vmul.f32 %v1123, 0.7978846
        %v1156 = vmul.f32 %v1124, 0.7978846
        %v1157 = vmul.f32 %v1125, 0.7978846
        %v1158 = vmul.f32 %v1126, 0.7978846
        %v1159 = vmul.f32 %v1127, 0.7978846
        %v1160 = vmul.f32 %v1128, 0.7978846
        %v1161 = vmul.f32 %v1129, 0.7978846
        %v1162 = vmul.f32 %v1130, 0.7978846
        %v1163 = vmul.f32 %v1131, 0.7978846
        %v1164 = vmul.f32 %v1132, 0.7978846
        %v1165 = vmul.f32 %v1133, 0.7978846
        %v1166 = vmul.f32 %v1134, 0.7978846
        %v1167 = vmul.f32 %v1135, 0.7978846
        %v1168 = vmul.f32 %v1136, 0.7978846
        %v1169 = vmul.f32 %v1137, 0.7978846
        %v1170 = vmul.f32 %v1138, 0.7978846
        %v1171 = vmul.f32 %v1139, 0.7978846
        %v1172 = vmul.f32 %v1140, 0.7978846
        %v1173 = vmul.f32 %v1141, 0.7978846
        %v1174 = vmul.f32 %v1142, 0.7978846
        %v1175 = vtanh.pop %v1143
        %v1176 = vtanh.pop %v1144
        %v1177 = vtanh.pop %v1145
        %v1178 = vtanh.pop %v1146
        %v1179 = vtanh.pop %v1147
        %v1180 = vtanh.pop %v1148
        %v1181 = vtanh.pop %v1149
        %v1182 = vtanh.pop %v1150
        %v1183 = vtanh.pop %v1151
        %v1184 = vtanh.pop %v1152
        %v1185 = vtanh.pop %v1153
        %v1186 = vtanh.pop %v1154
        %v1187 = vtanh.pop %v1155
        %v1188 = vtanh.pop %v1156
        %v1189 = vtanh.pop %v1157
        %v1190 = vtanh.pop %v1158
        %v1191 = vtanh.pop %v1159
        %v1192 = vtanh.pop %v1160
        %v1193 = vtanh.pop %v1161
        %v1194 = vtanh.pop %v1162
        %v1195 = vtanh.pop %v1163
        %v1196 = vtanh.pop %v1164
        %v1197 = vtanh.pop %v1165
        %v1198 = vtanh.pop %v1166
        %v1199 = vtanh.pop %v1167
        %v1200 = vtanh.pop %v1168
        %v1201 = vtanh.pop %v1169
        %v1202 = vtanh.pop %v1170
        %v1203 = vtanh.pop %v1171
        %v1204 = vtanh.pop %v1172
        %v1205 = vtanh.pop %v1173
        %v1206 = vtanh.pop %v1174
        %v1207 = vadd.f32 %v1175, 1.0
        %v1208 = vadd.f32 %v1176, 1.0
        %v1209 = vadd.f32 %v1177, 1.0
        %v1210 = vadd.f32 %v1178, 1.0
        %v1211 = vadd.f32 %v1179, 1.0
        %v1212 = vadd.f32 %v1180, 1.0
        %v1213 = vadd.f32 %v1181, 1.0
        %v1214 = vadd.f32 %v1182, 1.0
        %v1215 = vadd.f32 %v1183, 1.0
        %v1216 = vadd.f32 %v1184, 1.0
        %v1217 = vadd.f32 %v1185, 1.0
        %v1218 = vadd.f32 %v1186, 1.0
        %v1219 = vadd.f32 %v1187, 1.0
        %v1220 = vadd.f32 %v1188, 1.0
        %v1221 = vadd.f32 %v1189, 1.0
        %v1222 = vadd.f32 %v1190, 1.0
        %v1223 = vadd.f32 %v1191, 1.0
        %v1224 = vadd.f32 %v1192, 1.0
        %v1225 = vadd.f32 %v1193, 1.0
        %v1226 = vadd.f32 %v1194, 1.0
        %v1227 = vadd.f32 %v1195, 1.0
        %v1228 = vadd.f32 %v1196, 1.0
        %v1229 = vadd.f32 %v1197, 1.0
        %v1230 = vadd.f32 %v1198, 1.0
        %v1231 = vadd.f32 %v1199, 1.0
        %v1232 = vadd.f32 %v1200, 1.0
        %v1233 = vadd.f32 %v1201, 1.0
        %v1234 = vadd.f32 %v1202, 1.0
        %v1235 = vadd.f32 %v1203, 1.0
        %v1236 = vadd.f32 %v1204, 1.0
        %v1237 = vadd.f32 %v1205, 1.0
        %v1238 = vadd.f32 %v1206, 1.0
        %v1239 = vmul.f32 %v1207, 0.5
        %v1240 = vmul.f32 %v1208, 0.5
        %v1241 = vmul.f32 %v1209, 0.5
        %v1242 = vmul.f32 %v1210, 0.5
        %v1243 = vmul.f32 %v1211, 0.5
        %v1244 = vmul.f32 %v1212, 0.5
        %v1245 = vmul.f32 %v1213, 0.5
        %v1246 = vmul.f32 %v1214, 0.5
        %v1247 = vmul.f32 %v1215, 0.5
        %v1248 = vmul.f32 %v1216, 0.5
        %v1249 = vmul.f32 %v1217, 0.5
        %v1250 = vmul.f32 %v1218, 0.5
        %v1251 = vmul.f32 %v1219, 0.5
        %v1252 = vmul.f32 %v1220, 0.5
        %v1253 = vmul.f32 %v1221, 0.5
        %v1254 = vmul.f32 %v1222, 0.5
        %v1255 = vmul.f32 %v1223, 0.5
        %v1256 = vmul.f32 %v1224, 0.5
        %v1257 = vmul.f32 %v1225, 0.5
        %v1258 = vmul.f32 %v1226, 0.5
        %v1259 = vmul.f32 %v1227, 0.5
        %v1260 = vmul.f32 %v1228, 0.5
        %v1261 = vmul.f32 %v1229, 0.5
        %v1262 = vmul.f32 %v1230, 0.5
        %v1263 = vmul.f32 %v1231, 0.5
        %v1264 = vmul.f32 %v1232, 0.5
        %v1265 = vmul.f32 %v1233, 0.5
        %v1266 = vmul.f32 %v1234, 0.5
        %v1267 = vmul.f32 %v1235, 0.5
        %v1268 = vmul.f32 %v1236, 0.5
        %v1269 = vmul.f32 %v1237, 0.5
        %v1270 = vmul.f32 %v1238, 0.5
        %v1271 = vmul.f32 %v983, %v1239
        %v1272 = vmul.f32 %v984, %v1240
        %v1273 = vmul.f32 %v985, %v1241
        %v1274 = vmul.f32 %v986, %v1242
        %v1275 = vmul.f32 %v987, %v1243
        %v1276 = vmul.f32 %v988, %v1244
        %v1277 = vmul.f32 %v989, %v1245
        %v1278 = vmul.f32 %v990, %v1246
        %v1279 = vmul.f32 %v991, %v1247
        %v1280 = vmul.f32 %v992, %v1248
        %v1281 = vmul.f32 %v993, %v1249
        %v1282 = vmul.f32 %v994, %v1250
        %v1283 = vmul.f32 %v995, %v1251
        %v1284 = vmul.f32 %v996, %v1252
        %v1285 = vmul.f32 %v997, %v1253
        %v1286 = vmul.f32 %v998, %v1254
        %v1287 = vmul.f32 %v999, %v1255
        %v1288 = vmul.f32 %v1000, %v1256
        %v1289 = vmul.f32 %v1001, %v1257
        %v1290 = vmul.f32 %v1002, %v1258
        %v1291 = vmul.f32 %v1003, %v1259
        %v1292 = vmul.f32 %v1004, %v1260
        %v1293 = vmul.f32 %v1005, %v1261
        %v1294 = vmul.f32 %v1006, %v1262
        %v1295 = vmul.f32 %v1007, %v1263
        %v1296 = vmul.f32 %v1008, %v1264
        %v1297 = vmul.f32 %v1009, %v1265
        %v1298 = vmul.f32 %v1010, %v1266
        %v1299 = vmul.f32 %v1011, %v1267
        %v1300 = vmul.f32 %v1012, %v1268
        %v1301 = vmul.f32 %v1013, %v1269
        %v1302 = vmul.f32 %v1014, %v1270
        %v1303 = vpack.c.bf16 %v1273, %v1271
        %v1304 = vpack.c.bf16 %v1274, %v1272
        %v1305 = vpack.c.bf16 %v1277, %v1275
        %v1306 = vpack.c.bf16 %v1278, %v1276
        %v1307 = vpack.c.bf16 %v1281, %v1279
        %v1308 = vpack.c.bf16 %v1282, %v1280
        %v1309 = vpack.c.bf16 %v1285, %v1283
        %v1310 = vpack.c.bf16 %v1286, %v1284
        %v1311 = vpack.c.bf16 %v1289, %v1287
        %v1312 = vpack.c.bf16 %v1290, %v1288
        %v1313 = vpack.c.bf16 %v1293, %v1291
        %v1314 = vpack.c.bf16 %v1294, %v1292
        %v1315 = vpack.c.bf16 %v1297, %v1295
        %v1316 = vpack.c.bf16 %v1298, %v1296
        %v1317 = vpack.c.bf16 %v1301, %v1299
        %v1318 = vpack.c.bf16 %v1302, %v1300
        %v1319 = vld [vmem:[#allocation8] sm:$0xf]
        %v1320 = vld [vmem:[#allocation8 + $0x4] sm:$0xf]
        %v1321 = vld [vmem:[#allocation8 + $0x8] sm:$0xf]
        %v1322 = vld [vmem:[#allocation8 + $0xc] sm:$0xf]
        %v1323 = vld [vmem:[#allocation8 + $0x10] sm:$0xf]
        %v1324 = vld [vmem:[#allocation8 + $0x14] sm:$0xf]
        %v1325 = vld [vmem:[#allocation8 + $0x18] sm:$0xf]
        %v1326 = vld [vmem:[#allocation8 + $0x1c] sm:$0xf]
        %v1327 = vld [vmem:[#allocation8 + $0x20] sm:$0xf]
        %v1328 = vld [vmem:[#allocation8 + $0x24] sm:$0xf]
        %v1329 = vld [vmem:[#allocation8 + $0x28] sm:$0xf]
        %v1330 = vld [vmem:[#allocation8 + $0x2c] sm:$0xf]
        %v1331 = vld [vmem:[#allocation8 + $0x30] sm:$0xf]
        %v1332 = vld [vmem:[#allocation8 + $0x34] sm:$0xf]
        %v1333 = vld [vmem:[#allocation8 + $0x38] sm:$0xf]
        %v1334 = vld [vmem:[#allocation8 + $0x3c] sm:$0xf]
        %v1335 = vld [vmem:[#allocation8 + $0x40] sm:$0xf]
        %v1336 = vld [vmem:[#allocation8 + $0x44] sm:$0xf]
        %v1337 = vld [vmem:[#allocation8 + $0x48] sm:$0xf]
        %v1338 = vld [vmem:[#allocation8 + $0x4c] sm:$0xf]
        %v1339 = vld [vmem:[#allocation8 + $0x50] sm:$0xf]
        %v1340 = vld [vmem:[#allocation8 + $0x54] sm:$0xf]
        %v1341 = vld [vmem:[#allocation8 + $0x58] sm:$0xf]
        %v1342 = vld [vmem:[#allocation8 + $0x5c] sm:$0xf]
        %v1343 = vld [vmem:[#allocation8 + $0x60] sm:$0xf]
        %v1344 = vld [vmem:[#allocation8 + $0x64] sm:$0xf]
        %v1345 = vld [vmem:[#allocation8 + $0x68] sm:$0xf]
        %v1346 = vld [vmem:[#allocation8 + $0x6c] sm:$0xf]
        %v1347 = vld [vmem:[#allocation8 + $0x70] sm:$0xf]
        %v1348 = vld [vmem:[#allocation8 + $0x74] sm:$0xf]
        %v1349 = vld [vmem:[#allocation8 + $0x78] sm:$0xf]
        %v1350 = vld [vmem:[#allocation8 + $0x7c] sm:$0xf]
        %v1351 = vld [vmem:[%s8] sm:$0x1]
        %v1353 = vlaneseq
        %v1354 = vshrl.u32 %v1353, 7
        %v1355 = vsub.s32 0, %v1354
        %v1356 = vrot.slane %v1351, %v1355
        %v1390 = vunpack.c.l.b16 %v1319
        %v1391 = vunpack.c.l.b16 %v1320
        %v1392 = vunpack.c.l.b16 %v1321
        %v1393 = vunpack.c.l.b16 %v1322
        %v1394 = vunpack.c.l.b16 %v1323
        %v1395 = vunpack.c.l.b16 %v1324
        %v1396 = vunpack.c.l.b16 %v1325
        %v1397 = vunpack.c.l.b16 %v1326
        %v1398 = vunpack.c.l.b16 %v1327
        %v1399 = vunpack.c.l.b16 %v1328
        %v1400 = vunpack.c.l.b16 %v1329
        %v1401 = vunpack.c.l.b16 %v1330
        %v1402 = vunpack.c.l.b16 %v1331
        %v1403 = vunpack.c.l.b16 %v1332
        %v1404 = vunpack.c.l.b16 %v1333
        %v1405 = vunpack.c.l.b16 %v1334
        %v1406 = vunpack.c.l.b16 %v1335
        %v1407 = vunpack.c.l.b16 %v1336
        %v1408 = vunpack.c.l.b16 %v1337
        %v1409 = vunpack.c.l.b16 %v1338
        %v1410 = vunpack.c.l.b16 %v1339
        %v1411 = vunpack.c.l.b16 %v1340
        %v1412 = vunpack.c.l.b16 %v1341
        %v1413 = vunpack.c.l.b16 %v1342
        %v1414 = vunpack.c.l.b16 %v1343
        %v1415 = vunpack.c.l.b16 %v1344
        %v1416 = vunpack.c.l.b16 %v1345
        %v1417 = vunpack.c.l.b16 %v1346
        %v1418 = vunpack.c.l.b16 %v1347
        %v1419 = vunpack.c.l.b16 %v1348
        %v1420 = vunpack.c.l.b16 %v1349
        %v1421 = vunpack.c.l.b16 %v1350
        %v1422 = vpack.c.b16 %v1391, %v1390
        %v1423 = vpack.c.b16 %v1393, %v1392
        %v1424 = vpack.c.b16 %v1395, %v1394
        %v1425 = vpack.c.b16 %v1397, %v1396
        %v1426 = vpack.c.b16 %v1399, %v1398
        %v1427 = vpack.c.b16 %v1401, %v1400
        %v1428 = vpack.c.b16 %v1403, %v1402
        %v1429 = vpack.c.b16 %v1405, %v1404
        %v1430 = vpack.c.b16 %v1407, %v1406
        %v1431 = vpack.c.b16 %v1409, %v1408
        %v1432 = vpack.c.b16 %v1411, %v1410
        %v1433 = vpack.c.b16 %v1413, %v1412
        %v1434 = vpack.c.b16 %v1415, %v1414
        %v1435 = vpack.c.b16 %v1417, %v1416
        %v1436 = vpack.c.b16 %v1419, %v1418
        %v1437 = vpack.c.b16 %v1421, %v1420
        %1454 = vmatprep.subr.bf16.mxu0 0
        %1455 = vmatpush1.bf16.msra.mxu0 %v1422
        %1456 = vmatprep.subr.bf16.mxu0 0
        %1457 = vmatpush1.bf16.msra.mxu0 %v1423
        %1458 = vmatprep.subr.bf16.mxu0 0
        %1459 = vmatpush1.bf16.msra.mxu0 %v1424
        %1460 = vmatprep.subr.bf16.mxu0 0
        %1461 = vmatpush1.bf16.msra.mxu0 %v1425
        %1462 = vmatprep.subr.bf16.mxu0 0
        %1463 = vmatpush1.bf16.msra.mxu0 %v1426
        %1464 = vmatprep.subr.bf16.mxu0 0
        %1465 = vmatpush1.bf16.msra.mxu0 %v1427
        %1466 = vmatprep.subr.bf16.mxu0 0
        %1467 = vmatpush1.bf16.msra.mxu0 %v1428
        %1468 = vmatprep.subr.bf16.mxu0 0
        %1469 = vmatpush1.bf16.msra.mxu0 %v1429
        %1470 = vmatprep.subr.bf16.mxu0 0
        %1471 = vmatpush1.bf16.msra.mxu0 %v1430
        %1472 = vmatprep.subr.bf16.mxu0 0
        %1473 = vmatpush1.bf16.msra.mxu0 %v1431
        %1474 = vmatprep.subr.bf16.mxu0 0
        %1475 = vmatpush1.bf16.msra.mxu0 %v1432
        %1476 = vmatprep.subr.bf16.mxu0 0
        %1477 = vmatpush1.bf16.msra.mxu0 %v1433
        %1478 = vmatprep.subr.bf16.mxu0 0
        %1479 = vmatpush1.bf16.msra.mxu0 %v1434
        %1480 = vmatprep.subr.bf16.mxu0 0
        %1481 = vmatpush1.bf16.msra.mxu0 %v1435
        %1482 = vmatprep.subr.bf16.mxu0 0
        %1483 = vmatpush1.bf16.msra.mxu0 %v1436
        %1484 = vmatprep.subr.bf16.mxu0 0
        %1485 = vmatpush1.bf16.msra.mxu0 %v1437
        %1486 = vmatprep.mubr.bf16.mxu0 %v1304
        %1487 = vmatmul.mubr.bf16.gmra.mrb[0].mxu0 %v1303
        %v1488 = vpop.f32.mrb[0].mxu0
        %v1489 = vadd.f32 %v1356, %v1488
        %v1490 = vpop.f32.mrb[0].mxu0
        %v1491 = vpop.f32.mrb[0].mxu0
        %v1492 = vadd.f32 %v1356, %v1491
        %v1493 = vpop.f32.mrb[0].mxu0
        %1494 = vmatprep.mubr.bf16.mxu0 %v1306
        %1495 = vmatmul.mubr.bf16.gmra.mrb[0].mxu0 %v1305
        %v1496 = vpop.f32.mrb[0].mxu0
        %v1497 = vadd.f32 %v1356, %v1496
        %v1498 = vpop.f32.mrb[0].mxu0
        %v1499 = vpop.f32.mrb[0].mxu0
        %v1500 = vadd.f32 %v1356, %v1499
        %v1501 = vpop.f32.mrb[0].mxu0
        %1502 = vmatprep.mubr.bf16.mxu0 %v1308
        %1503 = vmatmul.mubr.bf16.gmra.mrb[0].mxu0 %v1307
        %v1504 = vpop.f32.mrb[0].mxu0
        %v1505 = vadd.f32 %v1356, %v1504
        %v1506 = vpop.f32.mrb[0].mxu0
        %v1507 = vpop.f32.mrb[0].mxu0
        %v1508 = vadd.f32 %v1356, %v1507
        %v1509 = vpop.f32.mrb[0].mxu0
        %1510 = vmatprep.mubr.bf16.mxu0 %v1310
        %1511 = vmatmul.mubr.bf16.gmra.mrb[0].mxu0 %v1309
        %v1512 = vpop.f32.mrb[0].mxu0
        %v1513 = vadd.f32 %v1356, %v1512
        %v1514 = vpop.f32.mrb[0].mxu0
        %v1515 = vpop.f32.mrb[0].mxu0
        %v1516 = vadd.f32 %v1356, %v1515
        %v1517 = vpop.f32.mrb[0].mxu0
        %1518 = vmatprep.mubr.bf16.mxu0 %v1312
        %1519 = vmatmul.mubr.bf16.gmra.mrb[0].mxu0 %v1311
        %v1520 = vpop.f32.mrb[0].mxu0
        %v1521 = vadd.f32 %v1356, %v1520
        %v1522 = vpop.f32.mrb[0].mxu0
        %v1523 = vpop.f32.mrb[0].mxu0
        %v1524 = vadd.f32 %v1356, %v1523
        %v1525 = vpop.f32.mrb[0].mxu0
        %1526 = vmatprep.mubr.bf16.mxu0 %v1314
        %1527 = vmatmul.mubr.bf16.gmra.mrb[0].mxu0 %v1313
        %v1528 = vpop.f32.mrb[0].mxu0
        %v1529 = vadd.f32 %v1356, %v1528
        %v1530 = vpop.f32.mrb[0].mxu0
        %v1531 = vpop.f32.mrb[0].mxu0
        %v1532 = vadd.f32 %v1356, %v1531
        %v1533 = vpop.f32.mrb[0].mxu0
        %1534 = vmatprep.mubr.bf16.mxu0 %v1316
        %1535 = vmatmul.mubr.bf16.gmra.mrb[0].mxu0 %v1315
        %v1536 = vpop.f32.mrb[0].mxu0
        %v1537 = vadd.f32 %v1356, %v1536
        %v1538 = vpop.f32.mrb[0].mxu0
        %v1539 = vpop.f32.mrb[0].mxu0
        %v1540 = vadd.f32 %v1356, %v1539
        %v1541 = vpop.f32.mrb[0].mxu0
        %1542 = vmatprep.mubr.bf16.mxu0 %v1318
        %1543 = vmatmul.mubr.bf16.gmra.mrb[0].mxu0 %v1317
        %v1544 = vpop.f32.mrb[0].mxu0
        %v1545 = vadd.f32 %v1356, %v1544
        %v1546 = vpop.f32.mrb[0].mxu0
        %v1547 = vpop.f32.mrb[0].mxu0
        %v1548 = vadd.f32 %v1356, %v1547
        %v1549 = vpop.f32.mrb[0].mxu0
        %1550 = vdwg.mxu0
        %1551 = vst [vmem:[%s387] sm:$0xff] %v1489
        %1552 = vst [vmem:[%s387 + $0x8] sm:$0xff] %v1492
        %1553 = vst [vmem:[%s387 + $0x10] sm:$0xff] %v1497
        %1554 = vst [vmem:[%s387 + $0x18] sm:$0xff] %v1500
        %1555 = vst [vmem:[%s387 + $0x20] sm:$0xff] %v1505
        %1556 = vst [vmem:[%s387 + $0x28] sm:$0xff] %v1508
        %1557 = vst [vmem:[%s387 + $0x30] sm:$0xff] %v1513
        %1558 = vst [vmem:[%s387 + $0x38] sm:$0xff] %v1516
        %1559 = vst [vmem:[%s387 + $0x40] sm:$0xff] %v1521
        %1560 = vst [vmem:[%s387 + $0x48] sm:$0xff] %v1524
        %1561 = vst [vmem:[%s387 + $0x50] sm:$0xff] %v1529
        %1562 = vst [vmem:[%s387 + $0x58] sm:$0xff] %v1532
        %1563 = vst [vmem:[%s387 + $0x60] sm:$0xff] %v1537
        %1564 = vst [vmem:[%s387 + $0x68] sm:$0xff] %v1540
        %1565 = vst [vmem:[%s387 + $0x70] sm:$0xff] %v1545
        %1566 = vst [vmem:[%s387 + $0x78] sm:$0xff] %v1548
        %s1567 = sand.u32 %s233, 1
        %s1568 = scalar_lea.sflag [#allocation5], %s1567
        %s1569 = sand.u32 %s233, 1
        %s1570 = smul.addr %s1569, 128
        %s1571 = scalar_lea.vmem [#allocation9], %s1570
        // Predicated region
        $region69: #{tpu_custom_call.1} parent=55 // pred_check
          %p1572 = pneg %p243
        $region70: #{tpu_custom_call.1} parent=55 // pred_check_branch
          %1574 = sbr.rel (%p1572) target = $region72
        $region71: #{tpu_custom_call.1} parent=55 // pred_region
          %s1575 = smul.u32 16, %s26
          %s1577 = ssub.s32 2048, 2048
          %1578 = vsyncadd %s1568, %s1577
          %s1579 = smul.addr %s1575, 128
          %s1580 = scalar_lea.hbm %s9, %s1579
          %s1581 = sshll.u32 %s1571, 4
          %s1582 = int_to_ptr.vmem [resolvable:$true] %s1581
          %1587 = dma.vmem_to_hbm [thread:$0]  %s1582, 2048, %s1580, %s1568, 128, 128, 8
        $region72: #{tpu_custom_call.1} parent=55 // pred_fallthru
          _
      $region56: #{tpu_custom_call.1} parent=5 // pred_fallthru
        _
      %p1588 = scmp.le.s32.totalorder 2, %s21
      // Predicated region
      $region73: #{tpu_custom_call.1} parent=5 // pred_check
        %p1589 = pneg %p1588
      $region74: #{tpu_custom_call.1} parent=5 // pred_check_branch
        %1591 = sbr.rel (%p1589) target = $region76
      $region75: #{tpu_custom_call.1} parent=5 // pred_region
        %s1592 = ssub.s32 %s21, 2
        // Predicated region
        $region77: #{tpu_custom_call.1} parent=75 // pred_check
          %p1593 = pneg %p249
        $region78: #{tpu_custom_call.1} parent=75 // pred_check_branch
          %1595 = sbr.rel (%p1593) target = $region80
        $region79: #{tpu_custom_call.1} parent=75 // pred_region
          %s1596 = sand.u32 %s234, 1
          %s1597 = scalar_lea.sflag [#allocation5], %s1596
          %s1598 = sand.u32 %s234, 1
          %s1599 = smul.addr %s1598, 128
          %s1600 = scalar_lea.vmem [#allocation9], %s1599
          %1601 = dma.done %s1597, 2048
        $region80: #{tpu_custom_call.1} parent=75 // pred_fallthru
          _
      $region76: #{tpu_custom_call.1} parent=5 // pred_fallthru
        _
    $region6: #{tpu_custom_call.1} parent=1 // loop_footer
      %s25 = sadd.s32 1, %s21
    $region7: #{tpu_custom_call.1} parent=1 // loop_footer_branch
      %20 = sbr.rel target = $region3
    $region8: #{tpu_custom_call.1} parent=1 // loop_exit
      _
    %1602 = vsyncpa [#allocation4], 1
    %s1603 = scalar_lea.sflag [#allocation4], 1
    %1604 = vsyncpa %s1603, 1
    %1605 = vsyncpa [#allocation7], 1
    %1606 = vsyncpa [#allocation5], 1
    %s1607 = scalar_lea.sflag [#allocation5], 1
    %1608 = vsyncpa %s1607, 1

</llo_original>
